<compile_context>
chip_gen: v5e
topology: v5e:2x2
jax: 0.10.0
libtpu: 0.0.40
codegen_flags: <defaults>
</compile_context>

<pallas_src>
import jax
import jax.numpy as jnp
from jax import lax
from jax.experimental import pallas as pl
from jax.experimental.pallas import tpu as pltpu


def _round_up(n: int, m: int) -> int:
    return ((n + m - 1) // m) * m


# ---------------------------------------------------------------------------
# Fused kernel: L GRU layers + Linear head, everything resident in VMEM.
# ---------------------------------------------------------------------------
def decoder_kernel(x_ref, h0_ref, wih_ref, whh_ref, bih_ref, bhh_ref,
                   wout_ref, bout_ref, out_ref, hN_ref,
                   gi_scr, act_a, act_b):
    """
    x_ref   : (S, Bp, Hp)    layer-0 input, feature/batch zero-padded
    h0_ref  : (L, Bp, Hp)    initial hidden
    wih_ref : (L, Hp, 3*Hp)  input weights, per-gate lane-padded  [r | z | n]
    whh_ref : (L, Hp, 3*Hp)  hidden weights
    bih_ref : (L, 1, 3*Hp)   input bias
    bhh_ref : (L, 1, 3*Hp)   hidden bias
    wout_ref: (Hp, Op)       Linear head weight
    bout_ref: (1, Op)        Linear head bias
    out_ref : (S, Bp, Op)    head output (lane-dense, Op multiple of 128)
    hN_ref  : (L, Bp, Hp)    final hidden per layer
    gi_scr  : (S, Bp, 3*Hp)  VMEM scratch: hoisted input projections
    act_a/b : (S, Bp, Hp)    VMEM scratch: layer activations (ping-pong)
    """
    S, Bp, Hp = act_a.shape
    L = wih_ref.shape[0]

    acts = (act_a, act_b)
    for l in range(L):
        src = x_ref if l == 0 else acts[(l - 1) % 2]
        dst = acts[l % 2]

        # Hoisted input projection for the whole sequence: one large MXU
        # matmul instead of S tiny ones on the recurrent critical path.
        # (Bp multiple of 8, Hp multiple of 128 => reshape is layout-free.)
        inp = src[...].reshape(S * Bp, Hp)
        gi = (jnp.dot(inp, wih_ref[l], preferred_element_type=jnp.float32)
              + bih_ref[l])
        gi_scr[...] = gi.reshape(S, Bp, 3 * Hp)

        whh = whh_ref[l]          # (Hp, 3Hp), resident across the time loop
        bhh = bhh_ref[l]          # (1, 3Hp)

        def step(t, h, whh=whh, bhh=bhh, dst=dst):
            gi_t = gi_scr[t]                                       # (Bp, 3Hp)
            gh = jnp.dot(h, whh, preferred_element_type=jnp.float32) + bhh
            # Gate slices are 128-lane aligned thanks to per-gate padding.
            r = jax.nn.sigmoid(gi_t[:, :Hp] + gh[:, :Hp])
            z = jax.nn.sigmoid(gi_t[:, Hp:2 * Hp] + gh[:, Hp:2 * Hp])
            n = jnp.tanh(gi_t[:, 2 * Hp:] + r * gh[:, 2 * Hp:])
            h_new = (1.0 - z) * n + z * h
            dst[t] = h_new
            return h_new

        # Strictly sequential recurrence: in-kernel loop (fully unrolled for
        # small fixed S so the LLO scheduler sees the whole chain).
        h_last = lax.fori_loop(0, S, step, h0_ref[l], unroll=(S <= 32))
        hN_ref[l] = h_last

    # Fused Linear head: one big matmul over the whole activation slab and a
    # single lane-dense bulk store of the output.
    y = acts[(L - 1) % 2][...].reshape(S * Bp, Hp)
    out = (jnp.dot(y, wout_ref[...], preferred_element_type=jnp.float32)
           + bout_ref[...])
    out_ref[...] = out.reshape(S, Bp, out_ref.shape[2])


# ---------------------------------------------------------------------------
# One-time parameter padding (zero-pad gates/head to 128 lanes, stack layers).
# ---------------------------------------------------------------------------
def pad_params(params):
    w_out, b_out = params["out"]
    H, O = w_out.shape
    Hp = _round_up(H, 128)
    Op = _round_up(O, 128)

    def pad_gates(w):  # (..., 3H) -> (..., 3Hp), each gate padded separately
        parts = []
        for g in range(3):
            p = w[..., g * H:(g + 1) * H]
            pad = [(0, 0)] * (p.ndim - 1) + [(0, Hp - H)]
            parts.append(jnp.pad(p, pad))
        return jnp.concatenate(parts, axis=-1)

    wihs, whhs, bihs, bhhs = [], [], [], []
    for wih, whh, bih, bhh in params["gru"]:
        in_l = wih.shape[0]
        assert in_l <= Hp, "input feature dim must fit the padded hidden dim"
        wihs.append(jnp.pad(pad_gates(wih), ((0, Hp - in_l), (0, 0))))
        whhs.append(jnp.pad(pad_gates(whh), ((0, Hp - H), (0, 0))))
        bihs.append(pad_gates(bih))
        bhhs.append(pad_gates(bhh))

    return {
        "wih": jnp.stack(wihs),                                # (L, Hp, 3Hp)
        "whh": jnp.stack(whhs),                                # (L, Hp, 3Hp)
        "bih": jnp.stack(bihs),                                # (L, 1, 3Hp)
        "bhh": jnp.stack(bhhs),                                # (L, 1, 3Hp)
        "wout": jnp.pad(w_out, ((0, Hp - H), (0, Op - O))),    # (Hp, Op)
        "bout": jnp.pad(b_out, ((0, 0), (0, Op - O))),         # (1, Op)
    }


# ---------------------------------------------------------------------------
# Forward wrapper (batch_first=True, like the PyTorch module).
# ---------------------------------------------------------------------------
@jax.jit
def decoder_rnn_forward(x, h0, pp):
    """x: (B, S, output_size); h0: (L, B, hidden_size); pp: pad_params(...)."""
    B, S, O = x.shape
    L, _, H = h0.shape
    Hp = pp["wih"].shape[1]
    Op = pp["wout"].shape[1]
    Bp = _round_up(B, 8)

    # Time-major; pad batch to 8 sublanes and features to Hp lanes.
    x_tm = jnp.transpose(x, (1, 0, 2))                               # (S,B,O)
    x_p = jnp.zeros((S, Bp, Hp), jnp.float32).at[:, :B, :O].set(x_tm)
    h0_p = jnp.zeros((L, Bp, Hp), jnp.float32).at[:, :B, :H].set(h0)

    vmem_spec = pl.BlockSpec(memory_space=pltpu.MemorySpace.VMEM)
    out_p, hN_p = pl.pallas_call(
        decoder_kernel,
        out_shape=(
            jax.ShapeDtypeStruct((S, Bp, Op), jnp.float32),
            jax.ShapeDtypeStruct((L, Bp, Hp), jnp.float32),
        ),
        in_specs=[vmem_spec] * 8,
        out_specs=(vmem_spec, vmem_spec),
        scratch_shapes=[
            pltpu.VMEM((S, Bp, 3 * Hp), jnp.float32),   # hoisted gi
            pltpu.VMEM((S, Bp, Hp), jnp.float32),       # activations (ping)
            pltpu.VMEM((S, Bp, Hp), jnp.float32),       # activations (pong)
        ],
    )(x_p, h0_p, pp["wih"], pp["whh"], pp["bih"], pp["bhh"],
      pp["wout"], pp["bout"])

    out = jnp.transpose(out_p[:, :B, :O], (1, 0, 2))                 # (B,S,O)
    hidden = hN_p[:, :B, :H]                                         # (L,B,H)
    return out, hidden


# ---------------------------------------------------------------------------
# Pure-JAX reference (matches PyTorch nn.GRU + nn.Linear semantics)
# ---------------------------------------------------------------------------
def ref_forward(x, h0, params):
    B, S, _ = x.shape
    L, _, H = h0.shape
    inp = x
    finals = []
    for l in range(L):
        wih, whh, bih, bhh = params["gru"][l]
        h = h0[l]
        ys = []
        for t in range(S):
            xt = inp[:, t, :]
            gi = xt @ wih + bih
            gh = h @ whh + bhh
            r = jax.nn.sigmoid(gi[:, :H] + gh[:, :H])
            z = jax.nn.sigmoid(gi[:, H:2 * H] + gh[:, H:2 * H])
            n = jnp.tanh(gi[:, 2 * H:] + r * gh[:, 2 * H:])
            h = (1.0 - z) * n + z * h
            ys.append(h)
        inp = jnp.stack(ys, axis=1)
        finals.append(h)
    w_out, b_out = params["out"]
    out = inp @ w_out + b_out
    return out, jnp.stack(finals, axis=0)


# ---------------------------------------------------------------------------
# Deterministic parameter initialization (PyTorch-style uniform(-k, k))
# ---------------------------------------------------------------------------
def init_params(key, output_size, hidden_size, num_layers):
    k = 1.0 / jnp.sqrt(hidden_size)
    params = {"gru": []}
    for l in range(num_layers):
        in_size = output_size if l == 0 else hidden_size
        key, k1, k2, k3, k4 = jax.random.split(key, 5)
        wih = jax.random.uniform(k1, (in_size, 3 * hidden_size), jnp.float32, -k, k)
        whh = jax.random.uniform(k2, (hidden_size, 3 * hidden_size), jnp.float32, -k, k)
        bih = jax.random.uniform(k3, (1, 3 * hidden_size), jnp.float32, -k, k)
        bhh = jax.random.uniform(k4, (1, 3 * hidden_size), jnp.float32, -k, k)
        params["gru"].append((wih, whh, bih, bhh))
    key, k5, k6 = jax.random.split(key, 3)
    w_out = jax.random.uniform(k5, (hidden_size, output_size), jnp.float32, -k, k)
    b_out = jax.random.uniform(k6, (1, output_size), jnp.float32, -k, k)
    params["out"] = (w_out, b_out)
    return params


# ---------------------------------------------------------------------------
if __name__ == "__main__":
    batch = 2
    seq = 8
    output_size = 16
    hidden_size = 32
    num_layers = 2

    key = jax.random.PRNGKey(0)
    key, kx, kh, kp = jax.random.split(key, 4)
    x = jax.random.normal(kx, (batch, seq, output_size), jnp.float32)
    h0 = jax.random.normal(kh, (num_layers, batch, hidden_size), jnp.float32)
    params = init_params(kp, output_size, hidden_size, num_layers)
    padded = pad_params(params)   # one-time, outside the forward pass

    out, hidden = decoder_rnn_forward(x, h0, padded)
    out, hidden = jax.block_until_ready((out, hidden))

    ref_out, ref_hidden = ref_forward(x, h0, params)
    assert out.shape == (batch, seq, output_size)
    assert hidden.shape == (num_layers, batch, hidden_size)
    err_o = float(jnp.max(jnp.abs(out - ref_out)))
    err_h = float(jnp.max(jnp.abs(hidden - ref_hidden)))
    assert jnp.allclose(out, ref_out, atol=1e-5, rtol=1e-5), err_o
    assert jnp.allclose(hidden, ref_hidden, atol=1e-5, rtol=1e-5), err_h

    print("KERNEL_OK")
</pallas_src>

<mosaic_0001>
module attributes {stable_mosaic.version = 11 : i64} {
  func.func @decoder_kernel(%arg0: memref<8x8x128xf32, #tpu.memory_space<vmem>>, %arg1: memref<2x8x128xf32, #tpu.memory_space<vmem>>, %arg2: memref<2x128x384xf32, #tpu.memory_space<vmem>>, %arg3: memref<2x128x384xf32, #tpu.memory_space<vmem>>, %arg4: memref<2x1x384xf32, #tpu.memory_space<vmem>>, %arg5: memref<2x1x384xf32, #tpu.memory_space<vmem>>, %arg6: memref<128x128xf32, #tpu.memory_space<vmem>>, %arg7: memref<1x128xf32, #tpu.memory_space<vmem>>, %arg8: memref<8x8x128xf32, #tpu.memory_space<vmem>>, %arg9: memref<2x8x128xf32, #tpu.memory_space<vmem>>, %arg10: memref<8x8x384xf32, #tpu.memory_space<vmem>>, %arg11: memref<8x8x128xf32, #tpu.memory_space<vmem>>, %arg12: memref<8x8x128xf32, #tpu.memory_space<vmem>>) attributes {dimension_semantics = [], scalar_prefetch = 0 : i64, scratch_operands = 3 : i64, tpu.core_type = #tpu.core_type<tc>} {
    %c0 = arith.constant 0 : index
    %c0_0 = arith.constant 0 : index
    %c0_1 = arith.constant 0 : index
    %0 = vector.load %arg0[%c0, %c0_0, %c0_1] : memref<8x8x128xf32, #tpu.memory_space<vmem>>, vector<8x8x128xf32>
    %1 = vector.shape_cast %0 : vector<8x8x128xf32> to vector<64x128xf32>
    %c0_2 = arith.constant 0 : index
    %c0_3 = arith.constant 0 : index
    %c0_4 = arith.constant 0 : index
    %2 = vector.load %arg2[%c0_2, %c0_3, %c0_4] : memref<2x128x384xf32, #tpu.memory_space<vmem>>, vector<1x128x384xf32>
    %3 = vector.shape_cast %2 : vector<1x128x384xf32> to vector<128x384xf32>
    %cst = arith.constant dense<0.000000e+00> : vector<64x384xf32>
    %4 = tpu.matmul %1, %3, %cst {dimension_numbers = #tpu.dot_dimension_numbers<[1], [0], [0], [1], [0, 0, 1, 1], [], []>} : vector<64x128xf32>, vector<128x384xf32>, vector<64x384xf32> -> vector<64x384xf32>
    %c0_5 = arith.constant 0 : index
    %c0_6 = arith.constant 0 : index
    %c0_7 = arith.constant 0 : index
    %5 = vector.load %arg4[%c0_5, %c0_6, %c0_7] : memref<2x1x384xf32, #tpu.memory_space<vmem>>, vector<1x1x384xf32>
    %6 = vector.shape_cast %5 : vector<1x1x384xf32> to vector<1x384xf32>
    %7 = vector.broadcast %6 : vector<1x384xf32> to vector<64x384xf32>
    %8 = arith.addf %4, %7 : vector<64x384xf32>
    %9 = vector.shape_cast %8 : vector<64x384xf32> to vector<8x8x384xf32>
    %c0_8 = arith.constant 0 : index
    %c0_9 = arith.constant 0 : index
    %c0_10 = arith.constant 0 : index
    %10 = vector.load %arg10[%c0_8, %c0_9, %c0_10] : memref<8x8x384xf32, #tpu.memory_space<vmem>>, vector<8x8x384xf32>
    tpu.vector_store %arg10[%c0_8, %c0_9, %c0_10], %9 {strides = array<i32>} : memref<8x8x384xf32, #tpu.memory_space<vmem>>, vector<8x8x384xf32>,
    %c0_11 = arith.constant 0 : index
    %c0_12 = arith.constant 0 : index
    %c0_13 = arith.constant 0 : index
    %11 = vector.load %arg3[%c0_11, %c0_12, %c0_13] : memref<2x128x384xf32, #tpu.memory_space<vmem>>, vector<1x128x384xf32>
    %12 = vector.shape_cast %11 : vector<1x128x384xf32> to vector<128x384xf32>
    %c0_14 = arith.constant 0 : index
    %c0_15 = arith.constant 0 : index
    %c0_16 = arith.constant 0 : index
    %13 = vector.load %arg5[%c0_14, %c0_15, %c0_16] : memref<2x1x384xf32, #tpu.memory_space<vmem>>, vector<1x1x384xf32>
    %14 = vector.shape_cast %13 : vector<1x1x384xf32> to vector<1x384xf32>
    %c0_17 = arith.constant 0 : index
    %c0_18 = arith.constant 0 : index
    %c0_19 = arith.constant 0 : index
    %15 = vector.load %arg1[%c0_17, %c0_18, %c0_19] : memref<2x8x128xf32, #tpu.memory_space<vmem>>, vector<1x8x128xf32>
    %16 = vector.shape_cast %15 : vector<1x8x128xf32> to vector<8x128xf32>
    %c0_i32 = arith.constant 0 : i32
    %17 = arith.index_cast %c0_i32 : i32 to index
    %c0_20 = arith.constant 0 : index
    %c0_21 = arith.constant 0 : index
    %18 = vector.load %arg10[%17, %c0_20, %c0_21] : memref<8x8x384xf32, #tpu.memory_space<vmem>>, vector<1x8x384xf32>
    %19 = vector.shape_cast %18 : vector<1x8x384xf32> to vector<8x384xf32>
    %cst_22 = arith.constant dense<0.000000e+00> : vector<8x384xf32>
    %20 = tpu.matmul %16, %12, %cst_22 {dimension_numbers = #tpu.dot_dimension_numbers<[1], [0], [0], [1], [0, 0, 1, 1], [], []>} : vector<8x128xf32>, vector<128x384xf32>, vector<8x384xf32> -> vector<8x384xf32>
    %21 = vector.broadcast %14 : vector<1x384xf32> to vector<8x384xf32>
    %22 = arith.addf %20, %21 : vector<8x384xf32>
    %23 = vector.extract_strided_slice %19 {offsets = [0, 0], sizes = [8, 128], strides = [1, 1]} : vector<8x384xf32> to vector<8x128xf32>
    %24 = vector.extract_strided_slice %22 {offsets = [0, 0], sizes = [8, 128], strides = [1, 1]} : vector<8x384xf32> to vector<8x128xf32>
    %25 = arith.addf %23, %24 : vector<8x128xf32>
    %26 = arith.negf %25 : vector<8x128xf32>
    %27 = math.exp %26 : vector<8x128xf32>
    %cst_23 = arith.constant 1.000000e+00 : f32
    %28 = vector.broadcast %cst_23 : f32 to vector<8x128xf32>
    %29 = arith.addf %28, %27 : vector<8x128xf32>
    %30 = arith.divf %28, %29 : vector<8x128xf32>
    %31 = vector.extract_strided_slice %19 {offsets = [0, 128], sizes = [8, 128], strides = [1, 1]} : vector<8x384xf32> to vector<8x128xf32>
    %32 = vector.extract_strided_slice %22 {offsets = [0, 128], sizes = [8, 128], strides = [1, 1]} : vector<8x384xf32> to vector<8x128xf32>
    %33 = arith.addf %31, %32 : vector<8x128xf32>
    %34 = arith.negf %33 : vector<8x128xf32>
    %35 = math.exp %34 : vector<8x128xf32>
    %cst_24 = arith.constant 1.000000e+00 : f32
    %36 = vector.broadcast %cst_24 : f32 to vector<8x128xf32>
    %37 = arith.addf %36, %35 : vector<8x128xf32>
    %38 = arith.divf %36, %37 : vector<8x128xf32>
    %39 = vector.extract_strided_slice %19 {offsets = [0, 256], sizes = [8, 128], strides = [1, 1]} : vector<8x384xf32> to vector<8x128xf32>
    %40 = vector.extract_strided_slice %22 {offsets = [0, 256], sizes = [8, 128], strides = [1, 1]} : vector<8x384xf32> to vector<8x128xf32>
    %41 = arith.mulf %30, %40 : vector<8x128xf32>
    %42 = arith.addf %39, %41 : vector<8x128xf32>
    %43 = math.tanh %42 : vector<8x128xf32>
    %cst_25 = arith.constant 1.000000e+00 : f32
    %44 = vector.broadcast %cst_25 : f32 to vector<8x128xf32>
    %45 = arith.subf %44, %38 : vector<8x128xf32>
    %46 = arith.mulf %45, %43 : vector<8x128xf32>
    %47 = arith.mulf %38, %16 : vector<8x128xf32>
    %48 = arith.addf %46, %47 : vector<8x128xf32>
    %49 = arith.index_cast %c0_i32 : i32 to index
    %c0_26 = arith.constant 0 : index
    %c0_27 = arith.constant 0 : index
    %50 = vector.load %arg11[%49, %c0_26, %c0_27] : memref<8x8x128xf32, #tpu.memory_space<vmem>>, vector<1x8x128xf32>
    %51 = vector.shape_cast %50 : vector<1x8x128xf32> to vector<8x128xf32>
    %52 = vector.shape_cast %48 : vector<8x128xf32> to vector<1x8x128xf32>
    tpu.vector_store %arg11[%49, %c0_26, %c0_27], %52 {strides = array<i32>} : memref<8x8x128xf32, #tpu.memory_space<vmem>>, vector<1x8x128xf32>,
    %c1_i32 = arith.constant 1 : i32
    %53 = arith.index_cast %c1_i32 : i32 to index
    %c0_28 = arith.constant 0 : index
    %c0_29 = arith.constant 0 : index
    %54 = vector.load %arg10[%53, %c0_28, %c0_29] : memref<8x8x384xf32, #tpu.memory_space<vmem>>, vector<1x8x384xf32>
    %55 = vector.shape_cast %54 : vector<1x8x384xf32> to vector<8x384xf32>
    %cst_30 = arith.constant dense<0.000000e+00> : vector<8x384xf32>
    %56 = tpu.matmul %48, %12, %cst_30 {dimension_numbers = #tpu.dot_dimension_numbers<[1], [0], [0], [1], [0, 0, 1, 1], [], []>} : vector<8x128xf32>, vector<128x384xf32>, vector<8x384xf32> -> vector<8x384xf32>
    %57 = vector.broadcast %14 : vector<1x384xf32> to vector<8x384xf32>
    %58 = arith.addf %56, %57 : vector<8x384xf32>
    %59 = vector.extract_strided_slice %55 {offsets = [0, 0], sizes = [8, 128], strides = [1, 1]} : vector<8x384xf32> to vector<8x128xf32>
    %60 = vector.extract_strided_slice %58 {offsets = [0, 0], sizes = [8, 128], strides = [1, 1]} : vector<8x384xf32> to vector<8x128xf32>
    %61 = arith.addf %59, %60 : vector<8x128xf32>
    %62 = arith.negf %61 : vector<8x128xf32>
    %63 = math.exp %62 : vector<8x128xf32>
    %cst_31 = arith.constant 1.000000e+00 : f32
    %64 = vector.broadcast %cst_31 : f32 to vector<8x128xf32>
    %65 = arith.addf %64, %63 : vector<8x128xf32>
    %66 = arith.divf %64, %65 : vector<8x128xf32>
    %67 = vector.extract_strided_slice %55 {offsets = [0, 128], sizes = [8, 128], strides = [1, 1]} : vector<8x384xf32> to vector<8x128xf32>
    %68 = vector.extract_strided_slice %58 {offsets = [0, 128], sizes = [8, 128], strides = [1, 1]} : vector<8x384xf32> to vector<8x128xf32>
    %69 = arith.addf %67, %68 : vector<8x128xf32>
    %70 = arith.negf %69 : vector<8x128xf32>
    %71 = math.exp %70 : vector<8x128xf32>
    %cst_32 = arith.constant 1.000000e+00 : f32
    %72 = vector.broadcast %cst_32 : f32 to vector<8x128xf32>
    %73 = arith.addf %72, %71 : vector<8x128xf32>
    %74 = arith.divf %72, %73 : vector<8x128xf32>
    %75 = vector.extract_strided_slice %55 {offsets = [0, 256], sizes = [8, 128], strides = [1, 1]} : vector<8x384xf32> to vector<8x128xf32>
    %76 = vector.extract_strided_slice %58 {offsets = [0, 256], sizes = [8, 128], strides = [1, 1]} : vector<8x384xf32> to vector<8x128xf32>
    %77 = arith.mulf %66, %76 : vector<8x128xf32>
    %78 = arith.addf %75, %77 : vector<8x128xf32>
    %79 = math.tanh %78 : vector<8x128xf32>
    %cst_33 = arith.constant 1.000000e+00 : f32
    %80 = vector.broadcast %cst_33 : f32 to vector<8x128xf32>
    %81 = arith.subf %80, %74 : vector<8x128xf32>
    %82 = arith.mulf %81, %79 : vector<8x128xf32>
    %83 = arith.mulf %74, %48 : vector<8x128xf32>
    %84 = arith.addf %82, %83 : vector<8x128xf32>
    %85 = arith.index_cast %c1_i32 : i32 to index
    %c0_34 = arith.constant 0 : index
    %c0_35 = arith.constant 0 : index
    %86 = vector.load %arg11[%85, %c0_34, %c0_35] : memref<8x8x128xf32, #tpu.memory_space<vmem>>, vector<1x8x128xf32>
    %87 = vector.shape_cast %86 : vector<1x8x128xf32> to vector<8x128xf32>
    %88 = vector.shape_cast %84 : vector<8x128xf32> to vector<1x8x128xf32>
    tpu.vector_store %arg11[%85, %c0_34, %c0_35], %88 {strides = array<i32>} : memref<8x8x128xf32, #tpu.memory_space<vmem>>, vector<1x8x128xf32>,
    %c2_i32 = arith.constant 2 : i32
    %89 = arith.index_cast %c2_i32 : i32 to index
    %c0_36 = arith.constant 0 : index
    %c0_37 = arith.constant 0 : index
    %90 = vector.load %arg10[%89, %c0_36, %c0_37] : memref<8x8x384xf32, #tpu.memory_space<vmem>>, vector<1x8x384xf32>
    %91 = vector.shape_cast %90 : vector<1x8x384xf32> to vector<8x384xf32>
    %cst_38 = arith.constant dense<0.000000e+00> : vector<8x384xf32>
    %92 = tpu.matmul %84, %12, %cst_38 {dimension_numbers = #tpu.dot_dimension_numbers<[1], [0], [0], [1], [0, 0, 1, 1], [], []>} : vector<8x128xf32>, vector<128x384xf32>, vector<8x384xf32> -> vector<8x384xf32>
    %93 = vector.broadcast %14 : vector<1x384xf32> to vector<8x384xf32>
    %94 = arith.addf %92, %93 : vector<8x384xf32>
    %95 = vector.extract_strided_slice %91 {offsets = [0, 0], sizes = [8, 128], strides = [1, 1]} : vector<8x384xf32> to vector<8x128xf32>
    %96 = vector.extract_strided_slice %94 {offsets = [0, 0], sizes = [8, 128], strides = [1, 1]} : vector<8x384xf32> to vector<8x128xf32>
    %97 = arith.addf %95, %96 : vector<8x128xf32>
    %98 = arith.negf %97 : vector<8x128xf32>
    %99 = math.exp %98 : vector<8x128xf32>
    %cst_39 = arith.constant 1.000000e+00 : f32
    %100 = vector.broadcast %cst_39 : f32 to vector<8x128xf32>
    %101 = arith.addf %100, %99 : vector<8x128xf32>
    %102 = arith.divf %100, %101 : vector<8x128xf32>
    %103 = vector.extract_strided_slice %91 {offsets = [0, 128], sizes = [8, 128], strides = [1, 1]} : vector<8x384xf32> to vector<8x128xf32>
    %104 = vector.extract_strided_slice %94 {offsets = [0, 128], sizes = [8, 128], strides = [1, 1]} : vector<8x384xf32> to vector<8x128xf32>
    %105 = arith.addf %103, %104 : vector<8x128xf32>
    %106 = arith.negf %105 : vector<8x128xf32>
    %107 = math.exp %106 : vector<8x128xf32>
    %cst_40 = arith.constant 1.000000e+00 : f32
    %108 = vector.broadcast %cst_40 : f32 to vector<8x128xf32>
    %109 = arith.addf %108, %107 : vector<8x128xf32>
    %110 = arith.divf %108, %109 : vector<8x128xf32>
    %111 = vector.extract_strided_slice %91 {offsets = [0, 256], sizes = [8, 128], strides = [1, 1]} : vector<8x384xf32> to vector<8x128xf32>
    %112 = vector.extract_strided_slice %94 {offsets = [0, 256], sizes = [8, 128], strides = [1, 1]} : vector<8x384xf32> to vector<8x128xf32>
    %113 = arith.mulf %102, %112 : vector<8x128xf32>
    %114 = arith.addf %111, %113 : vector<8x128xf32>
    %115 = math.tanh %114 : vector<8x128xf32>
    %cst_41 = arith.constant 1.000000e+00 : f32
    %116 = vector.broadcast %cst_41 : f32 to vector<8x128xf32>
    %117 = arith.subf %116, %110 : vector<8x128xf32>
    %118 = arith.mulf %117, %115 : vector<8x128xf32>
    %119 = arith.mulf %110, %84 : vector<8x128xf32>
    %120 = arith.addf %118, %119 : vector<8x128xf32>
    %121 = arith.index_cast %c2_i32 : i32 to index
    %c0_42 = arith.constant 0 : index
    %c0_43 = arith.constant 0 : index
    %122 = vector.load %arg11[%121, %c0_42, %c0_43] : memref<8x8x128xf32, #tpu.memory_space<vmem>>, vector<1x8x128xf32>
    %123 = vector.shape_cast %122 : vector<1x8x128xf32> to vector<8x128xf32>
    %124 = vector.shape_cast %120 : vector<8x128xf32> to vector<1x8x128xf32>
    tpu.vector_store %arg11[%121, %c0_42, %c0_43], %124 {strides = array<i32>} : memref<8x8x128xf32, #tpu.memory_space<vmem>>, vector<1x8x128xf32>,
    %c3_i32 = arith.constant 3 : i32
    %125 = arith.index_cast %c3_i32 : i32 to index
    %c0_44 = arith.constant 0 : index
    %c0_45 = arith.constant 0 : index
    %126 = vector.load %arg10[%125, %c0_44, %c0_45] : memref<8x8x384xf32, #tpu.memory_space<vmem>>, vector<1x8x384xf32>
    %127 = vector.shape_cast %126 : vector<1x8x384xf32> to vector<8x384xf32>
    %cst_46 = arith.constant dense<0.000000e+00> : vector<8x384xf32>
    %128 = tpu.matmul %120, %12, %cst_46 {dimension_numbers = #tpu.dot_dimension_numbers<[1], [0], [0], [1], [0, 0, 1, 1], [], []>} : vector<8x128xf32>, vector<128x384xf32>, vector<8x384xf32> -> vector<8x384xf32>
    %129 = vector.broadcast %14 : vector<1x384xf32> to vector<8x384xf32>
    %130 = arith.addf %128, %129 : vector<8x384xf32>
    %131 = vector.extract_strided_slice %127 {offsets = [0, 0], sizes = [8, 128], strides = [1, 1]} : vector<8x384xf32> to vector<8x128xf32>
    %132 = vector.extract_strided_slice %130 {offsets = [0, 0], sizes = [8, 128], strides = [1, 1]} : vector<8x384xf32> to vector<8x128xf32>
    %133 = arith.addf %131, %132 : vector<8x128xf32>
    %134 = arith.negf %133 : vector<8x128xf32>
    %135 = math.exp %134 : vector<8x128xf32>
    %cst_47 = arith.constant 1.000000e+00 : f32
    %136 = vector.broadcast %cst_47 : f32 to vector<8x128xf32>
    %137 = arith.addf %136, %135 : vector<8x128xf32>
    %138 = arith.divf %136, %137 : vector<8x128xf32>
    %139 = vector.extract_strided_slice %127 {offsets = [0, 128], sizes = [8, 128], strides = [1, 1]} : vector<8x384xf32> to vector<8x128xf32>
    %140 = vector.extract_strided_slice %130 {offsets = [0, 128], sizes = [8, 128], strides = [1, 1]} : vector<8x384xf32> to vector<8x128xf32>
    %141 = arith.addf %139, %140 : vector<8x128xf32>
    %142 = arith.negf %141 : vector<8x128xf32>
    %143 = math.exp %142 : vector<8x128xf32>
    %cst_48 = arith.constant 1.000000e+00 : f32
    %144 = vector.broadcast %cst_48 : f32 to vector<8x128xf32>
    %145 = arith.addf %144, %143 : vector<8x128xf32>
    %146 = arith.divf %144, %145 : vector<8x128xf32>
    %147 = vector.extract_strided_slice %127 {offsets = [0, 256], sizes = [8, 128], strides = [1, 1]} : vector<8x384xf32> to vector<8x128xf32>
    %148 = vector.extract_strided_slice %130 {offsets = [0, 256], sizes = [8, 128], strides = [1, 1]} : vector<8x384xf32> to vector<8x128xf32>
    %149 = arith.mulf %138, %148 : vector<8x128xf32>
    %150 = arith.addf %147, %149 : vector<8x128xf32>
    %151 = math.tanh %150 : vector<8x128xf32>
    %cst_49 = arith.constant 1.000000e+00 : f32
    %152 = vector.broadcast %cst_49 : f32 to vector<8x128xf32>
    %153 = arith.subf %152, %146 : vector<8x128xf32>
    %154 = arith.mulf %153, %151 : vector<8x128xf32>
    %155 = arith.mulf %146, %120 : vector<8x128xf32>
    %156 = arith.addf %154, %155 : vector<8x128xf32>
    %157 = arith.index_cast %c3_i32 : i32 to index
    %c0_50 = arith.constant 0 : index
    %c0_51 = arith.constant 0 : index
    %158 = vector.load %arg11[%157, %c0_50, %c0_51] : memref<8x8x128xf32, #tpu.memory_space<vmem>>, vector<1x8x128xf32>
    %159 = vector.shape_cast %158 : vector<1x8x128xf32> to vector<8x128xf32>
    %160 = vector.shape_cast %156 : vector<8x128xf32> to vector<1x8x128xf32>
    tpu.vector_store %arg11[%157, %c0_50, %c0_51], %160 {strides = array<i32>} : memref<8x8x128xf32, #tpu.memory_space<vmem>>, vector<1x8x128xf32>,
    %c4_i32 = arith.constant 4 : i32
    %161 = arith.index_cast %c4_i32 : i32 to index
    %c0_52 = arith.constant 0 : index
    %c0_53 = arith.constant 0 : index
    %162 = vector.load %arg10[%161, %c0_52, %c0_53] : memref<8x8x384xf32, #tpu.memory_space<vmem>>, vector<1x8x384xf32>
    %163 = vector.shape_cast %162 : vector<1x8x384xf32> to vector<8x384xf32>
    %cst_54 = arith.constant dense<0.000000e+00> : vector<8x384xf32>
    %164 = tpu.matmul %156, %12, %cst_54 {dimension_numbers = #tpu.dot_dimension_numbers<[1], [0], [0], [1], [0, 0, 1, 1], [], []>} : vector<8x128xf32>, vector<128x384xf32>, vector<8x384xf32> -> vector<8x384xf32>
    %165 = vector.broadcast %14 : vector<1x384xf32> to vector<8x384xf32>
    %166 = arith.addf %164, %165 : vector<8x384xf32>
    %167 = vector.extract_strided_slice %163 {offsets = [0, 0], sizes = [8, 128], strides = [1, 1]} : vector<8x384xf32> to vector<8x128xf32>
    %168 = vector.extract_strided_slice %166 {offsets = [0, 0], sizes = [8, 128], strides = [1, 1]} : vector<8x384xf32> to vector<8x128xf32>
    %169 = arith.addf %167, %168 : vector<8x128xf32>
    %170 = arith.negf %169 : vector<8x128xf32>
    %171 = math.exp %170 : vector<8x128xf32>
    %cst_55 = arith.constant 1.000000e+00 : f32
    %172 = vector.broadcast %cst_55 : f32 to vector<8x128xf32>
    %173 = arith.addf %172, %171 : vector<8x128xf32>
    %174 = arith.divf %172, %173 : vector<8x128xf32>
    %175 = vector.extract_strided_slice %163 {offsets = [0, 128], sizes = [8, 128], strides = [1, 1]} : vector<8x384xf32> to vector<8x128xf32>
    %176 = vector.extract_strided_slice %166 {offsets = [0, 128], sizes = [8, 128], strides = [1, 1]} : vector<8x384xf32> to vector<8x128xf32>
    %177 = arith.addf %175, %176 : vector<8x128xf32>
    %178 = arith.negf %177 : vector<8x128xf32>
    %179 = math.exp %178 : vector<8x128xf32>
    %cst_56 = arith.constant 1.000000e+00 : f32
    %180 = vector.broadcast %cst_56 : f32 to vector<8x128xf32>
    %181 = arith.addf %180, %179 : vector<8x128xf32>
    %182 = arith.divf %180, %181 : vector<8x128xf32>
    %183 = vector.extract_strided_slice %163 {offsets = [0, 256], sizes = [8, 128], strides = [1, 1]} : vector<8x384xf32> to vector<8x128xf32>
    %184 = vector.extract_strided_slice %166 {offsets = [0, 256], sizes = [8, 128], strides = [1, 1]} : vector<8x384xf32> to vector<8x128xf32>
    %185 = arith.mulf %174, %184 : vector<8x128xf32>
    %186 = arith.addf %183, %185 : vector<8x128xf32>
    %187 = math.tanh %186 : vector<8x128xf32>
    %cst_57 = arith.constant 1.000000e+00 : f32
    %188 = vector.broadcast %cst_57 : f32 to vector<8x128xf32>
    %189 = arith.subf %188, %182 : vector<8x128xf32>
    %190 = arith.mulf %189, %187 : vector<8x128xf32>
    %191 = arith.mulf %182, %156 : vector<8x128xf32>
    %192 = arith.addf %190, %191 : vector<8x128xf32>
    %193 = arith.index_cast %c4_i32 : i32 to index
    %c0_58 = arith.constant 0 : index
    %c0_59 = arith.constant 0 : index
    %194 = vector.load %arg11[%193, %c0_58, %c0_59] : memref<8x8x128xf32, #tpu.memory_space<vmem>>, vector<1x8x128xf32>
    %195 = vector.shape_cast %194 : vector<1x8x128xf32> to vector<8x128xf32>
    %196 = vector.shape_cast %192 : vector<8x128xf32> to vector<1x8x128xf32>
    tpu.vector_store %arg11[%193, %c0_58, %c0_59], %196 {strides = array<i32>} : memref<8x8x128xf32, #tpu.memory_space<vmem>>, vector<1x8x128xf32>,
    %c5_i32 = arith.constant 5 : i32
    %197 = arith.index_cast %c5_i32 : i32 to index
    %c0_60 = arith.constant 0 : index
    %c0_61 = arith.constant 0 : index
    %198 = vector.load %arg10[%197, %c0_60, %c0_61] : memref<8x8x384xf32, #tpu.memory_space<vmem>>, vector<1x8x384xf32>
    %199 = vector.shape_cast %198 : vector<1x8x384xf32> to vector<8x384xf32>
    %cst_62 = arith.constant dense<0.000000e+00> : vector<8x384xf32>
    %200 = tpu.matmul %192, %12, %cst_62 {dimension_numbers = #tpu.dot_dimension_numbers<[1], [0], [0], [1], [0, 0, 1, 1], [], []>} : vector<8x128xf32>, vector<128x384xf32>, vector<8x384xf32> -> vector<8x384xf32>
    %201 = vector.broadcast %14 : vector<1x384xf32> to vector<8x384xf32>
    %202 = arith.addf %200, %201 : vector<8x384xf32>
    %203 = vector.extract_strided_slice %199 {offsets = [0, 0], sizes = [8, 128], strides = [1, 1]} : vector<8x384xf32> to vector<8x128xf32>
    %204 = vector.extract_strided_slice %202 {offsets = [0, 0], sizes = [8, 128], strides = [1, 1]} : vector<8x384xf32> to vector<8x128xf32>
    %205 = arith.addf %203, %204 : vector<8x128xf32>
    %206 = arith.negf %205 : vector<8x128xf32>
    %207 = math.exp %206 : vector<8x128xf32>
    %cst_63 = arith.constant 1.000000e+00 : f32
    %208 = vector.broadcast %cst_63 : f32 to vector<8x128xf32>
    %209 = arith.addf %208, %207 : vector<8x128xf32>
    %210 = arith.divf %208, %209 : vector<8x128xf32>
    %211 = vector.extract_strided_slice %199 {offsets = [0, 128], sizes = [8, 128], strides = [1, 1]} : vector<8x384xf32> to vector<8x128xf32>
    %212 = vector.extract_strided_slice %202 {offsets = [0, 128], sizes = [8, 128], strides = [1, 1]} : vector<8x384xf32> to vector<8x128xf32>
    %213 = arith.addf %211, %212 : vector<8x128xf32>
    %214 = arith.negf %213 : vector<8x128xf32>
    %215 = math.exp %214 : vector<8x128xf32>
    %cst_64 = arith.constant 1.000000e+00 : f32
    %216 = vector.broadcast %cst_64 : f32 to vector<8x128xf32>
    %217 = arith.addf %216, %215 : vector<8x128xf32>
    %218 = arith.divf %216, %217 : vector<8x128xf32>
    %219 = vector.extract_strided_slice %199 {offsets = [0, 256], sizes = [8, 128], strides = [1, 1]} : vector<8x384xf32> to vector<8x128xf32>
    %220 = vector.extract_strided_slice %202 {offsets = [0, 256], sizes = [8, 128], strides = [1, 1]} : vector<8x384xf32> to vector<8x128xf32>
    %221 = arith.mulf %210, %220 : vector<8x128xf32>
    %222 = arith.addf %219, %221 : vector<8x128xf32>
    %223 = math.tanh %222 : vector<8x128xf32>
    %cst_65 = arith.constant 1.000000e+00 : f32
    %224 = vector.broadcast %cst_65 : f32 to vector<8x128xf32>
    %225 = arith.subf %224, %218 : vector<8x128xf32>
    %226 = arith.mulf %225, %223 : vector<8x128xf32>
    %227 = arith.mulf %218, %192 : vector<8x128xf32>
    %228 = arith.addf %226, %227 : vector<8x128xf32>
    %229 = arith.index_cast %c5_i32 : i32 to index
    %c0_66 = arith.constant 0 : index
    %c0_67 = arith.constant 0 : index
    %230 = vector.load %arg11[%229, %c0_66, %c0_67] : memref<8x8x128xf32, #tpu.memory_space<vmem>>, vector<1x8x128xf32>
    %231 = vector.shape_cast %230 : vector<1x8x128xf32> to vector<8x128xf32>
    %232 = vector.shape_cast %228 : vector<8x128xf32> to vector<1x8x128xf32>
    tpu.vector_store %arg11[%229, %c0_66, %c0_67], %232 {strides = array<i32>} : memref<8x8x128xf32, #tpu.memory_space<vmem>>, vector<1x8x128xf32>,
    %c6_i32 = arith.constant 6 : i32
    %233 = arith.index_cast %c6_i32 : i32 to index
    %c0_68 = arith.constant 0 : index
    %c0_69 = arith.constant 0 : index
    %234 = vector.load %arg10[%233, %c0_68, %c0_69] : memref<8x8x384xf32, #tpu.memory_space<vmem>>, vector<1x8x384xf32>
    %235 = vector.shape_cast %234 : vector<1x8x384xf32> to vector<8x384xf32>
    %cst_70 = arith.constant dense<0.000000e+00> : vector<8x384xf32>
    %236 = tpu.matmul %228, %12, %cst_70 {dimension_numbers = #tpu.dot_dimension_numbers<[1], [0], [0], [1], [0, 0, 1, 1], [], []>} : vector<8x128xf32>, vector<128x384xf32>, vector<8x384xf32> -> vector<8x384xf32>
    %237 = vector.broadcast %14 : vector<1x384xf32> to vector<8x384xf32>
    %238 = arith.addf %236, %237 : vector<8x384xf32>
    %239 = vector.extract_strided_slice %235 {offsets = [0, 0], sizes = [8, 128], strides = [1, 1]} : vector<8x384xf32> to vector<8x128xf32>
    %240 = vector.extract_strided_slice %238 {offsets = [0, 0], sizes = [8, 128], strides = [1, 1]} : vector<8x384xf32> to vector<8x128xf32>
    %241 = arith.addf %239, %240 : vector<8x128xf32>
    %242 = arith.negf %241 : vector<8x128xf32>
    %243 = math.exp %242 : vector<8x128xf32>
    %cst_71 = arith.constant 1.000000e+00 : f32
    %244 = vector.broadcast %cst_71 : f32 to vector<8x128xf32>
    %245 = arith.addf %244, %243 : vector<8x128xf32>
    %246 = arith.divf %244, %245 : vector<8x128xf32>
    %247 = vector.extract_strided_slice %235 {offsets = [0, 128], sizes = [8, 128], strides = [1, 1]} : vector<8x384xf32> to vector<8x128xf32>
    %248 = vector.extract_strided_slice %238 {offsets = [0, 128], sizes = [8, 128], strides = [1, 1]} : vector<8x384xf32> to vector<8x128xf32>
    %249 = arith.addf %247, %248 : vector<8x128xf32>
    %250 = arith.negf %249 : vector<8x128xf32>
    %251 = math.exp %250 : vector<8x128xf32>
    %cst_72 = arith.constant 1.000000e+00 : f32
    %252 = vector.broadcast %cst_72 : f32 to vector<8x128xf32>
    %253 = arith.addf %252, %251 : vector<8x128xf32>
    %254 = arith.divf %252, %253 : vector<8x128xf32>
    %255 = vector.extract_strided_slice %235 {offsets = [0, 256], sizes = [8, 128], strides = [1, 1]} : vector<8x384xf32> to vector<8x128xf32>
    %256 = vector.extract_strided_slice %238 {offsets = [0, 256], sizes = [8, 128], strides = [1, 1]} : vector<8x384xf32> to vector<8x128xf32>
    %257 = arith.mulf %246, %256 : vector<8x128xf32>
    %258 = arith.addf %255, %257 : vector<8x128xf32>
    %259 = math.tanh %258 : vector<8x128xf32>
    %cst_73 = arith.constant 1.000000e+00 : f32
    %260 = vector.broadcast %cst_73 : f32 to vector<8x128xf32>
    %261 = arith.subf %260, %254 : vector<8x128xf32>
    %262 = arith.mulf %261, %259 : vector<8x128xf32>
    %263 = arith.mulf %254, %228 : vector<8x128xf32>
    %264 = arith.addf %262, %263 : vector<8x128xf32>
    %265 = arith.index_cast %c6_i32 : i32 to index
    %c0_74 = arith.constant 0 : index
    %c0_75 = arith.constant 0 : index
    %266 = vector.load %arg11[%265, %c0_74, %c0_75] : memref<8x8x128xf32, #tpu.memory_space<vmem>>, vector<1x8x128xf32>
    %267 = vector.shape_cast %266 : vector<1x8x128xf32> to vector<8x128xf32>
    %268 = vector.shape_cast %264 : vector<8x128xf32> to vector<1x8x128xf32>
    tpu.vector_store %arg11[%265, %c0_74, %c0_75], %268 {strides = array<i32>} : memref<8x8x128xf32, #tpu.memory_space<vmem>>, vector<1x8x128xf32>,
    %c7_i32 = arith.constant 7 : i32
    %269 = arith.index_cast %c7_i32 : i32 to index
    %c0_76 = arith.constant 0 : index
    %c0_77 = arith.constant 0 : index
    %270 = vector.load %arg10[%269, %c0_76, %c0_77] : memref<8x8x384xf32, #tpu.memory_space<vmem>>, vector<1x8x384xf32>
    %271 = vector.shape_cast %270 : vector<1x8x384xf32> to vector<8x384xf32>
    %cst_78 = arith.constant dense<0.000000e+00> : vector<8x384xf32>
    %272 = tpu.matmul %264, %12, %cst_78 {dimension_numbers = #tpu.dot_dimension_numbers<[1], [0], [0], [1], [0, 0, 1, 1], [], []>} : vector<8x128xf32>, vector<128x384xf32>, vector<8x384xf32> -> vector<8x384xf32>
    %273 = vector.broadcast %14 : vector<1x384xf32> to vector<8x384xf32>
    %274 = arith.addf %272, %273 : vector<8x384xf32>
    %275 = vector.extract_strided_slice %271 {offsets = [0, 0], sizes = [8, 128], strides = [1, 1]} : vector<8x384xf32> to vector<8x128xf32>
    %276 = vector.extract_strided_slice %274 {offsets = [0, 0], sizes = [8, 128], strides = [1, 1]} : vector<8x384xf32> to vector<8x128xf32>
    %277 = arith.addf %275, %276 : vector<8x128xf32>
    %278 = arith.negf %277 : vector<8x128xf32>
    %279 = math.exp %278 : vector<8x128xf32>
    %cst_79 = arith.constant 1.000000e+00 : f32
    %280 = vector.broadcast %cst_79 : f32 to vector<8x128xf32>
    %281 = arith.addf %280, %279 : vector<8x128xf32>
    %282 = arith.divf %280, %281 : vector<8x128xf32>
    %283 = vector.extract_strided_slice %271 {offsets = [0, 128], sizes = [8, 128], strides = [1, 1]} : vector<8x384xf32> to vector<8x128xf32>
    %284 = vector.extract_strided_slice %274 {offsets = [0, 128], sizes = [8, 128], strides = [1, 1]} : vector<8x384xf32> to vector<8x128xf32>
    %285 = arith.addf %283, %284 : vector<8x128xf32>
    %286 = arith.negf %285 : vector<8x128xf32>
    %287 = math.exp %286 : vector<8x128xf32>
    %cst_80 = arith.constant 1.000000e+00 : f32
    %288 = vector.broadcast %cst_80 : f32 to vector<8x128xf32>
    %289 = arith.addf %288, %287 : vector<8x128xf32>
    %290 = arith.divf %288, %289 : vector<8x128xf32>
    %291 = vector.extract_strided_slice %271 {offsets = [0, 256], sizes = [8, 128], strides = [1, 1]} : vector<8x384xf32> to vector<8x128xf32>
    %292 = vector.extract_strided_slice %274 {offsets = [0, 256], sizes = [8, 128], strides = [1, 1]} : vector<8x384xf32> to vector<8x128xf32>
    %293 = arith.mulf %282, %292 : vector<8x128xf32>
    %294 = arith.addf %291, %293 : vector<8x128xf32>
    %295 = math.tanh %294 : vector<8x128xf32>
    %cst_81 = arith.constant 1.000000e+00 : f32
    %296 = vector.broadcast %cst_81 : f32 to vector<8x128xf32>
    %297 = arith.subf %296, %290 : vector<8x128xf32>
    %298 = arith.mulf %297, %295 : vector<8x128xf32>
    %299 = arith.mulf %290, %264 : vector<8x128xf32>
    %300 = arith.addf %298, %299 : vector<8x128xf32>
    %301 = arith.index_cast %c7_i32 : i32 to index
    %c0_82 = arith.constant 0 : index
    %c0_83 = arith.constant 0 : index
    %302 = vector.load %arg11[%301, %c0_82, %c0_83] : memref<8x8x128xf32, #tpu.memory_space<vmem>>, vector<1x8x128xf32>
    %303 = vector.shape_cast %302 : vector<1x8x128xf32> to vector<8x128xf32>
    %304 = vector.shape_cast %300 : vector<8x128xf32> to vector<1x8x128xf32>
    tpu.vector_store %arg11[%301, %c0_82, %c0_83], %304 {strides = array<i32>} : memref<8x8x128xf32, #tpu.memory_space<vmem>>, vector<1x8x128xf32>,
    %c8_i32 = arith.constant 8 : i32
    %c0_84 = arith.constant 0 : index
    %c0_85 = arith.constant 0 : index
    %c0_86 = arith.constant 0 : index
    %305 = vector.load %arg9[%c0_84, %c0_85, %c0_86] : memref<2x8x128xf32, #tpu.memory_space<vmem>>, vector<1x8x128xf32>
    %306 = vector.shape_cast %305 : vector<1x8x128xf32> to vector<8x128xf32>
    %307 = vector.shape_cast %300 : vector<8x128xf32> to vector<1x8x128xf32>
    tpu.vector_store %arg9[%c0_84, %c0_85, %c0_86], %307 {strides = array<i32>} : memref<2x8x128xf32, #tpu.memory_space<vmem>>, vector<1x8x128xf32>,
    %c0_87 = arith.constant 0 : index
    %c0_88 = arith.constant 0 : index
    %c0_89 = arith.constant 0 : index
    %308 = vector.load %arg11[%c0_87, %c0_88, %c0_89] : memref<8x8x128xf32, #tpu.memory_space<vmem>>, vector<8x8x128xf32>
    %309 = vector.shape_cast %308 : vector<8x8x128xf32> to vector<64x128xf32>
    %c1 = arith.constant 1 : index
    %c0_90 = arith.constant 0 : index
    %c0_91 = arith.constant 0 : index
    %310 = vector.load %arg2[%c1, %c0_90, %c0_91] : memref<2x128x384xf32, #tpu.memory_space<vmem>>, vector<1x128x384xf32>
    %311 = vector.shape_cast %310 : vector<1x128x384xf32> to vector<128x384xf32>
    %cst_92 = arith.constant dense<0.000000e+00> : vector<64x384xf32>
    %312 = tpu.matmul %309, %311, %cst_92 {dimension_numbers = #tpu.dot_dimension_numbers<[1], [0], [0], [1], [0, 0, 1, 1], [], []>} : vector<64x128xf32>, vector<128x384xf32>, vector<64x384xf32> -> vector<64x384xf32>
    %c1_93 = arith.constant 1 : index
    %c0_94 = arith.constant 0 : index
    %c0_95 = arith.constant 0 : index
    %313 = vector.load %arg4[%c1_93, %c0_94, %c0_95] : memref<2x1x384xf32, #tpu.memory_space<vmem>>, vector<1x1x384xf32>
    %314 = vector.shape_cast %313 : vector<1x1x384xf32> to vector<1x384xf32>
    %315 = vector.broadcast %314 : vector<1x384xf32> to vector<64x384xf32>
    %316 = arith.addf %312, %315 : vector<64x384xf32>
    %317 = vector.shape_cast %316 : vector<64x384xf32> to vector<8x8x384xf32>
    %c0_96 = arith.constant 0 : index
    %c0_97 = arith.constant 0 : index
    %c0_98 = arith.constant 0 : index
    %318 = vector.load %arg10[%c0_96, %c0_97, %c0_98] : memref<8x8x384xf32, #tpu.memory_space<vmem>>, vector<8x8x384xf32>
    tpu.vector_store %arg10[%c0_96, %c0_97, %c0_98], %317 {strides = array<i32>} : memref<8x8x384xf32, #tpu.memory_space<vmem>>, vector<8x8x384xf32>,
    %c1_99 = arith.constant 1 : index
    %c0_100 = arith.constant 0 : index
    %c0_101 = arith.constant 0 : index
    %319 = vector.load %arg3[%c1_99, %c0_100, %c0_101] : memref<2x128x384xf32, #tpu.memory_space<vmem>>, vector<1x128x384xf32>
    %320 = vector.shape_cast %319 : vector<1x128x384xf32> to vector<128x384xf32>
    %c1_102 = arith.constant 1 : index
    %c0_103 = arith.constant 0 : index
    %c0_104 = arith.constant 0 : index
    %321 = vector.load %arg5[%c1_102, %c0_103, %c0_104] : memref<2x1x384xf32, #tpu.memory_space<vmem>>, vector<1x1x384xf32>
    %322 = vector.shape_cast %321 : vector<1x1x384xf32> to vector<1x384xf32>
    %c1_105 = arith.constant 1 : index
    %c0_106 = arith.constant 0 : index
    %c0_107 = arith.constant 0 : index
    %323 = vector.load %arg1[%c1_105, %c0_106, %c0_107] : memref<2x8x128xf32, #tpu.memory_space<vmem>>, vector<1x8x128xf32>
    %324 = vector.shape_cast %323 : vector<1x8x128xf32> to vector<8x128xf32>
    %c0_i32_108 = arith.constant 0 : i32
    %325 = arith.index_cast %c0_i32_108 : i32 to index
    %c0_109 = arith.constant 0 : index
    %c0_110 = arith.constant 0 : index
    %326 = vector.load %arg10[%325, %c0_109, %c0_110] : memref<8x8x384xf32, #tpu.memory_space<vmem>>, vector<1x8x384xf32>
    %327 = vector.shape_cast %326 : vector<1x8x384xf32> to vector<8x384xf32>
    %cst_111 = arith.constant dense<0.000000e+00> : vector<8x384xf32>
    %328 = tpu.matmul %324, %320, %cst_111 {dimension_numbers = #tpu.dot_dimension_numbers<[1], [0], [0], [1], [0, 0, 1, 1], [], []>} : vector<8x128xf32>, vector<128x384xf32>, vector<8x384xf32> -> vector<8x384xf32>
    %329 = vector.broadcast %322 : vector<1x384xf32> to vector<8x384xf32>
    %330 = arith.addf %328, %329 : vector<8x384xf32>
    %331 = vector.extract_strided_slice %327 {offsets = [0, 0], sizes = [8, 128], strides = [1, 1]} : vector<8x384xf32> to vector<8x128xf32>
    %332 = vector.extract_strided_slice %330 {offsets = [0, 0], sizes = [8, 128], strides = [1, 1]} : vector<8x384xf32> to vector<8x128xf32>
    %333 = arith.addf %331, %332 : vector<8x128xf32>
    %334 = arith.negf %333 : vector<8x128xf32>
    %335 = math.exp %334 : vector<8x128xf32>
    %cst_112 = arith.constant 1.000000e+00 : f32
    %336 = vector.broadcast %cst_112 : f32 to vector<8x128xf32>
    %337 = arith.addf %336, %335 : vector<8x128xf32>
    %338 = arith.divf %336, %337 : vector<8x128xf32>
    %339 = vector.extract_strided_slice %327 {offsets = [0, 128], sizes = [8, 128], strides = [1, 1]} : vector<8x384xf32> to vector<8x128xf32>
    %340 = vector.extract_strided_slice %330 {offsets = [0, 128], sizes = [8, 128], strides = [1, 1]} : vector<8x384xf32> to vector<8x128xf32>
    %341 = arith.addf %339, %340 : vector<8x128xf32>
    %342 = arith.negf %341 : vector<8x128xf32>
    %343 = math.exp %342 : vector<8x128xf32>
    %cst_113 = arith.constant 1.000000e+00 : f32
    %344 = vector.broadcast %cst_113 : f32 to vector<8x128xf32>
    %345 = arith.addf %344, %343 : vector<8x128xf32>
    %346 = arith.divf %344, %345 : vector<8x128xf32>
    %347 = vector.extract_strided_slice %327 {offsets = [0, 256], sizes = [8, 128], strides = [1, 1]} : vector<8x384xf32> to vector<8x128xf32>
    %348 = vector.extract_strided_slice %330 {offsets = [0, 256], sizes = [8, 128], strides = [1, 1]} : vector<8x384xf32> to vector<8x128xf32>
    %349 = arith.mulf %338, %348 : vector<8x128xf32>
    %350 = arith.addf %347, %349 : vector<8x128xf32>
    %351 = math.tanh %350 : vector<8x128xf32>
    %cst_114 = arith.constant 1.000000e+00 : f32
    %352 = vector.broadcast %cst_114 : f32 to vector<8x128xf32>
    %353 = arith.subf %352, %346 : vector<8x128xf32>
    %354 = arith.mulf %353, %351 : vector<8x128xf32>
    %355 = arith.mulf %346, %324 : vector<8x128xf32>
    %356 = arith.addf %354, %355 : vector<8x128xf32>
    %357 = arith.index_cast %c0_i32_108 : i32 to index
    %c0_115 = arith.constant 0 : index
    %c0_116 = arith.constant 0 : index
    %358 = vector.load %arg12[%357, %c0_115, %c0_116] : memref<8x8x128xf32, #tpu.memory_space<vmem>>, vector<1x8x128xf32>
    %359 = vector.shape_cast %358 : vector<1x8x128xf32> to vector<8x128xf32>
    %360 = vector.shape_cast %356 : vector<8x128xf32> to vector<1x8x128xf32>
    tpu.vector_store %arg12[%357, %c0_115, %c0_116], %360 {strides = array<i32>} : memref<8x8x128xf32, #tpu.memory_space<vmem>>, vector<1x8x128xf32>,
    %c1_i32_117 = arith.constant 1 : i32
    %361 = arith.index_cast %c1_i32_117 : i32 to index
    %c0_118 = arith.constant 0 : index
    %c0_119 = arith.constant 0 : index
    %362 = vector.load %arg10[%361, %c0_118, %c0_119] : memref<8x8x384xf32, #tpu.memory_space<vmem>>, vector<1x8x384xf32>
    %363 = vector.shape_cast %362 : vector<1x8x384xf32> to vector<8x384xf32>
    %cst_120 = arith.constant dense<0.000000e+00> : vector<8x384xf32>
    %364 = tpu.matmul %356, %320, %cst_120 {dimension_numbers = #tpu.dot_dimension_numbers<[1], [0], [0], [1], [0, 0, 1, 1], [], []>} : vector<8x128xf32>, vector<128x384xf32>, vector<8x384xf32> -> vector<8x384xf32>
    %365 = vector.broadcast %322 : vector<1x384xf32> to vector<8x384xf32>
    %366 = arith.addf %364, %365 : vector<8x384xf32>
    %367 = vector.extract_strided_slice %363 {offsets = [0, 0], sizes = [8, 128], strides = [1, 1]} : vector<8x384xf32> to vector<8x128xf32>
    %368 = vector.extract_strided_slice %366 {offsets = [0, 0], sizes = [8, 128], strides = [1, 1]} : vector<8x384xf32> to vector<8x128xf32>
    %369 = arith.addf %367, %368 : vector<8x128xf32>
    %370 = arith.negf %369 : vector<8x128xf32>
    %371 = math.exp %370 : vector<8x128xf32>
    %cst_121 = arith.constant 1.000000e+00 : f32
    %372 = vector.broadcast %cst_121 : f32 to vector<8x128xf32>
    %373 = arith.addf %372, %371 : vector<8x128xf32>
    %374 = arith.divf %372, %373 : vector<8x128xf32>
    %375 = vector.extract_strided_slice %363 {offsets = [0, 128], sizes = [8, 128], strides = [1, 1]} : vector<8x384xf32> to vector<8x128xf32>
    %376 = vector.extract_strided_slice %366 {offsets = [0, 128], sizes = [8, 128], strides = [1, 1]} : vector<8x384xf32> to vector<8x128xf32>
    %377 = arith.addf %375, %376 : vector<8x128xf32>
    %378 = arith.negf %377 : vector<8x128xf32>
    %379 = math.exp %378 : vector<8x128xf32>
    %cst_122 = arith.constant 1.000000e+00 : f32
    %380 = vector.broadcast %cst_122 : f32 to vector<8x128xf32>
    %381 = arith.addf %380, %379 : vector<8x128xf32>
    %382 = arith.divf %380, %381 : vector<8x128xf32>
    %383 = vector.extract_strided_slice %363 {offsets = [0, 256], sizes = [8, 128], strides = [1, 1]} : vector<8x384xf32> to vector<8x128xf32>
    %384 = vector.extract_strided_slice %366 {offsets = [0, 256], sizes = [8, 128], strides = [1, 1]} : vector<8x384xf32> to vector<8x128xf32>
    %385 = arith.mulf %374, %384 : vector<8x128xf32>
    %386 = arith.addf %383, %385 : vector<8x128xf32>
    %387 = math.tanh %386 : vector<8x128xf32>
    %cst_123 = arith.constant 1.000000e+00 : f32
    %388 = vector.broadcast %cst_123 : f32 to vector<8x128xf32>
    %389 = arith.subf %388, %382 : vector<8x128xf32>
    %390 = arith.mulf %389, %387 : vector<8x128xf32>
    %391 = arith.mulf %382, %356 : vector<8x128xf32>
    %392 = arith.addf %390, %391 : vector<8x128xf32>
    %393 = arith.index_cast %c1_i32_117 : i32 to index
    %c0_124 = arith.constant 0 : index
    %c0_125 = arith.constant 0 : index
    %394 = vector.load %arg12[%393, %c0_124, %c0_125] : memref<8x8x128xf32, #tpu.memory_space<vmem>>, vector<1x8x128xf32>
    %395 = vector.shape_cast %394 : vector<1x8x128xf32> to vector<8x128xf32>
    %396 = vector.shape_cast %392 : vector<8x128xf32> to vector<1x8x128xf32>
    tpu.vector_store %arg12[%393, %c0_124, %c0_125], %396 {strides = array<i32>} : memref<8x8x128xf32, #tpu.memory_space<vmem>>, vector<1x8x128xf32>,
    %c2_i32_126 = arith.constant 2 : i32
    %397 = arith.index_cast %c2_i32_126 : i32 to index
    %c0_127 = arith.constant 0 : index
    %c0_128 = arith.constant 0 : index
    %398 = vector.load %arg10[%397, %c0_127, %c0_128] : memref<8x8x384xf32, #tpu.memory_space<vmem>>, vector<1x8x384xf32>
    %399 = vector.shape_cast %398 : vector<1x8x384xf32> to vector<8x384xf32>
    %cst_129 = arith.constant dense<0.000000e+00> : vector<8x384xf32>
    %400 = tpu.matmul %392, %320, %cst_129 {dimension_numbers = #tpu.dot_dimension_numbers<[1], [0], [0], [1], [0, 0, 1, 1], [], []>} : vector<8x128xf32>, vector<128x384xf32>, vector<8x384xf32> -> vector<8x384xf32>
    %401 = vector.broadcast %322 : vector<1x384xf32> to vector<8x384xf32>
    %402 = arith.addf %400, %401 : vector<8x384xf32>
    %403 = vector.extract_strided_slice %399 {offsets = [0, 0], sizes = [8, 128], strides = [1, 1]} : vector<8x384xf32> to vector<8x128xf32>
    %404 = vector.extract_strided_slice %402 {offsets = [0, 0], sizes = [8, 128], strides = [1, 1]} : vector<8x384xf32> to vector<8x128xf32>
    %405 = arith.addf %403, %404 : vector<8x128xf32>
    %406 = arith.negf %405 : vector<8x128xf32>
    %407 = math.exp %406 : vector<8x128xf32>
    %cst_130 = arith.constant 1.000000e+00 : f32
    %408 = vector.broadcast %cst_130 : f32 to vector<8x128xf32>
    %409 = arith.addf %408, %407 : vector<8x128xf32>
    %410 = arith.divf %408, %409 : vector<8x128xf32>
    %411 = vector.extract_strided_slice %399 {offsets = [0, 128], sizes = [8, 128], strides = [1, 1]} : vector<8x384xf32> to vector<8x128xf32>
    %412 = vector.extract_strided_slice %402 {offsets = [0, 128], sizes = [8, 128], strides = [1, 1]} : vector<8x384xf32> to vector<8x128xf32>
    %413 = arith.addf %411, %412 : vector<8x128xf32>
    %414 = arith.negf %413 : vector<8x128xf32>
    %415 = math.exp %414 : vector<8x128xf32>
    %cst_131 = arith.constant 1.000000e+00 : f32
    %416 = vector.broadcast %cst_131 : f32 to vector<8x128xf32>
    %417 = arith.addf %416, %415 : vector<8x128xf32>
    %418 = arith.divf %416, %417 : vector<8x128xf32>
    %419 = vector.extract_strided_slice %399 {offsets = [0, 256], sizes = [8, 128], strides = [1, 1]} : vector<8x384xf32> to vector<8x128xf32>
    %420 = vector.extract_strided_slice %402 {offsets = [0, 256], sizes = [8, 128], strides = [1, 1]} : vector<8x384xf32> to vector<8x128xf32>
    %421 = arith.mulf %410, %420 : vector<8x128xf32>
    %422 = arith.addf %419, %421 : vector<8x128xf32>
    %423 = math.tanh %422 : vector<8x128xf32>
    %cst_132 = arith.constant 1.000000e+00 : f32
    %424 = vector.broadcast %cst_132 : f32 to vector<8x128xf32>
    %425 = arith.subf %424, %418 : vector<8x128xf32>
    %426 = arith.mulf %425, %423 : vector<8x128xf32>
    %427 = arith.mulf %418, %392 : vector<8x128xf32>
    %428 = arith.addf %426, %427 : vector<8x128xf32>
    %429 = arith.index_cast %c2_i32_126 : i32 to index
    %c0_133 = arith.constant 0 : index
    %c0_134 = arith.constant 0 : index
    %430 = vector.load %arg12[%429, %c0_133, %c0_134] : memref<8x8x128xf32, #tpu.memory_space<vmem>>, vector<1x8x128xf32>
    %431 = vector.shape_cast %430 : vector<1x8x128xf32> to vector<8x128xf32>
    %432 = vector.shape_cast %428 : vector<8x128xf32> to vector<1x8x128xf32>
    tpu.vector_store %arg12[%429, %c0_133, %c0_134], %432 {strides = array<i32>} : memref<8x8x128xf32, #tpu.memory_space<vmem>>, vector<1x8x128xf32>,
    %c3_i32_135 = arith.constant 3 : i32
    %433 = arith.index_cast %c3_i32_135 : i32 to index
    %c0_136 = arith.constant 0 : index
    %c0_137 = arith.constant 0 : index
    %434 = vector.load %arg10[%433, %c0_136, %c0_137] : memref<8x8x384xf32, #tpu.memory_space<vmem>>, vector<1x8x384xf32>
    %435 = vector.shape_cast %434 : vector<1x8x384xf32> to vector<8x384xf32>
    %cst_138 = arith.constant dense<0.000000e+00> : vector<8x384xf32>
    %436 = tpu.matmul %428, %320, %cst_138 {dimension_numbers = #tpu.dot_dimension_numbers<[1], [0], [0], [1], [0, 0, 1, 1], [], []>} : vector<8x128xf32>, vector<128x384xf32>, vector<8x384xf32> -> vector<8x384xf32>
    %437 = vector.broadcast %322 : vector<1x384xf32> to vector<8x384xf32>
    %438 = arith.addf %436, %437 : vector<8x384xf32>
    %439 = vector.extract_strided_slice %435 {offsets = [0, 0], sizes = [8, 128], strides = [1, 1]} : vector<8x384xf32> to vector<8x128xf32>
    %440 = vector.extract_strided_slice %438 {offsets = [0, 0], sizes = [8, 128], strides = [1, 1]} : vector<8x384xf32> to vector<8x128xf32>
    %441 = arith.addf %439, %440 : vector<8x128xf32>
    %442 = arith.negf %441 : vector<8x128xf32>
    %443 = math.exp %442 : vector<8x128xf32>
    %cst_139 = arith.constant 1.000000e+00 : f32
    %444 = vector.broadcast %cst_139 : f32 to vector<8x128xf32>
    %445 = arith.addf %444, %443 : vector<8x128xf32>
    %446 = arith.divf %444, %445 : vector<8x128xf32>
    %447 = vector.extract_strided_slice %435 {offsets = [0, 128], sizes = [8, 128], strides = [1, 1]} : vector<8x384xf32> to vector<8x128xf32>
    %448 = vector.extract_strided_slice %438 {offsets = [0, 128], sizes = [8, 128], strides = [1, 1]} : vector<8x384xf32> to vector<8x128xf32>
    %449 = arith.addf %447, %448 : vector<8x128xf32>
    %450 = arith.negf %449 : vector<8x128xf32>
    %451 = math.exp %450 : vector<8x128xf32>
    %cst_140 = arith.constant 1.000000e+00 : f32
    %452 = vector.broadcast %cst_140 : f32 to vector<8x128xf32>
    %453 = arith.addf %452, %451 : vector<8x128xf32>
    %454 = arith.divf %452, %453 : vector<8x128xf32>
    %455 = vector.extract_strided_slice %435 {offsets = [0, 256], sizes = [8, 128], strides = [1, 1]} : vector<8x384xf32> to vector<8x128xf32>
    %456 = vector.extract_strided_slice %438 {offsets = [0, 256], sizes = [8, 128], strides = [1, 1]} : vector<8x384xf32> to vector<8x128xf32>
    %457 = arith.mulf %446, %456 : vector<8x128xf32>
    %458 = arith.addf %455, %457 : vector<8x128xf32>
    %459 = math.tanh %458 : vector<8x128xf32>
    %cst_141 = arith.constant 1.000000e+00 : f32
    %460 = vector.broadcast %cst_141 : f32 to vector<8x128xf32>
    %461 = arith.subf %460, %454 : vector<8x128xf32>
    %462 = arith.mulf %461, %459 : vector<8x128xf32>
    %463 = arith.mulf %454, %428 : vector<8x128xf32>
    %464 = arith.addf %462, %463 : vector<8x128xf32>
    %465 = arith.index_cast %c3_i32_135 : i32 to index
    %c0_142 = arith.constant 0 : index
    %c0_143 = arith.constant 0 : index
    %466 = vector.load %arg12[%465, %c0_142, %c0_143] : memref<8x8x128xf32, #tpu.memory_space<vmem>>, vector<1x8x128xf32>
    %467 = vector.shape_cast %466 : vector<1x8x128xf32> to vector<8x128xf32>
    %468 = vector.shape_cast %464 : vector<8x128xf32> to vector<1x8x128xf32>
    tpu.vector_store %arg12[%465, %c0_142, %c0_143], %468 {strides = array<i32>} : memref<8x8x128xf32, #tpu.memory_space<vmem>>, vector<1x8x128xf32>,
    %c4_i32_144 = arith.constant 4 : i32
    %469 = arith.index_cast %c4_i32_144 : i32 to index
    %c0_145 = arith.constant 0 : index
    %c0_146 = arith.constant 0 : index
    %470 = vector.load %arg10[%469, %c0_145, %c0_146] : memref<8x8x384xf32, #tpu.memory_space<vmem>>, vector<1x8x384xf32>
    %471 = vector.shape_cast %470 : vector<1x8x384xf32> to vector<8x384xf32>
    %cst_147 = arith.constant dense<0.000000e+00> : vector<8x384xf32>
    %472 = tpu.matmul %464, %320, %cst_147 {dimension_numbers = #tpu.dot_dimension_numbers<[1], [0], [0], [1], [0, 0, 1, 1], [], []>} : vector<8x128xf32>, vector<128x384xf32>, vector<8x384xf32> -> vector<8x384xf32>
    %473 = vector.broadcast %322 : vector<1x384xf32> to vector<8x384xf32>
    %474 = arith.addf %472, %473 : vector<8x384xf32>
    %475 = vector.extract_strided_slice %471 {offsets = [0, 0], sizes = [8, 128], strides = [1, 1]} : vector<8x384xf32> to vector<8x128xf32>
    %476 = vector.extract_strided_slice %474 {offsets = [0, 0], sizes = [8, 128], strides = [1, 1]} : vector<8x384xf32> to vector<8x128xf32>
    %477 = arith.addf %475, %476 : vector<8x128xf32>
    %478 = arith.negf %477 : vector<8x128xf32>
    %479 = math.exp %478 : vector<8x128xf32>
    %cst_148 = arith.constant 1.000000e+00 : f32
    %480 = vector.broadcast %cst_148 : f32 to vector<8x128xf32>
    %481 = arith.addf %480, %479 : vector<8x128xf32>
    %482 = arith.divf %480, %481 : vector<8x128xf32>
    %483 = vector.extract_strided_slice %471 {offsets = [0, 128], sizes = [8, 128], strides = [1, 1]} : vector<8x384xf32> to vector<8x128xf32>
    %484 = vector.extract_strided_slice %474 {offsets = [0, 128], sizes = [8, 128], strides = [1, 1]} : vector<8x384xf32> to vector<8x128xf32>
    %485 = arith.addf %483, %484 : vector<8x128xf32>
    %486 = arith.negf %485 : vector<8x128xf32>
    %487 = math.exp %486 : vector<8x128xf32>
    %cst_149 = arith.constant 1.000000e+00 : f32
    %488 = vector.broadcast %cst_149 : f32 to vector<8x128xf32>
    %489 = arith.addf %488, %487 : vector<8x128xf32>
    %490 = arith.divf %488, %489 : vector<8x128xf32>
    %491 = vector.extract_strided_slice %471 {offsets = [0, 256], sizes = [8, 128], strides = [1, 1]} : vector<8x384xf32> to vector<8x128xf32>
    %492 = vector.extract_strided_slice %474 {offsets = [0, 256], sizes = [8, 128], strides = [1, 1]} : vector<8x384xf32> to vector<8x128xf32>
    %493 = arith.mulf %482, %492 : vector<8x128xf32>
    %494 = arith.addf %491, %493 : vector<8x128xf32>
    %495 = math.tanh %494 : vector<8x128xf32>
    %cst_150 = arith.constant 1.000000e+00 : f32
    %496 = vector.broadcast %cst_150 : f32 to vector<8x128xf32>
    %497 = arith.subf %496, %490 : vector<8x128xf32>
    %498 = arith.mulf %497, %495 : vector<8x128xf32>
    %499 = arith.mulf %490, %464 : vector<8x128xf32>
    %500 = arith.addf %498, %499 : vector<8x128xf32>
    %501 = arith.index_cast %c4_i32_144 : i32 to index
    %c0_151 = arith.constant 0 : index
    %c0_152 = arith.constant 0 : index
    %502 = vector.load %arg12[%501, %c0_151, %c0_152] : memref<8x8x128xf32, #tpu.memory_space<vmem>>, vector<1x8x128xf32>
    %503 = vector.shape_cast %502 : vector<1x8x128xf32> to vector<8x128xf32>
    %504 = vector.shape_cast %500 : vector<8x128xf32> to vector<1x8x128xf32>
    tpu.vector_store %arg12[%501, %c0_151, %c0_152], %504 {strides = array<i32>} : memref<8x8x128xf32, #tpu.memory_space<vmem>>, vector<1x8x128xf32>,
    %c5_i32_153 = arith.constant 5 : i32
    %505 = arith.index_cast %c5_i32_153 : i32 to index
    %c0_154 = arith.constant 0 : index
    %c0_155 = arith.constant 0 : index
    %506 = vector.load %arg10[%505, %c0_154, %c0_155] : memref<8x8x384xf32, #tpu.memory_space<vmem>>, vector<1x8x384xf32>
    %507 = vector.shape_cast %506 : vector<1x8x384xf32> to vector<8x384xf32>
    %cst_156 = arith.constant dense<0.000000e+00> : vector<8x384xf32>
    %508 = tpu.matmul %500, %320, %cst_156 {dimension_numbers = #tpu.dot_dimension_numbers<[1], [0], [0], [1], [0, 0, 1, 1], [], []>} : vector<8x128xf32>, vector<128x384xf32>, vector<8x384xf32> -> vector<8x384xf32>
    %509 = vector.broadcast %322 : vector<1x384xf32> to vector<8x384xf32>
    %510 = arith.addf %508, %509 : vector<8x384xf32>
    %511 = vector.extract_strided_slice %507 {offsets = [0, 0], sizes = [8, 128], strides = [1, 1]} : vector<8x384xf32> to vector<8x128xf32>
    %512 = vector.extract_strided_slice %510 {offsets = [0, 0], sizes = [8, 128], strides = [1, 1]} : vector<8x384xf32> to vector<8x128xf32>
    %513 = arith.addf %511, %512 : vector<8x128xf32>
    %514 = arith.negf %513 : vector<8x128xf32>
    %515 = math.exp %514 : vector<8x128xf32>
    %cst_157 = arith.constant 1.000000e+00 : f32
    %516 = vector.broadcast %cst_157 : f32 to vector<8x128xf32>
    %517 = arith.addf %516, %515 : vector<8x128xf32>
    %518 = arith.divf %516, %517 : vector<8x128xf32>
    %519 = vector.extract_strided_slice %507 {offsets = [0, 128], sizes = [8, 128], strides = [1, 1]} : vector<8x384xf32> to vector<8x128xf32>
    %520 = vector.extract_strided_slice %510 {offsets = [0, 128], sizes = [8, 128], strides = [1, 1]} : vector<8x384xf32> to vector<8x128xf32>
    %521 = arith.addf %519, %520 : vector<8x128xf32>
    %522 = arith.negf %521 : vector<8x128xf32>
    %523 = math.exp %522 : vector<8x128xf32>
    %cst_158 = arith.constant 1.000000e+00 : f32
    %524 = vector.broadcast %cst_158 : f32 to vector<8x128xf32>
    %525 = arith.addf %524, %523 : vector<8x128xf32>
    %526 = arith.divf %524, %525 : vector<8x128xf32>
    %527 = vector.extract_strided_slice %507 {offsets = [0, 256], sizes = [8, 128], strides = [1, 1]} : vector<8x384xf32> to vector<8x128xf32>
    %528 = vector.extract_strided_slice %510 {offsets = [0, 256], sizes = [8, 128], strides = [1, 1]} : vector<8x384xf32> to vector<8x128xf32>
    %529 = arith.mulf %518, %528 : vector<8x128xf32>
    %530 = arith.addf %527, %529 : vector<8x128xf32>
    %531 = math.tanh %530 : vector<8x128xf32>
    %cst_159 = arith.constant 1.000000e+00 : f32
    %532 = vector.broadcast %cst_159 : f32 to vector<8x128xf32>
    %533 = arith.subf %532, %526 : vector<8x128xf32>
    %534 = arith.mulf %533, %531 : vector<8x128xf32>
    %535 = arith.mulf %526, %500 : vector<8x128xf32>
    %536 = arith.addf %534, %535 : vector<8x128xf32>
    %537 = arith.index_cast %c5_i32_153 : i32 to index
    %c0_160 = arith.constant 0 : index
    %c0_161 = arith.constant 0 : index
    %538 = vector.load %arg12[%537, %c0_160, %c0_161] : memref<8x8x128xf32, #tpu.memory_space<vmem>>, vector<1x8x128xf32>
    %539 = vector.shape_cast %538 : vector<1x8x128xf32> to vector<8x128xf32>
    %540 = vector.shape_cast %536 : vector<8x128xf32> to vector<1x8x128xf32>
    tpu.vector_store %arg12[%537, %c0_160, %c0_161], %540 {strides = array<i32>} : memref<8x8x128xf32, #tpu.memory_space<vmem>>, vector<1x8x128xf32>,
    %c6_i32_162 = arith.constant 6 : i32
    %541 = arith.index_cast %c6_i32_162 : i32 to index
    %c0_163 = arith.constant 0 : index
    %c0_164 = arith.constant 0 : index
    %542 = vector.load %arg10[%541, %c0_163, %c0_164] : memref<8x8x384xf32, #tpu.memory_space<vmem>>, vector<1x8x384xf32>
    %543 = vector.shape_cast %542 : vector<1x8x384xf32> to vector<8x384xf32>
    %cst_165 = arith.constant dense<0.000000e+00> : vector<8x384xf32>
    %544 = tpu.matmul %536, %320, %cst_165 {dimension_numbers = #tpu.dot_dimension_numbers<[1], [0], [0], [1], [0, 0, 1, 1], [], []>} : vector<8x128xf32>, vector<128x384xf32>, vector<8x384xf32> -> vector<8x384xf32>
    %545 = vector.broadcast %322 : vector<1x384xf32> to vector<8x384xf32>
    %546 = arith.addf %544, %545 : vector<8x384xf32>
    %547 = vector.extract_strided_slice %543 {offsets = [0, 0], sizes = [8, 128], strides = [1, 1]} : vector<8x384xf32> to vector<8x128xf32>
    %548 = vector.extract_strided_slice %546 {offsets = [0, 0], sizes = [8, 128], strides = [1, 1]} : vector<8x384xf32> to vector<8x128xf32>
    %549 = arith.addf %547, %548 : vector<8x128xf32>
    %550 = arith.negf %549 : vector<8x128xf32>
    %551 = math.exp %550 : vector<8x128xf32>
    %cst_166 = arith.constant 1.000000e+00 : f32
    %552 = vector.broadcast %cst_166 : f32 to vector<8x128xf32>
    %553 = arith.addf %552, %551 : vector<8x128xf32>
    %554 = arith.divf %552, %553 : vector<8x128xf32>
    %555 = vector.extract_strided_slice %543 {offsets = [0, 128], sizes = [8, 128], strides = [1, 1]} : vector<8x384xf32> to vector<8x128xf32>
    %556 = vector.extract_strided_slice %546 {offsets = [0, 128], sizes = [8, 128], strides = [1, 1]} : vector<8x384xf32> to vector<8x128xf32>
    %557 = arith.addf %555, %556 : vector<8x128xf32>
    %558 = arith.negf %557 : vector<8x128xf32>
    %559 = math.exp %558 : vector<8x128xf32>
    %cst_167 = arith.constant 1.000000e+00 : f32
    %560 = vector.broadcast %cst_167 : f32 to vector<8x128xf32>
    %561 = arith.addf %560, %559 : vector<8x128xf32>
    %562 = arith.divf %560, %561 : vector<8x128xf32>
    %563 = vector.extract_strided_slice %543 {offsets = [0, 256], sizes = [8, 128], strides = [1, 1]} : vector<8x384xf32> to vector<8x128xf32>
    %564 = vector.extract_strided_slice %546 {offsets = [0, 256], sizes = [8, 128], strides = [1, 1]} : vector<8x384xf32> to vector<8x128xf32>
    %565 = arith.mulf %554, %564 : vector<8x128xf32>
    %566 = arith.addf %563, %565 : vector<8x128xf32>
    %567 = math.tanh %566 : vector<8x128xf32>
    %cst_168 = arith.constant 1.000000e+00 : f32
    %568 = vector.broadcast %cst_168 : f32 to vector<8x128xf32>
    %569 = arith.subf %568, %562 : vector<8x128xf32>
    %570 = arith.mulf %569, %567 : vector<8x128xf32>
    %571 = arith.mulf %562, %536 : vector<8x128xf32>
    %572 = arith.addf %570, %571 : vector<8x128xf32>
    %573 = arith.index_cast %c6_i32_162 : i32 to index
    %c0_169 = arith.constant 0 : index
    %c0_170 = arith.constant 0 : index
    %574 = vector.load %arg12[%573, %c0_169, %c0_170] : memref<8x8x128xf32, #tpu.memory_space<vmem>>, vector<1x8x128xf32>
    %575 = vector.shape_cast %574 : vector<1x8x128xf32> to vector<8x128xf32>
    %576 = vector.shape_cast %572 : vector<8x128xf32> to vector<1x8x128xf32>
    tpu.vector_store %arg12[%573, %c0_169, %c0_170], %576 {strides = array<i32>} : memref<8x8x128xf32, #tpu.memory_space<vmem>>, vector<1x8x128xf32>,
    %c7_i32_171 = arith.constant 7 : i32
    %577 = arith.index_cast %c7_i32_171 : i32 to index
    %c0_172 = arith.constant 0 : index
    %c0_173 = arith.constant 0 : index
    %578 = vector.load %arg10[%577, %c0_172, %c0_173] : memref<8x8x384xf32, #tpu.memory_space<vmem>>, vector<1x8x384xf32>
    %579 = vector.shape_cast %578 : vector<1x8x384xf32> to vector<8x384xf32>
    %cst_174 = arith.constant dense<0.000000e+00> : vector<8x384xf32>
    %580 = tpu.matmul %572, %320, %cst_174 {dimension_numbers = #tpu.dot_dimension_numbers<[1], [0], [0], [1], [0, 0, 1, 1], [], []>} : vector<8x128xf32>, vector<128x384xf32>, vector<8x384xf32> -> vector<8x384xf32>
    %581 = vector.broadcast %322 : vector<1x384xf32> to vector<8x384xf32>
    %582 = arith.addf %580, %581 : vector<8x384xf32>
    %583 = vector.extract_strided_slice %579 {offsets = [0, 0], sizes = [8, 128], strides = [1, 1]} : vector<8x384xf32> to vector<8x128xf32>
    %584 = vector.extract_strided_slice %582 {offsets = [0, 0], sizes = [8, 128], strides = [1, 1]} : vector<8x384xf32> to vector<8x128xf32>
    %585 = arith.addf %583, %584 : vector<8x128xf32>
    %586 = arith.negf %585 : vector<8x128xf32>
    %587 = math.exp %586 : vector<8x128xf32>
    %cst_175 = arith.constant 1.000000e+00 : f32
    %588 = vector.broadcast %cst_175 : f32 to vector<8x128xf32>
    %589 = arith.addf %588, %587 : vector<8x128xf32>
    %590 = arith.divf %588, %589 : vector<8x128xf32>
    %591 = vector.extract_strided_slice %579 {offsets = [0, 128], sizes = [8, 128], strides = [1, 1]} : vector<8x384xf32> to vector<8x128xf32>
    %592 = vector.extract_strided_slice %582 {offsets = [0, 128], sizes = [8, 128], strides = [1, 1]} : vector<8x384xf32> to vector<8x128xf32>
    %593 = arith.addf %591, %592 : vector<8x128xf32>
    %594 = arith.negf %593 : vector<8x128xf32>
    %595 = math.exp %594 : vector<8x128xf32>
    %cst_176 = arith.constant 1.000000e+00 : f32
    %596 = vector.broadcast %cst_176 : f32 to vector<8x128xf32>
    %597 = arith.addf %596, %595 : vector<8x128xf32>
    %598 = arith.divf %596, %597 : vector<8x128xf32>
    %599 = vector.extract_strided_slice %579 {offsets = [0, 256], sizes = [8, 128], strides = [1, 1]} : vector<8x384xf32> to vector<8x128xf32>
    %600 = vector.extract_strided_slice %582 {offsets = [0, 256], sizes = [8, 128], strides = [1, 1]} : vector<8x384xf32> to vector<8x128xf32>
    %601 = arith.mulf %590, %600 : vector<8x128xf32>
    %602 = arith.addf %599, %601 : vector<8x128xf32>
    %603 = math.tanh %602 : vector<8x128xf32>
    %cst_177 = arith.constant 1.000000e+00 : f32
    %604 = vector.broadcast %cst_177 : f32 to vector<8x128xf32>
    %605 = arith.subf %604, %598 : vector<8x128xf32>
    %606 = arith.mulf %605, %603 : vector<8x128xf32>
    %607 = arith.mulf %598, %572 : vector<8x128xf32>
    %608 = arith.addf %606, %607 : vector<8x128xf32>
    %609 = arith.index_cast %c7_i32_171 : i32 to index
    %c0_178 = arith.constant 0 : index
    %c0_179 = arith.constant 0 : index
    %610 = vector.load %arg12[%609, %c0_178, %c0_179] : memref<8x8x128xf32, #tpu.memory_space<vmem>>, vector<1x8x128xf32>
    %611 = vector.shape_cast %610 : vector<1x8x128xf32> to vector<8x128xf32>
    %612 = vector.shape_cast %608 : vector<8x128xf32> to vector<1x8x128xf32>
    tpu.vector_store %arg12[%609, %c0_178, %c0_179], %612 {strides = array<i32>} : memref<8x8x128xf32, #tpu.memory_space<vmem>>, vector<1x8x128xf32>,
    %c8_i32_180 = arith.constant 8 : i32
    %c1_181 = arith.constant 1 : index
    %c0_182 = arith.constant 0 : index
    %c0_183 = arith.constant 0 : index
    %613 = vector.load %arg9[%c1_181, %c0_182, %c0_183] : memref<2x8x128xf32, #tpu.memory_space<vmem>>, vector<1x8x128xf32>
    %614 = vector.shape_cast %613 : vector<1x8x128xf32> to vector<8x128xf32>
    %615 = vector.shape_cast %608 : vector<8x128xf32> to vector<1x8x128xf32>
    tpu.vector_store %arg9[%c1_181, %c0_182, %c0_183], %615 {strides = array<i32>} : memref<2x8x128xf32, #tpu.memory_space<vmem>>, vector<1x8x128xf32>,
    %c0_184 = arith.constant 0 : index
    %c0_185 = arith.constant 0 : index
    %c0_186 = arith.constant 0 : index
    %616 = vector.load %arg12[%c0_184, %c0_185, %c0_186] : memref<8x8x128xf32, #tpu.memory_space<vmem>>, vector<8x8x128xf32>
    %617 = vector.shape_cast %616 : vector<8x8x128xf32> to vector<64x128xf32>
    %c0_187 = arith.constant 0 : index
    %c0_188 = arith.constant 0 : index
    %618 = vector.load %arg6[%c0_187, %c0_188] : memref<128x128xf32, #tpu.memory_space<vmem>>, vector<128x128xf32>
    %cst_189 = arith.constant dense<0.000000e+00> : vector<64x128xf32>
    %619 = tpu.matmul %617, %618, %cst_189 {dimension_numbers = #tpu.dot_dimension_numbers<[1], [0], [0], [1], [0, 0, 1, 1], [], []>} : vector<64x128xf32>, vector<128x128xf32>, vector<64x128xf32> -> vector<64x128xf32>
    %c0_190 = arith.constant 0 : index
    %c0_191 = arith.constant 0 : index
    %620 = vector.load %arg7[%c0_190, %c0_191] : memref<1x128xf32, #tpu.memory_space<vmem>>, vector<1x128xf32>
    %621 = vector.broadcast %620 : vector<1x128xf32> to vector<64x128xf32>
    %622 = arith.addf %619, %621 : vector<64x128xf32>
    %623 = vector.shape_cast %622 : vector<64x128xf32> to vector<8x8x128xf32>
    %c0_192 = arith.constant 0 : index
    %c0_193 = arith.constant 0 : index
    %c0_194 = arith.constant 0 : index
    %624 = vector.load %arg8[%c0_192, %c0_193, %c0_194] : memref<8x8x128xf32, #tpu.memory_space<vmem>>, vector<8x8x128xf32>
    tpu.vector_store %arg8[%c0_192, %c0_193, %c0_194], %623 {strides = array<i32>} : memref<8x8x128xf32, #tpu.memory_space<vmem>>, vector<8x8x128xf32>,
    return
  }
}

</mosaic_0001>

<llo_original>
// kernel: decoder_rnn_forward.1
$region0: #{decoder_rnn_forward.1}
  #allocation0 [shape = 'u32[]', space=smem, size = 0x4, offset = 0x4, fixed_abs, tag = 'smem constant byte address 0x4 - core index']
  #allocation1 [shape = 'u32[72,128]{1,0:T(1,128)}', space=vmem, size = 0x9000, scoped, tag = 'internal scratch']
  #allocation2 [shape = 'f32[8,8,384]{2,1,0:T(8,128)}', space=vmem, size = 0x18000, scoped, tag = 'scratch operand']
  #allocation3 [shape = 'f32[8,8,128]{2,1,0:T(8,128)}', space=vmem, size = 0x8000, scoped, tag = 'scratch operand']
  #allocation4 [shape = 'f32[8,8,128]{2,1,0:T(8,128)}', space=vmem, size = 0x8000, scoped, tag = 'scratch operand']
  %s0 = inlined_call_operand.vmem [shape: f32[8,8,128], index: 0, kind: input, shape index: {}]
  %s1 = inlined_call_operand.vmem [shape: f32[2,8,128], index: 1, kind: input, shape index: {}]
  %s2 = inlined_call_operand.hbm [shape: f32[2,128,384], index: 2, kind: input, shape index: {}]
  %s3 = inlined_call_operand.hbm [shape: f32[2,128,384], index: 3, kind: input, shape index: {}]
  %s4 = inlined_call_operand.hbm [shape: f32[2,1,384], index: 4, kind: input, shape index: {}]
  %s5 = inlined_call_operand.hbm [shape: f32[2,1,384], index: 5, kind: input, shape index: {}]
  %s6 = inlined_call_operand.vmem [shape: f32[128,128], index: 6, kind: input, shape index: {}]
  %s7 = inlined_call_operand.vmem [shape: f32[1,128], index: 7, kind: input, shape index: {}]
  %s8 = inlined_call_operand.vmem [shape: f32[8,8,128], index: 8, kind: output, shape index: {0}]
  %s9 = inlined_call_operand.vmem [shape: f32[2,8,128], index: 9, kind: output, shape index: {1}]
  %10 = xla_tuple %s8, %s9
  %s11 = sld [smem:[#allocation0]]
  $region66: #{decoder_rnn_forward.1} parent=0
    _
  %s13 = ssub.s32 1, %s11
  %s14 = scalar_select 0, %s13, %s11
  $region1: #{decoder_rnn_forward.1} parent=0
    #allocation5 [shape = 'u8[393216]{0}', space=vmem, size = 0x60000, scoped, tag = 'input window, operand 2, single buffered']
    #allocation6 [shape = 's32[1]{0}', space=sflag, size = 0x4, scoped, tag = 'scoped memory for decoder_rnn_forward.1']
    #allocation7 [shape = 'u8[393216]{0}', space=vmem, size = 0x60000, scoped, tag = 'input window, operand 3, single buffered']
    #allocation8 [shape = 's32[1]{0}', space=sflag, size = 0x4, scoped, tag = 'scoped memory for decoder_rnn_forward.1']
    #allocation9 [shape = 'u8[3072]{0}', space=vmem, size = 0xc00, scoped, tag = 'input window, operand 4, single buffered']
    #allocation10 [shape = 'u8[3072]{0}', space=vmem, size = 0xc00, scoped, tag = 'input window, operand 5, single buffered']
    #allocation11 [shape = 's32[1]{0}', space=sflag, size = 0x4, scoped, tag = 'scoped memory for decoder_rnn_forward.1']
    %15 = vsyncpa [#allocation6], 0
    %16 = vsyncpa [#allocation8], 0
    %17 = vsyncpa [#allocation11], 0
    // Predicated region
    $region2: #{decoder_rnn_forward.1} parent=1 // pred_check
      _
    $region3: #{decoder_rnn_forward.1} parent=1 // pred_check_branch
      %19 = sbr.rel (0) target = $region5
    $region4: #{decoder_rnn_forward.1} parent=1 // pred_region
      _
    $region5: #{decoder_rnn_forward.1} parent=1 // pred_fallthru
      _
    // Predicated region
    $region6: #{decoder_rnn_forward.1} parent=1 // pred_check
      _
    $region7: #{decoder_rnn_forward.1} parent=1 // pred_check_branch
      %21 = sbr.rel (0) target = $region9
    $region8: #{decoder_rnn_forward.1} parent=1 // pred_region
      _
    $region9: #{decoder_rnn_forward.1} parent=1 // pred_fallthru
      _
    // Predicated region
    $region10: #{decoder_rnn_forward.1} parent=1 // pred_check
      _
    $region11: #{decoder_rnn_forward.1} parent=1 // pred_check_branch
      %23 = sbr.rel (0) target = $region13
    $region12: #{decoder_rnn_forward.1} parent=1 // pred_region
      %25 = vsyncadd [#allocation6], 0
      %s26 = sshll.u32 %s2, 4
      %s27 = int_to_ptr.hbm [resolvable:$true] %s26
      %s28 = sshll.u32 [#allocation5], 4
      %s29 = int_to_ptr.vmem [resolvable:$true] %s28
      %34 = dma.hbm_to_vmem [thread:$0]  %s27, 12288, %s29, [#allocation6], 384, 384, 24
    $region13: #{decoder_rnn_forward.1} parent=1 // pred_fallthru
      _
    // Predicated region
    $region14: #{decoder_rnn_forward.1} parent=1 // pred_check
      _
    $region15: #{decoder_rnn_forward.1} parent=1 // pred_check_branch
      %36 = sbr.rel (0) target = $region17
    $region16: #{decoder_rnn_forward.1} parent=1 // pred_region
      %38 = vsyncadd [#allocation8], 0
      %s39 = sshll.u32 %s3, 4
      %s40 = int_to_ptr.hbm [resolvable:$true] %s39
      %s41 = sshll.u32 [#allocation7], 4
      %s42 = int_to_ptr.vmem [resolvable:$true] %s41
      %47 = dma.hbm_to_vmem [thread:$0]  %s40, 12288, %s42, [#allocation8], 384, 384, 24
    $region17: #{decoder_rnn_forward.1} parent=1 // pred_fallthru
      _
    // Predicated region
    $region18: #{decoder_rnn_forward.1} parent=1 // pred_check
      _
    $region19: #{decoder_rnn_forward.1} parent=1 // pred_check_branch
      %49 = sbr.rel (0) target = $region21
    $region20: #{decoder_rnn_forward.1} parent=1 // pred_region
      %51 = vsyncadd [#allocation8], 0
      %s52 = sshll.u32 %s4, 4
      %s53 = int_to_ptr.hbm [resolvable:$true] %s52
      %s54 = sshll.u32 [#allocation9], 4
      %s55 = int_to_ptr.vmem [resolvable:$true] %s54
      %60 = dma.hbm_to_vmem [thread:$0]  %s53, 96, %s55, [#allocation8], 48, 48, 3
    $region21: #{decoder_rnn_forward.1} parent=1 // pred_fallthru
      _
    // Predicated region
    $region22: #{decoder_rnn_forward.1} parent=1 // pred_check
      _
    $region23: #{decoder_rnn_forward.1} parent=1 // pred_check_branch
      %62 = sbr.rel (0) target = $region25
    $region24: #{decoder_rnn_forward.1} parent=1 // pred_region
      %64 = vsyncadd [#allocation11], 0
      %s65 = sshll.u32 %s5, 4
      %s66 = int_to_ptr.hbm [resolvable:$true] %s65
      %s67 = sshll.u32 [#allocation10], 4
      %s68 = int_to_ptr.vmem [resolvable:$true] %s67
      %73 = dma.hbm_to_vmem [thread:$0]  %s66, 96, %s68, [#allocation11], 48, 48, 3
    $region25: #{decoder_rnn_forward.1} parent=1 // pred_fallthru
      _
    // Predicated region
    $region26: #{decoder_rnn_forward.1} parent=1 // pred_check
      _
    $region27: #{decoder_rnn_forward.1} parent=1 // pred_check_branch
      %75 = sbr.rel (0) target = $region29
    $region28: #{decoder_rnn_forward.1} parent=1 // pred_region
      _
    $region29: #{decoder_rnn_forward.1} parent=1 // pred_fallthru
      _
    // Predicated region
    $region30: #{decoder_rnn_forward.1} parent=1 // pred_check
      _
    $region31: #{decoder_rnn_forward.1} parent=1 // pred_check_branch
      %77 = sbr.rel (0) target = $region33
    $region32: #{decoder_rnn_forward.1} parent=1 // pred_region
      _
    $region33: #{decoder_rnn_forward.1} parent=1 // pred_fallthru
      _
    // Predicated region
    $region34: #{decoder_rnn_forward.1} parent=1 // pred_check
      _
    $region35: #{decoder_rnn_forward.1} parent=1 // pred_check_branch
      %79 = sbr.rel (0) target = $region37
    $region36: #{decoder_rnn_forward.1} parent=1 // pred_region
      %81 = dma.done [#allocation6], 12288
    $region37: #{decoder_rnn_forward.1} parent=1 // pred_fallthru
      _
    // Predicated region
    $region38: #{decoder_rnn_forward.1} parent=1 // pred_check
      _
    $region39: #{decoder_rnn_forward.1} parent=1 // pred_check_branch
      %83 = sbr.rel (0) target = $region41
    $region40: #{decoder_rnn_forward.1} parent=1 // pred_region
      %85 = dma.done [#allocation8], 12288
    $region41: #{decoder_rnn_forward.1} parent=1 // pred_fallthru
      _
    // Predicated region
    $region42: #{decoder_rnn_forward.1} parent=1 // pred_check
      _
    $region43: #{decoder_rnn_forward.1} parent=1 // pred_check_branch
      %87 = sbr.rel (0) target = $region45
    $region44: #{decoder_rnn_forward.1} parent=1 // pred_region
      %89 = dma.done [#allocation8], 96
    $region45: #{decoder_rnn_forward.1} parent=1 // pred_fallthru
      _
    // Predicated region
    $region46: #{decoder_rnn_forward.1} parent=1 // pred_check
      _
    $region47: #{decoder_rnn_forward.1} parent=1 // pred_check_branch
      %91 = sbr.rel (0) target = $region49
    $region48: #{decoder_rnn_forward.1} parent=1 // pred_region
      %93 = dma.done [#allocation11], 96
    $region49: #{decoder_rnn_forward.1} parent=1 // pred_fallthru
      _
    %v94 = vld [vmem:[%s0] sm:$0xff]
    %v95 = vld [vmem:[%s0 + $0x8] sm:$0xff]
    %v96 = vld [vmem:[%s0 + $0x10] sm:$0xff]
    %v97 = vld [vmem:[%s0 + $0x18] sm:$0xff]
    %v98 = vld [vmem:[%s0 + $0x20] sm:$0xff]
    %v99 = vld [vmem:[%s0 + $0x28] sm:$0xff]
    %v100 = vld [vmem:[%s0 + $0x30] sm:$0xff]
    %v101 = vld [vmem:[%s0 + $0x38] sm:$0xff]
    %v102 = vld [vmem:[#allocation5] sm:$0xff]
    %v103 = vld [vmem:[#allocation5 + $0x8] sm:$0xff]
    %v104 = vld [vmem:[#allocation5 + $0x10] sm:$0xff]
    %v105 = vld [vmem:[#allocation5 + $0x18] sm:$0xff]
    %v106 = vld [vmem:[#allocation5 + $0x20] sm:$0xff]
    %v107 = vld [vmem:[#allocation5 + $0x28] sm:$0xff]
    %v108 = vld [vmem:[#allocation5 + $0x30] sm:$0xff]
    %v109 = vld [vmem:[#allocation5 + $0x38] sm:$0xff]
    %v110 = vld [vmem:[#allocation5 + $0x40] sm:$0xff]
    %v111 = vld [vmem:[#allocation5 + $0x48] sm:$0xff]
    %v112 = vld [vmem:[#allocation5 + $0x50] sm:$0xff]
    %v113 = vld [vmem:[#allocation5 + $0x58] sm:$0xff]
    %v114 = vld [vmem:[#allocation5 + $0x60] sm:$0xff]
    %v115 = vld [vmem:[#allocation5 + $0x68] sm:$0xff]
    %v116 = vld [vmem:[#allocation5 + $0x70] sm:$0xff]
    %v117 = vld [vmem:[#allocation5 + $0x78] sm:$0xff]
    %v118 = vld [vmem:[#allocation5 + $0x80] sm:$0xff]
    %v119 = vld [vmem:[#allocation5 + $0x88] sm:$0xff]
    %v120 = vld [vmem:[#allocation5 + $0x90] sm:$0xff]
    %v121 = vld [vmem:[#allocation5 + $0x98] sm:$0xff]
    %v122 = vld [vmem:[#allocation5 + $0xa0] sm:$0xff]
    %v123 = vld [vmem:[#allocation5 + $0xa8] sm:$0xff]
    %v124 = vld [vmem:[#allocation5 + $0xb0] sm:$0xff]
    %v125 = vld [vmem:[#allocation5 + $0xb8] sm:$0xff]
    %v126 = vld [vmem:[#allocation5 + $0xc0] sm:$0xff]
    %v127 = vld [vmem:[#allocation5 + $0xc8] sm:$0xff]
    %v128 = vld [vmem:[#allocation5 + $0xd0] sm:$0xff]
    %v129 = vld [vmem:[#allocation5 + $0xd8] sm:$0xff]
    %v130 = vld [vmem:[#allocation5 + $0xe0] sm:$0xff]
    %v131 = vld [vmem:[#allocation5 + $0xe8] sm:$0xff]
    %v132 = vld [vmem:[#allocation5 + $0xf0] sm:$0xff]
    %v133 = vld [vmem:[#allocation5 + $0xf8] sm:$0xff]
    %v134 = vld [vmem:[#allocation5 + $0x100] sm:$0xff]
    %v135 = vld [vmem:[#allocation5 + $0x108] sm:$0xff]
    %v136 = vld [vmem:[#allocation5 + $0x110] sm:$0xff]
    %v137 = vld [vmem:[#allocation5 + $0x118] sm:$0xff]
    %v138 = vld [vmem:[#allocation5 + $0x120] sm:$0xff]
    %v139 = vld [vmem:[#allocation5 + $0x128] sm:$0xff]
    %v140 = vld [vmem:[#allocation5 + $0x130] sm:$0xff]
    %v141 = vld [vmem:[#allocation5 + $0x138] sm:$0xff]
    %v142 = vld [vmem:[#allocation5 + $0x140] sm:$0xff]
    %v143 = vld [vmem:[#allocation5 + $0x148] sm:$0xff]
    %v144 = vld [vmem:[#allocation5 + $0x150] sm:$0xff]
    %v145 = vld [vmem:[#allocation5 + $0x158] sm:$0xff]
    %v146 = vld [vmem:[#allocation5 + $0x160] sm:$0xff]
    %v147 = vld [vmem:[#allocation5 + $0x168] sm:$0xff]
    %v148 = vld [vmem:[#allocation5 + $0x170] sm:$0xff]
    %v149 = vld [vmem:[#allocation5 + $0x178] sm:$0xff]
    %v150 = vld [vmem:[#allocation9] sm:$0x7]
    %v152 = vperm.slane %v150, 0
    %v153 = vperm.slane %v150, 1
    %v154 = vperm.slane %v150, 2
    %158 = vmatpush.msra.mxu0 %v147
    %159 = vmatpush.msra.mxu0 %v144
    %160 = vmatpush.msra.mxu0 %v141
    %161 = vmatpush.msra.mxu0 %v138
    %162 = vmatpush.msra.mxu0 %v135
    %163 = vmatpush.msra.mxu0 %v132
    %164 = vmatpush.msra.mxu0 %v129
    %165 = vmatpush.msra.mxu0 %v126
    %166 = vmatpush.msra.mxu0 %v123
    %167 = vmatpush.msra.mxu0 %v120
    %168 = vmatpush.msra.mxu0 %v117
    %169 = vmatpush.msra.mxu0 %v114
    %170 = vmatpush.msra.mxu0 %v111
    %171 = vmatpush.msra.mxu0 %v108
    %172 = vmatpush.msra.mxu0 %v105
    %173 = vmatpush.msra.mxu0 %v102
    %174 = vmatmul.f32.gmra.mxu0 %v94
    %v175 = vpop.f32.mrf.mxu0
    %v176 = vadd.f32 %v152, %v175
    %177 = vmatmul.f32.gmra.mxu0 %v95
    %v178 = vpop.f32.mrf.mxu0
    %v179 = vadd.f32 %v152, %v178
    %180 = vmatmul.f32.gmra.mxu0 %v96
    %v181 = vpop.f32.mrf.mxu0
    %v182 = vadd.f32 %v152, %v181
    %183 = vmatmul.f32.gmra.mxu0 %v97
    %v184 = vpop.f32.mrf.mxu0
    %v185 = vadd.f32 %v152, %v184
    %186 = vmatmul.f32.gmra.mxu0 %v98
    %v187 = vpop.f32.mrf.mxu0
    %v188 = vadd.f32 %v152, %v187
    %189 = vmatmul.f32.gmra.mxu0 %v99
    %v190 = vpop.f32.mrf.mxu0
    %v191 = vadd.f32 %v152, %v190
    %192 = vmatmul.f32.gmra.mxu0 %v100
    %v193 = vpop.f32.mrf.mxu0
    %v194 = vadd.f32 %v152, %v193
    %195 = vmatmul.f32.gmra.mxu0 %v101
    %v196 = vpop.f32.mrf.mxu0
    %v197 = vadd.f32 %v152, %v196
    %198 = vdwg.mxu0
    %199 = vmatpush.msra.mxu0 %v148
    %200 = vmatpush.msra.mxu0 %v145
    %201 = vmatpush.msra.mxu0 %v142
    %202 = vmatpush.msra.mxu0 %v139
    %203 = vmatpush.msra.mxu0 %v136
    %204 = vmatpush.msra.mxu0 %v133
    %205 = vmatpush.msra.mxu0 %v130
    %206 = vmatpush.msra.mxu0 %v127
    %207 = vmatpush.msra.mxu0 %v124
    %208 = vmatpush.msra.mxu0 %v121
    %209 = vmatpush.msra.mxu0 %v118
    %210 = vmatpush.msra.mxu0 %v115
    %211 = vmatpush.msra.mxu0 %v112
    %212 = vmatpush.msra.mxu0 %v109
    %213 = vmatpush.msra.mxu0 %v106
    %214 = vmatpush.msra.mxu0 %v103
    %215 = vmatmul.f32.gmra.mxu0 %v94
    %v216 = vpop.f32.mrf.mxu0
    %v217 = vadd.f32 %v153, %v216
    %218 = vmatmul.f32.gmra.mxu0 %v95
    %v219 = vpop.f32.mrf.mxu0
    %v220 = vadd.f32 %v153, %v219
    %221 = vmatmul.f32.gmra.mxu0 %v96
    %v222 = vpop.f32.mrf.mxu0
    %v223 = vadd.f32 %v153, %v222
    %224 = vmatmul.f32.gmra.mxu0 %v97
    %v225 = vpop.f32.mrf.mxu0
    %v226 = vadd.f32 %v153, %v225
    %227 = vmatmul.f32.gmra.mxu0 %v98
    %v228 = vpop.f32.mrf.mxu0
    %v229 = vadd.f32 %v153, %v228
    %230 = vmatmul.f32.gmra.mxu0 %v99
    %v231 = vpop.f32.mrf.mxu0
    %v232 = vadd.f32 %v153, %v231
    %233 = vmatmul.f32.gmra.mxu0 %v100
    %v234 = vpop.f32.mrf.mxu0
    %v235 = vadd.f32 %v153, %v234
    %236 = vmatmul.f32.gmra.mxu0 %v101
    %v237 = vpop.f32.mrf.mxu0
    %v238 = vadd.f32 %v153, %v237
    %239 = vdwg.mxu0
    %240 = vmatpush.msra.mxu0 %v149
    %241 = vmatpush.msra.mxu0 %v146
    %242 = vmatpush.msra.mxu0 %v143
    %243 = vmatpush.msra.mxu0 %v140
    %244 = vmatpush.msra.mxu0 %v137
    %245 = vmatpush.msra.mxu0 %v134
    %246 = vmatpush.msra.mxu0 %v131
    %247 = vmatpush.msra.mxu0 %v128
    %248 = vmatpush.msra.mxu0 %v125
    %249 = vmatpush.msra.mxu0 %v122
    %250 = vmatpush.msra.mxu0 %v119
    %251 = vmatpush.msra.mxu0 %v116
    %252 = vmatpush.msra.mxu0 %v113
    %253 = vmatpush.msra.mxu0 %v110
    %254 = vmatpush.msra.mxu0 %v107
    %255 = vmatpush.msra.mxu0 %v104
    %256 = vmatmul.f32.gmra.mxu0 %v94
    %v257 = vpop.f32.mrf.mxu0
    %v258 = vadd.f32 %v154, %v257
    %259 = vmatmul.f32.gmra.mxu0 %v95
    %v260 = vpop.f32.mrf.mxu0
    %v261 = vadd.f32 %v154, %v260
    %262 = vmatmul.f32.gmra.mxu0 %v96
    %v263 = vpop.f32.mrf.mxu0
    %v264 = vadd.f32 %v154, %v263
    %265 = vmatmul.f32.gmra.mxu0 %v97
    %v266 = vpop.f32.mrf.mxu0
    %v267 = vadd.f32 %v154, %v266
    %268 = vmatmul.f32.gmra.mxu0 %v98
    %v269 = vpop.f32.mrf.mxu0
    %v270 = vadd.f32 %v154, %v269
    %271 = vmatmul.f32.gmra.mxu0 %v99
    %v272 = vpop.f32.mrf.mxu0
    %v273 = vadd.f32 %v154, %v272
    %274 = vmatmul.f32.gmra.mxu0 %v100
    %v275 = vpop.f32.mrf.mxu0
    %v276 = vadd.f32 %v154, %v275
    %277 = vmatmul.f32.gmra.mxu0 %v101
    %v278 = vpop.f32.mrf.mxu0
    %v279 = vadd.f32 %v154, %v278
    %280 = vdwg.mxu0
    %281 = vst [vmem:[#allocation2] sm:$0xff] %v176
    %282 = vst [vmem:[#allocation2 + $0x8] sm:$0xff] %v217
    %283 = vst [vmem:[#allocation2 + $0x10] sm:$0xff] %v258
    %284 = vst [vmem:[#allocation2 + $0x18] sm:$0xff] %v179
    %285 = vst [vmem:[#allocation2 + $0x20] sm:$0xff] %v220
    %286 = vst [vmem:[#allocation2 + $0x28] sm:$0xff] %v261
    %287 = vst [vmem:[#allocation2 + $0x30] sm:$0xff] %v182
    %288 = vst [vmem:[#allocation2 + $0x38] sm:$0xff] %v223
    %289 = vst [vmem:[#allocation2 + $0x40] sm:$0xff] %v264
    %290 = vst [vmem:[#allocation2 + $0x48] sm:$0xff] %v185
    %291 = vst [vmem:[#allocation2 + $0x50] sm:$0xff] %v226
    %292 = vst [vmem:[#allocation2 + $0x58] sm:$0xff] %v267
    %293 = vst [vmem:[#allocation2 + $0x60] sm:$0xff] %v188
    %294 = vst [vmem:[#allocation2 + $0x68] sm:$0xff] %v229
    %295 = vst [vmem:[#allocation2 + $0x70] sm:$0xff] %v270
    %296 = vst [vmem:[#allocation2 + $0x78] sm:$0xff] %v191
    %297 = vst [vmem:[#allocation2 + $0x80] sm:$0xff] %v232
    %298 = vst [vmem:[#allocation2 + $0x88] sm:$0xff] %v273
    %299 = vst [vmem:[#allocation2 + $0x90] sm:$0xff] %v194
    %300 = vst [vmem:[#allocation2 + $0x98] sm:$0xff] %v235
    %301 = vst [vmem:[#allocation2 + $0xa0] sm:$0xff] %v276
    %302 = vst [vmem:[#allocation2 + $0xa8] sm:$0xff] %v197
    %303 = vst [vmem:[#allocation2 + $0xb0] sm:$0xff] %v238
    %304 = vst [vmem:[#allocation2 + $0xb8] sm:$0xff] %v279
    %v305 = vld [vmem:[#allocation7] sm:$0xff]
    %v306 = vld [vmem:[#allocation7 + $0x8] sm:$0xff]
    %v307 = vld [vmem:[#allocation7 + $0x10] sm:$0xff]
    %v308 = vld [vmem:[#allocation7 + $0x18] sm:$0xff]
    %v309 = vld [vmem:[#allocation7 + $0x20] sm:$0xff]
    %v310 = vld [vmem:[#allocation7 + $0x28] sm:$0xff]
    %v311 = vld [vmem:[#allocation7 + $0x30] sm:$0xff]
    %v312 = vld [vmem:[#allocation7 + $0x38] sm:$0xff]
    %v313 = vld [vmem:[#allocation7 + $0x40] sm:$0xff]
    %v314 = vld [vmem:[#allocation7 + $0x48] sm:$0xff]
    %v315 = vld [vmem:[#allocation7 + $0x50] sm:$0xff]
    %v316 = vld [vmem:[#allocation7 + $0x58] sm:$0xff]
    %v317 = vld [vmem:[#allocation7 + $0x60] sm:$0xff]
    %v318 = vld [vmem:[#allocation7 + $0x68] sm:$0xff]
    %v319 = vld [vmem:[#allocation7 + $0x70] sm:$0xff]
    %v320 = vld [vmem:[#allocation7 + $0x78] sm:$0xff]
    %v321 = vld [vmem:[#allocation7 + $0x80] sm:$0xff]
    %v322 = vld [vmem:[#allocation7 + $0x88] sm:$0xff]
    %v323 = vld [vmem:[#allocation7 + $0x90] sm:$0xff]
    %v324 = vld [vmem:[#allocation7 + $0x98] sm:$0xff]
    %v325 = vld [vmem:[#allocation7 + $0xa0] sm:$0xff]
    %v326 = vld [vmem:[#allocation7 + $0xa8] sm:$0xff]
    %v327 = vld [vmem:[#allocation7 + $0xb0] sm:$0xff]
    %v328 = vld [vmem:[#allocation7 + $0xb8] sm:$0xff]
    %v329 = vld [vmem:[#allocation7 + $0xc0] sm:$0xff]
    %v330 = vld [vmem:[#allocation7 + $0xc8] sm:$0xff]
    %v331 = vld [vmem:[#allocation7 + $0xd0] sm:$0xff]
    %v332 = vld [vmem:[#allocation7 + $0xd8] sm:$0xff]
    %v333 = vld [vmem:[#allocation7 + $0xe0] sm:$0xff]
    %v334 = vld [vmem:[#allocation7 + $0xe8] sm:$0xff]
    %v335 = vld [vmem:[#allocation7 + $0xf0] sm:$0xff]
    %v336 = vld [vmem:[#allocation7 + $0xf8] sm:$0xff]
    %v337 = vld [vmem:[#allocation7 + $0x100] sm:$0xff]
    %v338 = vld [vmem:[#allocation7 + $0x108] sm:$0xff]
    %v339 = vld [vmem:[#allocation7 + $0x110] sm:$0xff]
    %v340 = vld [vmem:[#allocation7 + $0x118] sm:$0xff]
    %v341 = vld [vmem:[#allocation7 + $0x120] sm:$0xff]
    %v342 = vld [vmem:[#allocation7 + $0x128] sm:$0xff]
    %v343 = vld [vmem:[#allocation7 + $0x130] sm:$0xff]
    %v344 = vld [vmem:[#allocation7 + $0x138] sm:$0xff]
    %v345 = vld [vmem:[#allocation7 + $0x140] sm:$0xff]
    %v346 = vld [vmem:[#allocation7 + $0x148] sm:$0xff]
    %v347 = vld [vmem:[#allocation7 + $0x150] sm:$0xff]
    %v348 = vld [vmem:[#allocation7 + $0x158] sm:$0xff]
    %v349 = vld [vmem:[#allocation7 + $0x160] sm:$0xff]
    %v350 = vld [vmem:[#allocation7 + $0x168] sm:$0xff]
    %v351 = vld [vmem:[#allocation7 + $0x170] sm:$0xff]
    %v352 = vld [vmem:[#allocation7 + $0x178] sm:$0xff]
    %v353 = vld [vmem:[#allocation10] sm:$0x7]
    %v354 = vld [vmem:[%s1] sm:$0xff]
    %v355 = vld [vmem:[#allocation2] sm:$0xff]
    %v356 = vld [vmem:[#allocation2 + $0x8] sm:$0xff]
    %v357 = vld [vmem:[#allocation2 + $0x10] sm:$0xff]
    %v359 = vperm.slane %v353, 0
    %v360 = vperm.slane %v353, 1
    %v361 = vperm.slane %v353, 2
    %365 = vmatpush.msra.mxu0 %v350
    %366 = vmatpush.msra.mxu0 %v347
    %367 = vmatpush.msra.mxu0 %v344
    %368 = vmatpush.msra.mxu0 %v341
    %369 = vmatpush.msra.mxu0 %v338
    %370 = vmatpush.msra.mxu0 %v335
    %371 = vmatpush.msra.mxu0 %v332
    %372 = vmatpush.msra.mxu0 %v329
    %373 = vmatpush.msra.mxu0 %v326
    %374 = vmatpush.msra.mxu0 %v323
    %375 = vmatpush.msra.mxu0 %v320
    %376 = vmatpush.msra.mxu0 %v317
    %377 = vmatpush.msra.mxu0 %v314
    %378 = vmatpush.msra.mxu0 %v311
    %379 = vmatpush.msra.mxu0 %v308
    %380 = vmatpush.msra.mxu0 %v305
    %381 = vmatmul.f32.gmra.mxu0 %v354
    %v382 = vpop.f32.mrf.mxu0
    %v383 = vadd.f32 %v359, %v382
    %384 = vdwg.mxu0
    %385 = vmatpush.msra.mxu0 %v351
    %386 = vmatpush.msra.mxu0 %v348
    %387 = vmatpush.msra.mxu0 %v345
    %388 = vmatpush.msra.mxu0 %v342
    %389 = vmatpush.msra.mxu0 %v339
    %390 = vmatpush.msra.mxu0 %v336
    %391 = vmatpush.msra.mxu0 %v333
    %392 = vmatpush.msra.mxu0 %v330
    %393 = vmatpush.msra.mxu0 %v327
    %394 = vmatpush.msra.mxu0 %v324
    %395 = vmatpush.msra.mxu0 %v321
    %396 = vmatpush.msra.mxu0 %v318
    %397 = vmatpush.msra.mxu0 %v315
    %398 = vmatpush.msra.mxu0 %v312
    %399 = vmatpush.msra.mxu0 %v309
    %400 = vmatpush.msra.mxu0 %v306
    %401 = vmatmul.f32.gmra.mxu0 %v354
    %v402 = vpop.f32.mrf.mxu0
    %v403 = vadd.f32 %v360, %v402
    %404 = vdwg.mxu0
    %405 = vmatpush.msra.mxu0 %v352
    %406 = vmatpush.msra.mxu0 %v349
    %407 = vmatpush.msra.mxu0 %v346
    %408 = vmatpush.msra.mxu0 %v343
    %409 = vmatpush.msra.mxu0 %v340
    %410 = vmatpush.msra.mxu0 %v337
    %411 = vmatpush.msra.mxu0 %v334
    %412 = vmatpush.msra.mxu0 %v331
    %413 = vmatpush.msra.mxu0 %v328
    %414 = vmatpush.msra.mxu0 %v325
    %415 = vmatpush.msra.mxu0 %v322
    %416 = vmatpush.msra.mxu0 %v319
    %417 = vmatpush.msra.mxu0 %v316
    %418 = vmatpush.msra.mxu0 %v313
    %419 = vmatpush.msra.mxu0 %v310
    %420 = vmatpush.msra.mxu0 %v307
    %421 = vmatmul.f32.gmra.mxu0 %v354
    %v422 = vpop.f32.mrf.mxu0
    %v423 = vadd.f32 %v361, %v422
    %424 = vdwg.mxu0
    %v425 = vadd.f32 %v355, %v383
    %v426 = vxor.u32 %v425, 2147483648
    %v427 = vmul.f32 %v426, 1.442695
    %v428 = vpow.pop %v427
    %v429 = vadd.f32 %v428, 1.0
    %v430 = vrcp.pop %v429
    %v431 = vmul.f32 %v429, %v430
    %v432 = vsub.f32 1.0, %v431
    %v433 = vmul.f32 %v430, %v432
    %v434 = vadd.f32 %v430, %v433
    %vm435 = vweird.f32 %v429
    %vm436 = vweird.f32 %v430
    %vm437 = vmor %vm435, %vm436
    %v438 = vsel %vm437, %v430, %v434
    %v439 = vand.u32 2147483647, %v429
    %vm440 = vcmp.eq.f32.partialorder %v439, 8.507059e+37
    %v441 = vand.u32 %v429, 2147483648
    %v442 = vor.u32 1.1754944e-38, %v441
    %v443 = vsel %vm440, %v442, %v438
    %v444 = vmul.f32 1.0, %v443
    %v445 = vadd.f32 %v356, %v403
    %v446 = vxor.u32 %v445, 2147483648
    %v447 = vmul.f32 %v446, 1.442695
    %v448 = vpow.pop %v447
    %v449 = vadd.f32 %v448, 1.0
    %v450 = vrcp.pop %v449
    %v451 = vmul.f32 %v449, %v450
    %v452 = vsub.f32 1.0, %v451
    %v453 = vmul.f32 %v450, %v452
    %v454 = vadd.f32 %v450, %v453
    %vm455 = vweird.f32 %v449
    %vm456 = vweird.f32 %v450
    %vm457 = vmor %vm455, %vm456
    %v458 = vsel %vm457, %v450, %v454
    %v459 = vand.u32 2147483647, %v449
    %vm460 = vcmp.eq.f32.partialorder %v459, 8.507059e+37
    %v461 = vand.u32 %v449, 2147483648
    %v462 = vor.u32 1.1754944e-38, %v461
    %v463 = vsel %vm460, %v462, %v458
    %v464 = vmul.f32 1.0, %v463
    %v465 = vmul.f32 %v444, %v423
    %v466 = vadd.f32 %v357, %v465
    %v467 = vtanh.pop %v466
    %v468 = vsub.f32 1.0, %v464
    %v469 = vmul.f32 %v468, %v467
    %v470 = vmul.f32 %v464, %v354
    %v471 = vadd.f32 %v469, %v470
    %472 = vst [vmem:[#allocation3] sm:$0xff] %v471
    %s473 = scalar_lea.vmem [#allocation2], 24
    %v474 = vld [vmem:[%s473] sm:$0xff]
    %v475 = vld [vmem:[%s473 + $0x8] sm:$0xff]
    %v476 = vld [vmem:[%s473 + $0x10] sm:$0xff]
    %477 = vmatpush.msra.mxu0 %v350
    %478 = vmatpush.msra.mxu0 %v347
    %479 = vmatpush.msra.mxu0 %v344
    %480 = vmatpush.msra.mxu0 %v341
    %481 = vmatpush.msra.mxu0 %v338
    %482 = vmatpush.msra.mxu0 %v335
    %483 = vmatpush.msra.mxu0 %v332
    %484 = vmatpush.msra.mxu0 %v329
    %485 = vmatpush.msra.mxu0 %v326
    %486 = vmatpush.msra.mxu0 %v323
    %487 = vmatpush.msra.mxu0 %v320
    %488 = vmatpush.msra.mxu0 %v317
    %489 = vmatpush.msra.mxu0 %v314
    %490 = vmatpush.msra.mxu0 %v311
    %491 = vmatpush.msra.mxu0 %v308
    %492 = vmatpush.msra.mxu0 %v305
    %493 = vmatmul.f32.gmra.mxu0 %v471
    %v494 = vpop.f32.mrf.mxu0
    %v495 = vadd.f32 %v359, %v494
    %496 = vdwg.mxu0
    %497 = vmatpush.msra.mxu0 %v351
    %498 = vmatpush.msra.mxu0 %v348
    %499 = vmatpush.msra.mxu0 %v345
    %500 = vmatpush.msra.mxu0 %v342
    %501 = vmatpush.msra.mxu0 %v339
    %502 = vmatpush.msra.mxu0 %v336
    %503 = vmatpush.msra.mxu0 %v333
    %504 = vmatpush.msra.mxu0 %v330
    %505 = vmatpush.msra.mxu0 %v327
    %506 = vmatpush.msra.mxu0 %v324
    %507 = vmatpush.msra.mxu0 %v321
    %508 = vmatpush.msra.mxu0 %v318
    %509 = vmatpush.msra.mxu0 %v315
    %510 = vmatpush.msra.mxu0 %v312
    %511 = vmatpush.msra.mxu0 %v309
    %512 = vmatpush.msra.mxu0 %v306
    %513 = vmatmul.f32.gmra.mxu0 %v471
    %v514 = vpop.f32.mrf.mxu0
    %v515 = vadd.f32 %v360, %v514
    %516 = vdwg.mxu0
    %517 = vmatpush.msra.mxu0 %v352
    %518 = vmatpush.msra.mxu0 %v349
    %519 = vmatpush.msra.mxu0 %v346
    %520 = vmatpush.msra.mxu0 %v343
    %521 = vmatpush.msra.mxu0 %v340
    %522 = vmatpush.msra.mxu0 %v337
    %523 = vmatpush.msra.mxu0 %v334
    %524 = vmatpush.msra.mxu0 %v331
    %525 = vmatpush.msra.mxu0 %v328
    %526 = vmatpush.msra.mxu0 %v325
    %527 = vmatpush.msra.mxu0 %v322
    %528 = vmatpush.msra.mxu0 %v319
    %529 = vmatpush.msra.mxu0 %v316
    %530 = vmatpush.msra.mxu0 %v313
    %531 = vmatpush.msra.mxu0 %v310
    %532 = vmatpush.msra.mxu0 %v307
    %533 = vmatmul.f32.gmra.mxu0 %v471
    %v534 = vpop.f32.mrf.mxu0
    %v535 = vadd.f32 %v361, %v534
    %536 = vdwg.mxu0
    %v537 = vadd.f32 %v474, %v495
    %v538 = vxor.u32 %v537, 2147483648
    %v539 = vmul.f32 %v538, 1.442695
    %v540 = vpow.pop %v539
    %v541 = vadd.f32 %v540, 1.0
    %v542 = vrcp.pop %v541
    %v543 = vmul.f32 %v541, %v542
    %v544 = vsub.f32 1.0, %v543
    %v545 = vmul.f32 %v542, %v544
    %v546 = vadd.f32 %v542, %v545
    %vm547 = vweird.f32 %v541
    %vm548 = vweird.f32 %v542
    %vm549 = vmor %vm547, %vm548
    %v550 = vsel %vm549, %v542, %v546
    %v551 = vand.u32 2147483647, %v541
    %vm552 = vcmp.eq.f32.partialorder %v551, 8.507059e+37
    %v553 = vand.u32 %v541, 2147483648
    %v554 = vor.u32 1.1754944e-38, %v553
    %v555 = vsel %vm552, %v554, %v550
    %v556 = vmul.f32 1.0, %v555
    %v557 = vadd.f32 %v475, %v515
    %v558 = vxor.u32 %v557, 2147483648
    %v559 = vmul.f32 %v558, 1.442695
    %v560 = vpow.pop %v559
    %v561 = vadd.f32 %v560, 1.0
    %v562 = vrcp.pop %v561
    %v563 = vmul.f32 %v561, %v562
    %v564 = vsub.f32 1.0, %v563
    %v565 = vmul.f32 %v562, %v564
    %v566 = vadd.f32 %v562, %v565
    %vm567 = vweird.f32 %v561
    %vm568 = vweird.f32 %v562
    %vm569 = vmor %vm567, %vm568
    %v570 = vsel %vm569, %v562, %v566
    %v571 = vand.u32 2147483647, %v561
    %vm572 = vcmp.eq.f32.partialorder %v571, 8.507059e+37
    %v573 = vand.u32 %v561, 2147483648
    %v574 = vor.u32 1.1754944e-38, %v573
    %v575 = vsel %vm572, %v574, %v570
    %v576 = vmul.f32 1.0, %v575
    %v577 = vmul.f32 %v556, %v535
    %v578 = vadd.f32 %v476, %v577
    %v579 = vtanh.pop %v578
    %v580 = vsub.f32 1.0, %v576
    %v581 = vmul.f32 %v580, %v579
    %v582 = vmul.f32 %v576, %v471
    %v583 = vadd.f32 %v581, %v582
    %s584 = scalar_lea.vmem [#allocation3], 8
    %585 = vst [vmem:[%s584] sm:$0xff] %v583
    %s586 = scalar_lea.vmem [#allocation2], 48
    %v587 = vld [vmem:[%s586] sm:$0xff]
    %v588 = vld [vmem:[%s586 + $0x8] sm:$0xff]
    %v589 = vld [vmem:[%s586 + $0x10] sm:$0xff]
    %590 = vmatpush.msra.mxu0 %v350
    %591 = vmatpush.msra.mxu0 %v347
    %592 = vmatpush.msra.mxu0 %v344
    %593 = vmatpush.msra.mxu0 %v341
    %594 = vmatpush.msra.mxu0 %v338
    %595 = vmatpush.msra.mxu0 %v335
    %596 = vmatpush.msra.mxu0 %v332
    %597 = vmatpush.msra.mxu0 %v329
    %598 = vmatpush.msra.mxu0 %v326
    %599 = vmatpush.msra.mxu0 %v323
    %600 = vmatpush.msra.mxu0 %v320
    %601 = vmatpush.msra.mxu0 %v317
    %602 = vmatpush.msra.mxu0 %v314
    %603 = vmatpush.msra.mxu0 %v311
    %604 = vmatpush.msra.mxu0 %v308
    %605 = vmatpush.msra.mxu0 %v305
    %606 = vmatmul.f32.gmra.mxu0 %v583
    %v607 = vpop.f32.mrf.mxu0
    %v608 = vadd.f32 %v359, %v607
    %609 = vdwg.mxu0
    %610 = vmatpush.msra.mxu0 %v351
    %611 = vmatpush.msra.mxu0 %v348
    %612 = vmatpush.msra.mxu0 %v345
    %613 = vmatpush.msra.mxu0 %v342
    %614 = vmatpush.msra.mxu0 %v339
    %615 = vmatpush.msra.mxu0 %v336
    %616 = vmatpush.msra.mxu0 %v333
    %617 = vmatpush.msra.mxu0 %v330
    %618 = vmatpush.msra.mxu0 %v327
    %619 = vmatpush.msra.mxu0 %v324
    %620 = vmatpush.msra.mxu0 %v321
    %621 = vmatpush.msra.mxu0 %v318
    %622 = vmatpush.msra.mxu0 %v315
    %623 = vmatpush.msra.mxu0 %v312
    %624 = vmatpush.msra.mxu0 %v309
    %625 = vmatpush.msra.mxu0 %v306
    %626 = vmatmul.f32.gmra.mxu0 %v583
    %v627 = vpop.f32.mrf.mxu0
    %v628 = vadd.f32 %v360, %v627
    %629 = vdwg.mxu0
    %630 = vmatpush.msra.mxu0 %v352
    %631 = vmatpush.msra.mxu0 %v349
    %632 = vmatpush.msra.mxu0 %v346
    %633 = vmatpush.msra.mxu0 %v343
    %634 = vmatpush.msra.mxu0 %v340
    %635 = vmatpush.msra.mxu0 %v337
    %636 = vmatpush.msra.mxu0 %v334
    %637 = vmatpush.msra.mxu0 %v331
    %638 = vmatpush.msra.mxu0 %v328
    %639 = vmatpush.msra.mxu0 %v325
    %640 = vmatpush.msra.mxu0 %v322
    %641 = vmatpush.msra.mxu0 %v319
    %642 = vmatpush.msra.mxu0 %v316
    %643 = vmatpush.msra.mxu0 %v313
    %644 = vmatpush.msra.mxu0 %v310
    %645 = vmatpush.msra.mxu0 %v307
    %646 = vmatmul.f32.gmra.mxu0 %v583
    %v647 = vpop.f32.mrf.mxu0
    %v648 = vadd.f32 %v361, %v647
    %649 = vdwg.mxu0
    %v650 = vadd.f32 %v587, %v608
    %v651 = vxor.u32 %v650, 2147483648
    %v652 = vmul.f32 %v651, 1.442695
    %v653 = vpow.pop %v652
    %v654 = vadd.f32 %v653, 1.0
    %v655 = vrcp.pop %v654
    %v656 = vmul.f32 %v654, %v655
    %v657 = vsub.f32 1.0, %v656
    %v658 = vmul.f32 %v655, %v657
    %v659 = vadd.f32 %v655, %v658
    %vm660 = vweird.f32 %v654
    %vm661 = vweird.f32 %v655
    %vm662 = vmor %vm660, %vm661
    %v663 = vsel %vm662, %v655, %v659
    %v664 = vand.u32 2147483647, %v654
    %vm665 = vcmp.eq.f32.partialorder %v664, 8.507059e+37
    %v666 = vand.u32 %v654, 2147483648
    %v667 = vor.u32 1.1754944e-38, %v666
    %v668 = vsel %vm665, %v667, %v663
    %v669 = vmul.f32 1.0, %v668
    %v670 = vadd.f32 %v588, %v628
    %v671 = vxor.u32 %v670, 2147483648
    %v672 = vmul.f32 %v671, 1.442695
    %v673 = vpow.pop %v672
    %v674 = vadd.f32 %v673, 1.0
    %v675 = vrcp.pop %v674
    %v676 = vmul.f32 %v674, %v675
    %v677 = vsub.f32 1.0, %v676
    %v678 = vmul.f32 %v675, %v677
    %v679 = vadd.f32 %v675, %v678
    %vm680 = vweird.f32 %v674
    %vm681 = vweird.f32 %v675
    %vm682 = vmor %vm680, %vm681
    %v683 = vsel %vm682, %v675, %v679
    %v684 = vand.u32 2147483647, %v674
    %vm685 = vcmp.eq.f32.partialorder %v684, 8.507059e+37
    %v686 = vand.u32 %v674, 2147483648
    %v687 = vor.u32 1.1754944e-38, %v686
    %v688 = vsel %vm685, %v687, %v683
    %v689 = vmul.f32 1.0, %v688
    %v690 = vmul.f32 %v669, %v648
    %v691 = vadd.f32 %v589, %v690
    %v692 = vtanh.pop %v691
    %v693 = vsub.f32 1.0, %v689
    %v694 = vmul.f32 %v693, %v692
    %v695 = vmul.f32 %v689, %v583
    %v696 = vadd.f32 %v694, %v695
    %s697 = scalar_lea.vmem [#allocation3], 16
    %698 = vst [vmem:[%s697] sm:$0xff] %v696
    %s699 = scalar_lea.vmem [#allocation2], 72
    %v700 = vld [vmem:[%s699] sm:$0xff]
    %v701 = vld [vmem:[%s699 + $0x8] sm:$0xff]
    %v702 = vld [vmem:[%s699 + $0x10] sm:$0xff]
    %703 = vmatpush.msra.mxu0 %v350
    %704 = vmatpush.msra.mxu0 %v347
    %705 = vmatpush.msra.mxu0 %v344
    %706 = vmatpush.msra.mxu0 %v341
    %707 = vmatpush.msra.mxu0 %v338
    %708 = vmatpush.msra.mxu0 %v335
    %709 = vmatpush.msra.mxu0 %v332
    %710 = vmatpush.msra.mxu0 %v329
    %711 = vmatpush.msra.mxu0 %v326
    %712 = vmatpush.msra.mxu0 %v323
    %713 = vmatpush.msra.mxu0 %v320
    %714 = vmatpush.msra.mxu0 %v317
    %715 = vmatpush.msra.mxu0 %v314
    %716 = vmatpush.msra.mxu0 %v311
    %717 = vmatpush.msra.mxu0 %v308
    %718 = vmatpush.msra.mxu0 %v305
    %719 = vmatmul.f32.gmra.mxu0 %v696
    %v720 = vpop.f32.mrf.mxu0
    %v721 = vadd.f32 %v359, %v720
    %722 = vdwg.mxu0
    %723 = vmatpush.msra.mxu0 %v351
    %724 = vmatpush.msra.mxu0 %v348
    %725 = vmatpush.msra.mxu0 %v345
    %726 = vmatpush.msra.mxu0 %v342
    %727 = vmatpush.msra.mxu0 %v339
    %728 = vmatpush.msra.mxu0 %v336
    %729 = vmatpush.msra.mxu0 %v333
    %730 = vmatpush.msra.mxu0 %v330
    %731 = vmatpush.msra.mxu0 %v327
    %732 = vmatpush.msra.mxu0 %v324
    %733 = vmatpush.msra.mxu0 %v321
    %734 = vmatpush.msra.mxu0 %v318
    %735 = vmatpush.msra.mxu0 %v315
    %736 = vmatpush.msra.mxu0 %v312
    %737 = vmatpush.msra.mxu0 %v309
    %738 = vmatpush.msra.mxu0 %v306
    %739 = vmatmul.f32.gmra.mxu0 %v696
    %v740 = vpop.f32.mrf.mxu0
    %v741 = vadd.f32 %v360, %v740
    %742 = vdwg.mxu0
    %743 = vmatpush.msra.mxu0 %v352
    %744 = vmatpush.msra.mxu0 %v349
    %745 = vmatpush.msra.mxu0 %v346
    %746 = vmatpush.msra.mxu0 %v343
    %747 = vmatpush.msra.mxu0 %v340
    %748 = vmatpush.msra.mxu0 %v337
    %749 = vmatpush.msra.mxu0 %v334
    %750 = vmatpush.msra.mxu0 %v331
    %751 = vmatpush.msra.mxu0 %v328
    %752 = vmatpush.msra.mxu0 %v325
    %753 = vmatpush.msra.mxu0 %v322
    %754 = vmatpush.msra.mxu0 %v319
    %755 = vmatpush.msra.mxu0 %v316
    %756 = vmatpush.msra.mxu0 %v313
    %757 = vmatpush.msra.mxu0 %v310
    %758 = vmatpush.msra.mxu0 %v307
    %759 = vmatmul.f32.gmra.mxu0 %v696
    %v760 = vpop.f32.mrf.mxu0
    %v761 = vadd.f32 %v361, %v760
    %762 = vdwg.mxu0
    %v763 = vadd.f32 %v700, %v721
    %v764 = vxor.u32 %v763, 2147483648
    %v765 = vmul.f32 %v764, 1.442695
    %v766 = vpow.pop %v765
    %v767 = vadd.f32 %v766, 1.0
    %v768 = vrcp.pop %v767
    %v769 = vmul.f32 %v767, %v768
    %v770 = vsub.f32 1.0, %v769
    %v771 = vmul.f32 %v768, %v770
    %v772 = vadd.f32 %v768, %v771
    %vm773 = vweird.f32 %v767
    %vm774 = vweird.f32 %v768
    %vm775 = vmor %vm773, %vm774
    %v776 = vsel %vm775, %v768, %v772
    %v777 = vand.u32 2147483647, %v767
    %vm778 = vcmp.eq.f32.partialorder %v777, 8.507059e+37
    %v779 = vand.u32 %v767, 2147483648
    %v780 = vor.u32 1.1754944e-38, %v779
    %v781 = vsel %vm778, %v780, %v776
    %v782 = vmul.f32 1.0, %v781
    %v783 = vadd.f32 %v701, %v741
    %v784 = vxor.u32 %v783, 2147483648
    %v785 = vmul.f32 %v784, 1.442695
    %v786 = vpow.pop %v785
    %v787 = vadd.f32 %v786, 1.0
    %v788 = vrcp.pop %v787
    %v789 = vmul.f32 %v787, %v788
    %v790 = vsub.f32 1.0, %v789
    %v791 = vmul.f32 %v788, %v790
    %v792 = vadd.f32 %v788, %v791
    %vm793 = vweird.f32 %v787
    %vm794 = vweird.f32 %v788
    %vm795 = vmor %vm793, %vm794
    %v796 = vsel %vm795, %v788, %v792
    %v797 = vand.u32 2147483647, %v787
    %vm798 = vcmp.eq.f32.partialorder %v797, 8.507059e+37
    %v799 = vand.u32 %v787, 2147483648
    %v800 = vor.u32 1.1754944e-38, %v799
    %v801 = vsel %vm798, %v800, %v796
    %v802 = vmul.f32 1.0, %v801
    %v803 = vmul.f32 %v782, %v761
    %v804 = vadd.f32 %v702, %v803
    %v805 = vtanh.pop %v804
    %v806 = vsub.f32 1.0, %v802
    %v807 = vmul.f32 %v806, %v805
    %v808 = vmul.f32 %v802, %v696
    %v809 = vadd.f32 %v807, %v808
    %s810 = scalar_lea.vmem [#allocation3], 24
    %811 = vst [vmem:[%s810] sm:$0xff] %v809
    %s812 = scalar_lea.vmem [#allocation2], 96
    %v813 = vld [vmem:[%s812] sm:$0xff]
    %v814 = vld [vmem:[%s812 + $0x8] sm:$0xff]
    %v815 = vld [vmem:[%s812 + $0x10] sm:$0xff]
    %816 = vmatpush.msra.mxu0 %v350
    %817 = vmatpush.msra.mxu0 %v347
    %818 = vmatpush.msra.mxu0 %v344
    %819 = vmatpush.msra.mxu0 %v341
    %820 = vmatpush.msra.mxu0 %v338
    %821 = vmatpush.msra.mxu0 %v335
    %822 = vmatpush.msra.mxu0 %v332
    %823 = vmatpush.msra.mxu0 %v329
    %824 = vmatpush.msra.mxu0 %v326
    %825 = vmatpush.msra.mxu0 %v323
    %826 = vmatpush.msra.mxu0 %v320
    %827 = vmatpush.msra.mxu0 %v317
    %828 = vmatpush.msra.mxu0 %v314
    %829 = vmatpush.msra.mxu0 %v311
    %830 = vmatpush.msra.mxu0 %v308
    %831 = vmatpush.msra.mxu0 %v305
    %832 = vmatmul.f32.gmra.mxu0 %v809
    %v833 = vpop.f32.mrf.mxu0
    %v834 = vadd.f32 %v359, %v833
    %835 = vdwg.mxu0
    %836 = vmatpush.msra.mxu0 %v351
    %837 = vmatpush.msra.mxu0 %v348
    %838 = vmatpush.msra.mxu0 %v345
    %839 = vmatpush.msra.mxu0 %v342
    %840 = vmatpush.msra.mxu0 %v339
    %841 = vmatpush.msra.mxu0 %v336
    %842 = vmatpush.msra.mxu0 %v333
    %843 = vmatpush.msra.mxu0 %v330
    %844 = vmatpush.msra.mxu0 %v327
    %845 = vmatpush.msra.mxu0 %v324
    %846 = vmatpush.msra.mxu0 %v321
    %847 = vmatpush.msra.mxu0 %v318
    %848 = vmatpush.msra.mxu0 %v315
    %849 = vmatpush.msra.mxu0 %v312
    %850 = vmatpush.msra.mxu0 %v309
    %851 = vmatpush.msra.mxu0 %v306
    %852 = vmatmul.f32.gmra.mxu0 %v809
    %v853 = vpop.f32.mrf.mxu0
    %v854 = vadd.f32 %v360, %v853
    %855 = vdwg.mxu0
    %856 = vmatpush.msra.mxu0 %v352
    %857 = vmatpush.msra.mxu0 %v349
    %858 = vmatpush.msra.mxu0 %v346
    %859 = vmatpush.msra.mxu0 %v343
    %860 = vmatpush.msra.mxu0 %v340
    %861 = vmatpush.msra.mxu0 %v337
    %862 = vmatpush.msra.mxu0 %v334
    %863 = vmatpush.msra.mxu0 %v331
    %864 = vmatpush.msra.mxu0 %v328
    %865 = vmatpush.msra.mxu0 %v325
    %866 = vmatpush.msra.mxu0 %v322
    %867 = vmatpush.msra.mxu0 %v319
    %868 = vmatpush.msra.mxu0 %v316
    %869 = vmatpush.msra.mxu0 %v313
    %870 = vmatpush.msra.mxu0 %v310
    %871 = vmatpush.msra.mxu0 %v307
    %872 = vmatmul.f32.gmra.mxu0 %v809
    %v873 = vpop.f32.mrf.mxu0
    %v874 = vadd.f32 %v361, %v873
    %875 = vdwg.mxu0
    %v876 = vadd.f32 %v813, %v834
    %v877 = vxor.u32 %v876, 2147483648
    %v878 = vmul.f32 %v877, 1.442695
    %v879 = vpow.pop %v878
    %v880 = vadd.f32 %v879, 1.0
    %v881 = vrcp.pop %v880
    %v882 = vmul.f32 %v880, %v881
    %v883 = vsub.f32 1.0, %v882
    %v884 = vmul.f32 %v881, %v883
    %v885 = vadd.f32 %v881, %v884
    %vm886 = vweird.f32 %v880
    %vm887 = vweird.f32 %v881
    %vm888 = vmor %vm886, %vm887
    %v889 = vsel %vm888, %v881, %v885
    %v890 = vand.u32 2147483647, %v880
    %vm891 = vcmp.eq.f32.partialorder %v890, 8.507059e+37
    %v892 = vand.u32 %v880, 2147483648
    %v893 = vor.u32 1.1754944e-38, %v892
    %v894 = vsel %vm891, %v893, %v889
    %v895 = vmul.f32 1.0, %v894
    %v896 = vadd.f32 %v814, %v854
    %v897 = vxor.u32 %v896, 2147483648
    %v898 = vmul.f32 %v897, 1.442695
    %v899 = vpow.pop %v898
    %v900 = vadd.f32 %v899, 1.0
    %v901 = vrcp.pop %v900
    %v902 = vmul.f32 %v900, %v901
    %v903 = vsub.f32 1.0, %v902
    %v904 = vmul.f32 %v901, %v903
    %v905 = vadd.f32 %v901, %v904
    %vm906 = vweird.f32 %v900
    %vm907 = vweird.f32 %v901
    %vm908 = vmor %vm906, %vm907
    %v909 = vsel %vm908, %v901, %v905
    %v910 = vand.u32 2147483647, %v900
    %vm911 = vcmp.eq.f32.partialorder %v910, 8.507059e+37
    %v912 = vand.u32 %v900, 2147483648
    %v913 = vor.u32 1.1754944e-38, %v912
    %v914 = vsel %vm911, %v913, %v909
    %v915 = vmul.f32 1.0, %v914
    %v916 = vmul.f32 %v895, %v874
    %v917 = vadd.f32 %v815, %v916
    %v918 = vtanh.pop %v917
    %v919 = vsub.f32 1.0, %v915
    %v920 = vmul.f32 %v919, %v918
    %v921 = vmul.f32 %v915, %v809
    %v922 = vadd.f32 %v920, %v921
    %s923 = scalar_lea.vmem [#allocation3], 32
    %924 = vst [vmem:[%s923] sm:$0xff] %v922
    %s925 = scalar_lea.vmem [#allocation2], 120
    %v926 = vld [vmem:[%s925] sm:$0xff]
    %v927 = vld [vmem:[%s925 + $0x8] sm:$0xff]
    %v928 = vld [vmem:[%s925 + $0x10] sm:$0xff]
    %929 = vmatpush.msra.mxu0 %v350
    %930 = vmatpush.msra.mxu0 %v347
    %931 = vmatpush.msra.mxu0 %v344
    %932 = vmatpush.msra.mxu0 %v341
    %933 = vmatpush.msra.mxu0 %v338
    %934 = vmatpush.msra.mxu0 %v335
    %935 = vmatpush.msra.mxu0 %v332
    %936 = vmatpush.msra.mxu0 %v329
    %937 = vmatpush.msra.mxu0 %v326
    %938 = vmatpush.msra.mxu0 %v323
    %939 = vmatpush.msra.mxu0 %v320
    %940 = vmatpush.msra.mxu0 %v317
    %941 = vmatpush.msra.mxu0 %v314
    %942 = vmatpush.msra.mxu0 %v311
    %943 = vmatpush.msra.mxu0 %v308
    %944 = vmatpush.msra.mxu0 %v305
    %945 = vmatmul.f32.gmra.mxu0 %v922
    %v946 = vpop.f32.mrf.mxu0
    %v947 = vadd.f32 %v359, %v946
    %948 = vdwg.mxu0
    %949 = vmatpush.msra.mxu0 %v351
    %950 = vmatpush.msra.mxu0 %v348
    %951 = vmatpush.msra.mxu0 %v345
    %952 = vmatpush.msra.mxu0 %v342
    %953 = vmatpush.msra.mxu0 %v339
    %954 = vmatpush.msra.mxu0 %v336
    %955 = vmatpush.msra.mxu0 %v333
    %956 = vmatpush.msra.mxu0 %v330
    %957 = vmatpush.msra.mxu0 %v327
    %958 = vmatpush.msra.mxu0 %v324
    %959 = vmatpush.msra.mxu0 %v321
    %960 = vmatpush.msra.mxu0 %v318
    %961 = vmatpush.msra.mxu0 %v315
    %962 = vmatpush.msra.mxu0 %v312
    %963 = vmatpush.msra.mxu0 %v309
    %964 = vmatpush.msra.mxu0 %v306
    %965 = vmatmul.f32.gmra.mxu0 %v922
    %v966 = vpop.f32.mrf.mxu0
    %v967 = vadd.f32 %v360, %v966
    %968 = vdwg.mxu0
    %969 = vmatpush.msra.mxu0 %v352
    %970 = vmatpush.msra.mxu0 %v349
    %971 = vmatpush.msra.mxu0 %v346
    %972 = vmatpush.msra.mxu0 %v343
    %973 = vmatpush.msra.mxu0 %v340
    %974 = vmatpush.msra.mxu0 %v337
    %975 = vmatpush.msra.mxu0 %v334
    %976 = vmatpush.msra.mxu0 %v331
    %977 = vmatpush.msra.mxu0 %v328
    %978 = vmatpush.msra.mxu0 %v325
    %979 = vmatpush.msra.mxu0 %v322
    %980 = vmatpush.msra.mxu0 %v319
    %981 = vmatpush.msra.mxu0 %v316
    %982 = vmatpush.msra.mxu0 %v313
    %983 = vmatpush.msra.mxu0 %v310
    %984 = vmatpush.msra.mxu0 %v307
    %985 = vmatmul.f32.gmra.mxu0 %v922
    %v986 = vpop.f32.mrf.mxu0
    %v987 = vadd.f32 %v361, %v986
    %988 = vdwg.mxu0
    %v989 = vadd.f32 %v926, %v947
    %v990 = vxor.u32 %v989, 2147483648
    %v991 = vmul.f32 %v990, 1.442695
    %v992 = vpow.pop %v991
    %v993 = vadd.f32 %v992, 1.0
    %v994 = vrcp.pop %v993
    %v995 = vmul.f32 %v993, %v994
    %v996 = vsub.f32 1.0, %v995
    %v997 = vmul.f32 %v994, %v996
    %v998 = vadd.f32 %v994, %v997
    %vm999 = vweird.f32 %v993
    %vm1000 = vweird.f32 %v994
    %vm1001 = vmor %vm999, %vm1000
    %v1002 = vsel %vm1001, %v994, %v998
    %v1003 = vand.u32 2147483647, %v993
    %vm1004 = vcmp.eq.f32.partialorder %v1003, 8.507059e+37
    %v1005 = vand.u32 %v993, 2147483648
    %v1006 = vor.u32 1.1754944e-38, %v1005
    %v1007 = vsel %vm1004, %v1006, %v1002
    %v1008 = vmul.f32 1.0, %v1007
    %v1009 = vadd.f32 %v927, %v967
    %v1010 = vxor.u32 %v1009, 2147483648
    %v1011 = vmul.f32 %v1010, 1.442695
    %v1012 = vpow.pop %v1011
    %v1013 = vadd.f32 %v1012, 1.0
    %v1014 = vrcp.pop %v1013
    %v1015 = vmul.f32 %v1013, %v1014
    %v1016 = vsub.f32 1.0, %v1015
    %v1017 = vmul.f32 %v1014, %v1016
    %v1018 = vadd.f32 %v1014, %v1017
    %vm1019 = vweird.f32 %v1013
    %vm1020 = vweird.f32 %v1014
    %vm1021 = vmor %vm1019, %vm1020
    %v1022 = vsel %vm1021, %v1014, %v1018
    %v1023 = vand.u32 2147483647, %v1013
    %vm1024 = vcmp.eq.f32.partialorder %v1023, 8.507059e+37
    %v1025 = vand.u32 %v1013, 2147483648
    %v1026 = vor.u32 1.1754944e-38, %v1025
    %v1027 = vsel %vm1024, %v1026, %v1022
    %v1028 = vmul.f32 1.0, %v1027
    %v1029 = vmul.f32 %v1008, %v987
    %v1030 = vadd.f32 %v928, %v1029
    %v1031 = vtanh.pop %v1030
    %v1032 = vsub.f32 1.0, %v1028
    %v1033 = vmul.f32 %v1032, %v1031
    %v1034 = vmul.f32 %v1028, %v922
    %v1035 = vadd.f32 %v1033, %v1034
    %s1036 = scalar_lea.vmem [#allocation3], 40
    %1037 = vst [vmem:[%s1036] sm:$0xff] %v1035
    %s1038 = scalar_lea.vmem [#allocation2], 144
    %v1039 = vld [vmem:[%s1038] sm:$0xff]
    %v1040 = vld [vmem:[%s1038 + $0x8] sm:$0xff]
    %v1041 = vld [vmem:[%s1038 + $0x10] sm:$0xff]
    %1042 = vmatpush.msra.mxu0 %v350
    %1043 = vmatpush.msra.mxu0 %v347
    %1044 = vmatpush.msra.mxu0 %v344
    %1045 = vmatpush.msra.mxu0 %v341
    %1046 = vmatpush.msra.mxu0 %v338
    %1047 = vmatpush.msra.mxu0 %v335
    %1048 = vmatpush.msra.mxu0 %v332
    %1049 = vmatpush.msra.mxu0 %v329
    %1050 = vmatpush.msra.mxu0 %v326
    %1051 = vmatpush.msra.mxu0 %v323
    %1052 = vmatpush.msra.mxu0 %v320
    %1053 = vmatpush.msra.mxu0 %v317
    %1054 = vmatpush.msra.mxu0 %v314
    %1055 = vmatpush.msra.mxu0 %v311
    %1056 = vmatpush.msra.mxu0 %v308
    %1057 = vmatpush.msra.mxu0 %v305
    %1058 = vmatmul.f32.gmra.mxu0 %v1035
    %v1059 = vpop.f32.mrf.mxu0
    %v1060 = vadd.f32 %v359, %v1059
    %1061 = vdwg.mxu0
    %1062 = vmatpush.msra.mxu0 %v351
    %1063 = vmatpush.msra.mxu0 %v348
    %1064 = vmatpush.msra.mxu0 %v345
    %1065 = vmatpush.msra.mxu0 %v342
    %1066 = vmatpush.msra.mxu0 %v339
    %1067 = vmatpush.msra.mxu0 %v336
    %1068 = vmatpush.msra.mxu0 %v333
    %1069 = vmatpush.msra.mxu0 %v330
    %1070 = vmatpush.msra.mxu0 %v327
    %1071 = vmatpush.msra.mxu0 %v324
    %1072 = vmatpush.msra.mxu0 %v321
    %1073 = vmatpush.msra.mxu0 %v318
    %1074 = vmatpush.msra.mxu0 %v315
    %1075 = vmatpush.msra.mxu0 %v312
    %1076 = vmatpush.msra.mxu0 %v309
    %1077 = vmatpush.msra.mxu0 %v306
    %1078 = vmatmul.f32.gmra.mxu0 %v1035
    %v1079 = vpop.f32.mrf.mxu0
    %v1080 = vadd.f32 %v360, %v1079
    %1081 = vdwg.mxu0
    %1082 = vmatpush.msra.mxu0 %v352
    %1083 = vmatpush.msra.mxu0 %v349
    %1084 = vmatpush.msra.mxu0 %v346
    %1085 = vmatpush.msra.mxu0 %v343
    %1086 = vmatpush.msra.mxu0 %v340
    %1087 = vmatpush.msra.mxu0 %v337
    %1088 = vmatpush.msra.mxu0 %v334
    %1089 = vmatpush.msra.mxu0 %v331
    %1090 = vmatpush.msra.mxu0 %v328
    %1091 = vmatpush.msra.mxu0 %v325
    %1092 = vmatpush.msra.mxu0 %v322
    %1093 = vmatpush.msra.mxu0 %v319
    %1094 = vmatpush.msra.mxu0 %v316
    %1095 = vmatpush.msra.mxu0 %v313
    %1096 = vmatpush.msra.mxu0 %v310
    %1097 = vmatpush.msra.mxu0 %v307
    %1098 = vmatmul.f32.gmra.mxu0 %v1035
    %v1099 = vpop.f32.mrf.mxu0
    %v1100 = vadd.f32 %v361, %v1099
    %1101 = vdwg.mxu0
    %v1102 = vadd.f32 %v1039, %v1060
    %v1103 = vxor.u32 %v1102, 2147483648
    %v1104 = vmul.f32 %v1103, 1.442695
    %v1105 = vpow.pop %v1104
    %v1106 = vadd.f32 %v1105, 1.0
    %v1107 = vrcp.pop %v1106
    %v1108 = vmul.f32 %v1106, %v1107
    %v1109 = vsub.f32 1.0, %v1108
    %v1110 = vmul.f32 %v1107, %v1109
    %v1111 = vadd.f32 %v1107, %v1110
    %vm1112 = vweird.f32 %v1106
    %vm1113 = vweird.f32 %v1107
    %vm1114 = vmor %vm1112, %vm1113
    %v1115 = vsel %vm1114, %v1107, %v1111
    %v1116 = vand.u32 2147483647, %v1106
    %vm1117 = vcmp.eq.f32.partialorder %v1116, 8.507059e+37
    %v1118 = vand.u32 %v1106, 2147483648
    %v1119 = vor.u32 1.1754944e-38, %v1118
    %v1120 = vsel %vm1117, %v1119, %v1115
    %v1121 = vmul.f32 1.0, %v1120
    %v1122 = vadd.f32 %v1040, %v1080
    %v1123 = vxor.u32 %v1122, 2147483648
    %v1124 = vmul.f32 %v1123, 1.442695
    %v1125 = vpow.pop %v1124
    %v1126 = vadd.f32 %v1125, 1.0
    %v1127 = vrcp.pop %v1126
    %v1128 = vmul.f32 %v1126, %v1127
    %v1129 = vsub.f32 1.0, %v1128
    %v1130 = vmul.f32 %v1127, %v1129
    %v1131 = vadd.f32 %v1127, %v1130
    %vm1132 = vweird.f32 %v1126
    %vm1133 = vweird.f32 %v1127
    %vm1134 = vmor %vm1132, %vm1133
    %v1135 = vsel %vm1134, %v1127, %v1131
    %v1136 = vand.u32 2147483647, %v1126
    %vm1137 = vcmp.eq.f32.partialorder %v1136, 8.507059e+37
    %v1138 = vand.u32 %v1126, 2147483648
    %v1139 = vor.u32 1.1754944e-38, %v1138
    %v1140 = vsel %vm1137, %v1139, %v1135
    %v1141 = vmul.f32 1.0, %v1140
    %v1142 = vmul.f32 %v1121, %v1100
    %v1143 = vadd.f32 %v1041, %v1142
    %v1144 = vtanh.pop %v1143
    %v1145 = vsub.f32 1.0, %v1141
    %v1146 = vmul.f32 %v1145, %v1144
    %v1147 = vmul.f32 %v1141, %v1035
    %v1148 = vadd.f32 %v1146, %v1147
    %s1149 = scalar_lea.vmem [#allocation3], 48
    %1150 = vst [vmem:[%s1149] sm:$0xff] %v1148
    %s1151 = scalar_lea.vmem [#allocation2], 168
    %v1152 = vld [vmem:[%s1151] sm:$0xff]
    %v1153 = vld [vmem:[%s1151 + $0x8] sm:$0xff]
    %v1154 = vld [vmem:[%s1151 + $0x10] sm:$0xff]
    %1155 = vmatpush.msra.mxu0 %v350
    %1156 = vmatpush.msra.mxu0 %v347
    %1157 = vmatpush.msra.mxu0 %v344
    %1158 = vmatpush.msra.mxu0 %v341
    %1159 = vmatpush.msra.mxu0 %v338
    %1160 = vmatpush.msra.mxu0 %v335
    %1161 = vmatpush.msra.mxu0 %v332
    %1162 = vmatpush.msra.mxu0 %v329
    %1163 = vmatpush.msra.mxu0 %v326
    %1164 = vmatpush.msra.mxu0 %v323
    %1165 = vmatpush.msra.mxu0 %v320
    %1166 = vmatpush.msra.mxu0 %v317
    %1167 = vmatpush.msra.mxu0 %v314
    %1168 = vmatpush.msra.mxu0 %v311
    %1169 = vmatpush.msra.mxu0 %v308
    %1170 = vmatpush.msra.mxu0 %v305
    %1171 = vmatmul.f32.gmra.mxu0 %v1148
    %v1172 = vpop.f32.mrf.mxu0
    %v1173 = vadd.f32 %v359, %v1172
    %1174 = vdwg.mxu0
    %1175 = vmatpush.msra.mxu0 %v351
    %1176 = vmatpush.msra.mxu0 %v348
    %1177 = vmatpush.msra.mxu0 %v345
    %1178 = vmatpush.msra.mxu0 %v342
    %1179 = vmatpush.msra.mxu0 %v339
    %1180 = vmatpush.msra.mxu0 %v336
    %1181 = vmatpush.msra.mxu0 %v333
    %1182 = vmatpush.msra.mxu0 %v330
    %1183 = vmatpush.msra.mxu0 %v327
    %1184 = vmatpush.msra.mxu0 %v324
    %1185 = vmatpush.msra.mxu0 %v321
    %1186 = vmatpush.msra.mxu0 %v318
    %1187 = vmatpush.msra.mxu0 %v315
    %1188 = vmatpush.msra.mxu0 %v312
    %1189 = vmatpush.msra.mxu0 %v309
    %1190 = vmatpush.msra.mxu0 %v306
    %1191 = vmatmul.f32.gmra.mxu0 %v1148
    %v1192 = vpop.f32.mrf.mxu0
    %v1193 = vadd.f32 %v360, %v1192
    %1194 = vdwg.mxu0
    %1195 = vmatpush.msra.mxu0 %v352
    %1196 = vmatpush.msra.mxu0 %v349
    %1197 = vmatpush.msra.mxu0 %v346
    %1198 = vmatpush.msra.mxu0 %v343
    %1199 = vmatpush.msra.mxu0 %v340
    %1200 = vmatpush.msra.mxu0 %v337
    %1201 = vmatpush.msra.mxu0 %v334
    %1202 = vmatpush.msra.mxu0 %v331
    %1203 = vmatpush.msra.mxu0 %v328
    %1204 = vmatpush.msra.mxu0 %v325
    %1205 = vmatpush.msra.mxu0 %v322
    %1206 = vmatpush.msra.mxu0 %v319
    %1207 = vmatpush.msra.mxu0 %v316
    %1208 = vmatpush.msra.mxu0 %v313
    %1209 = vmatpush.msra.mxu0 %v310
    %1210 = vmatpush.msra.mxu0 %v307
    %1211 = vmatmul.f32.gmra.mxu0 %v1148
    %v1212 = vpop.f32.mrf.mxu0
    %v1213 = vadd.f32 %v361, %v1212
    %1214 = vdwg.mxu0
    %v1215 = vadd.f32 %v1152, %v1173
    %v1216 = vxor.u32 %v1215, 2147483648
    %v1217 = vmul.f32 %v1216, 1.442695
    %v1218 = vpow.pop %v1217
    %v1219 = vadd.f32 %v1218, 1.0
    %v1220 = vrcp.pop %v1219
    %v1221 = vmul.f32 %v1219, %v1220
    %v1222 = vsub.f32 1.0, %v1221
    %v1223 = vmul.f32 %v1220, %v1222
    %v1224 = vadd.f32 %v1220, %v1223
    %vm1225 = vweird.f32 %v1219
    %vm1226 = vweird.f32 %v1220
    %vm1227 = vmor %vm1225, %vm1226
    %v1228 = vsel %vm1227, %v1220, %v1224
    %v1229 = vand.u32 2147483647, %v1219
    %vm1230 = vcmp.eq.f32.partialorder %v1229, 8.507059e+37
    %v1231 = vand.u32 %v1219, 2147483648
    %v1232 = vor.u32 1.1754944e-38, %v1231
    %v1233 = vsel %vm1230, %v1232, %v1228
    %v1234 = vmul.f32 1.0, %v1233
    %v1235 = vadd.f32 %v1153, %v1193
    %v1236 = vxor.u32 %v1235, 2147483648
    %v1237 = vmul.f32 %v1236, 1.442695
    %v1238 = vpow.pop %v1237
    %v1239 = vadd.f32 %v1238, 1.0
    %v1240 = vrcp.pop %v1239
    %v1241 = vmul.f32 %v1239, %v1240
    %v1242 = vsub.f32 1.0, %v1241
    %v1243 = vmul.f32 %v1240, %v1242
    %v1244 = vadd.f32 %v1240, %v1243
    %vm1245 = vweird.f32 %v1239
    %vm1246 = vweird.f32 %v1240
    %vm1247 = vmor %vm1245, %vm1246
    %v1248 = vsel %vm1247, %v1240, %v1244
    %v1249 = vand.u32 2147483647, %v1239
    %vm1250 = vcmp.eq.f32.partialorder %v1249, 8.507059e+37
    %v1251 = vand.u32 %v1239, 2147483648
    %v1252 = vor.u32 1.1754944e-38, %v1251
    %v1253 = vsel %vm1250, %v1252, %v1248
    %v1254 = vmul.f32 1.0, %v1253
    %v1255 = vmul.f32 %v1234, %v1213
    %v1256 = vadd.f32 %v1154, %v1255
    %v1257 = vtanh.pop %v1256
    %v1258 = vsub.f32 1.0, %v1254
    %v1259 = vmul.f32 %v1258, %v1257
    %v1260 = vmul.f32 %v1254, %v1148
    %v1261 = vadd.f32 %v1259, %v1260
    %s1262 = scalar_lea.vmem [#allocation3], 56
    %1263 = vst [vmem:[%s1262] sm:$0xff] %v1261
    %1264 = vst [vmem:[%s9] sm:$0xff] %v1261
    %v1265 = vld [vmem:[#allocation3] sm:$0xff]
    %v1266 = vld [vmem:[#allocation3 + $0x8] sm:$0xff]
    %v1267 = vld [vmem:[#allocation3 + $0x10] sm:$0xff]
    %v1268 = vld [vmem:[#allocation3 + $0x18] sm:$0xff]
    %v1269 = vld [vmem:[#allocation3 + $0x20] sm:$0xff]
    %v1270 = vld [vmem:[#allocation3 + $0x28] sm:$0xff]
    %v1271 = vld [vmem:[#allocation3 + $0x30] sm:$0xff]
    %v1272 = vld [vmem:[#allocation3 + $0x38] sm:$0xff]
    %s1273 = scalar_lea.vmem [#allocation5], 384
    %v1274 = vld [vmem:[%s1273] sm:$0xff]
    %v1275 = vld [vmem:[%s1273 + $0x8] sm:$0xff]
    %v1276 = vld [vmem:[%s1273 + $0x10] sm:$0xff]
    %v1277 = vld [vmem:[%s1273 + $0x18] sm:$0xff]
    %v1278 = vld [vmem:[%s1273 + $0x20] sm:$0xff]
    %v1279 = vld [vmem:[%s1273 + $0x28] sm:$0xff]
    %v1280 = vld [vmem:[%s1273 + $0x30] sm:$0xff]
    %v1281 = vld [vmem:[%s1273 + $0x38] sm:$0xff]
    %v1282 = vld [vmem:[%s1273 + $0x40] sm:$0xff]
    %v1283 = vld [vmem:[%s1273 + $0x48] sm:$0xff]
    %v1284 = vld [vmem:[%s1273 + $0x50] sm:$0xff]
    %v1285 = vld [vmem:[%s1273 + $0x58] sm:$0xff]
    %v1286 = vld [vmem:[%s1273 + $0x60] sm:$0xff]
    %v1287 = vld [vmem:[%s1273 + $0x68] sm:$0xff]
    %v1288 = vld [vmem:[%s1273 + $0x70] sm:$0xff]
    %v1289 = vld [vmem:[%s1273 + $0x78] sm:$0xff]
    %v1290 = vld [vmem:[%s1273 + $0x80] sm:$0xff]
    %v1291 = vld [vmem:[%s1273 + $0x88] sm:$0xff]
    %v1292 = vld [vmem:[%s1273 + $0x90] sm:$0xff]
    %v1293 = vld [vmem:[%s1273 + $0x98] sm:$0xff]
    %v1294 = vld [vmem:[%s1273 + $0xa0] sm:$0xff]
    %v1295 = vld [vmem:[%s1273 + $0xa8] sm:$0xff]
    %v1296 = vld [vmem:[%s1273 + $0xb0] sm:$0xff]
    %v1297 = vld [vmem:[%s1273 + $0xb8] sm:$0xff]
    %v1298 = vld [vmem:[%s1273 + $0xc0] sm:$0xff]
    %v1299 = vld [vmem:[%s1273 + $0xc8] sm:$0xff]
    %v1300 = vld [vmem:[%s1273 + $0xd0] sm:$0xff]
    %v1301 = vld [vmem:[%s1273 + $0xd8] sm:$0xff]
    %v1302 = vld [vmem:[%s1273 + $0xe0] sm:$0xff]
    %v1303 = vld [vmem:[%s1273 + $0xe8] sm:$0xff]
    %v1304 = vld [vmem:[%s1273 + $0xf0] sm:$0xff]
    %v1305 = vld [vmem:[%s1273 + $0xf8] sm:$0xff]
    %v1306 = vld [vmem:[%s1273 + $0x100] sm:$0xff]
    %v1307 = vld [vmem:[%s1273 + $0x108] sm:$0xff]
    %v1308 = vld [vmem:[%s1273 + $0x110] sm:$0xff]
    %v1309 = vld [vmem:[%s1273 + $0x118] sm:$0xff]
    %v1310 = vld [vmem:[%s1273 + $0x120] sm:$0xff]
    %v1311 = vld [vmem:[%s1273 + $0x128] sm:$0xff]
    %v1312 = vld [vmem:[%s1273 + $0x130] sm:$0xff]
    %v1313 = vld [vmem:[%s1273 + $0x138] sm:$0xff]
    %v1314 = vld [vmem:[%s1273 + $0x140] sm:$0xff]
    %v1315 = vld [vmem:[%s1273 + $0x148] sm:$0xff]
    %v1316 = vld [vmem:[%s1273 + $0x150] sm:$0xff]
    %v1317 = vld [vmem:[%s1273 + $0x158] sm:$0xff]
    %v1318 = vld [vmem:[%s1273 + $0x160] sm:$0xff]
    %v1319 = vld [vmem:[%s1273 + $0x168] sm:$0xff]
    %v1320 = vld [vmem:[%s1273 + $0x170] sm:$0xff]
    %v1321 = vld [vmem:[%s1273 + $0x178] sm:$0xff]
    %s1322 = scalar_lea.vmem [#allocation9], 3
    %v1323 = vld [vmem:[%s1322] sm:$0x7]
    %v1325 = vperm.slane %v1323, 0
    %v1326 = vperm.slane %v1323, 1
    %v1327 = vperm.slane %v1323, 2
    %1331 = vmatpush.msra.mxu0 %v1319
    %1332 = vmatpush.msra.mxu0 %v1316
    %1333 = vmatpush.msra.mxu0 %v1313
    %1334 = vmatpush.msra.mxu0 %v1310
    %1335 = vmatpush.msra.mxu0 %v1307
    %1336 = vmatpush.msra.mxu0 %v1304
    %1337 = vmatpush.msra.mxu0 %v1301
    %1338 = vmatpush.msra.mxu0 %v1298
    %1339 = vmatpush.msra.mxu0 %v1295
    %1340 = vmatpush.msra.mxu0 %v1292
    %1341 = vmatpush.msra.mxu0 %v1289
    %1342 = vmatpush.msra.mxu0 %v1286
    %1343 = vmatpush.msra.mxu0 %v1283
    %1344 = vmatpush.msra.mxu0 %v1280
    %1345 = vmatpush.msra.mxu0 %v1277
    %1346 = vmatpush.msra.mxu0 %v1274
    %1347 = vmatmul.f32.gmra.mxu0 %v1265
    %v1348 = vpop.f32.mrf.mxu0
    %v1349 = vadd.f32 %v1325, %v1348
    %1350 = vmatmul.f32.gmra.mxu0 %v1266
    %v1351 = vpop.f32.mrf.mxu0
    %v1352 = vadd.f32 %v1325, %v1351
    %1353 = vmatmul.f32.gmra.mxu0 %v1267
    %v1354 = vpop.f32.mrf.mxu0
    %v1355 = vadd.f32 %v1325, %v1354
    %1356 = vmatmul.f32.gmra.mxu0 %v1268
    %v1357 = vpop.f32.mrf.mxu0
    %v1358 = vadd.f32 %v1325, %v1357
    %1359 = vmatmul.f32.gmra.mxu0 %v1269
    %v1360 = vpop.f32.mrf.mxu0
    %v1361 = vadd.f32 %v1325, %v1360
    %1362 = vmatmul.f32.gmra.mxu0 %v1270
    %v1363 = vpop.f32.mrf.mxu0
    %v1364 = vadd.f32 %v1325, %v1363
    %1365 = vmatmul.f32.gmra.mxu0 %v1271
    %v1366 = vpop.f32.mrf.mxu0
    %v1367 = vadd.f32 %v1325, %v1366
    %1368 = vmatmul.f32.gmra.mxu0 %v1272
    %v1369 = vpop.f32.mrf.mxu0
    %v1370 = vadd.f32 %v1325, %v1369
    %1371 = vdwg.mxu0
    %1372 = vmatpush.msra.mxu0 %v1320
    %1373 = vmatpush.msra.mxu0 %v1317
    %1374 = vmatpush.msra.mxu0 %v1314
    %1375 = vmatpush.msra.mxu0 %v1311
    %1376 = vmatpush.msra.mxu0 %v1308
    %1377 = vmatpush.msra.mxu0 %v1305
    %1378 = vmatpush.msra.mxu0 %v1302
    %1379 = vmatpush.msra.mxu0 %v1299
    %1380 = vmatpush.msra.mxu0 %v1296
    %1381 = vmatpush.msra.mxu0 %v1293
    %1382 = vmatpush.msra.mxu0 %v1290
    %1383 = vmatpush.msra.mxu0 %v1287
    %1384 = vmatpush.msra.mxu0 %v1284
    %1385 = vmatpush.msra.mxu0 %v1281
    %1386 = vmatpush.msra.mxu0 %v1278
    %1387 = vmatpush.msra.mxu0 %v1275
    %1388 = vmatmul.f32.gmra.mxu0 %v1265
    %v1389 = vpop.f32.mrf.mxu0
    %v1390 = vadd.f32 %v1326, %v1389
    %1391 = vmatmul.f32.gmra.mxu0 %v1266
    %v1392 = vpop.f32.mrf.mxu0
    %v1393 = vadd.f32 %v1326, %v1392
    %1394 = vmatmul.f32.gmra.mxu0 %v1267
    %v1395 = vpop.f32.mrf.mxu0
    %v1396 = vadd.f32 %v1326, %v1395
    %1397 = vmatmul.f32.gmra.mxu0 %v1268
    %v1398 = vpop.f32.mrf.mxu0
    %v1399 = vadd.f32 %v1326, %v1398
    %1400 = vmatmul.f32.gmra.mxu0 %v1269
    %v1401 = vpop.f32.mrf.mxu0
    %v1402 = vadd.f32 %v1326, %v1401
    %1403 = vmatmul.f32.gmra.mxu0 %v1270
    %v1404 = vpop.f32.mrf.mxu0
    %v1405 = vadd.f32 %v1326, %v1404
    %1406 = vmatmul.f32.gmra.mxu0 %v1271
    %v1407 = vpop.f32.mrf.mxu0
    %v1408 = vadd.f32 %v1326, %v1407
    %1409 = vmatmul.f32.gmra.mxu0 %v1272
    %v1410 = vpop.f32.mrf.mxu0
    %v1411 = vadd.f32 %v1326, %v1410
    %1412 = vdwg.mxu0
    %1413 = vmatpush.msra.mxu0 %v1321
    %1414 = vmatpush.msra.mxu0 %v1318
    %1415 = vmatpush.msra.mxu0 %v1315
    %1416 = vmatpush.msra.mxu0 %v1312
    %1417 = vmatpush.msra.mxu0 %v1309
    %1418 = vmatpush.msra.mxu0 %v1306
    %1419 = vmatpush.msra.mxu0 %v1303
    %1420 = vmatpush.msra.mxu0 %v1300
    %1421 = vmatpush.msra.mxu0 %v1297
    %1422 = vmatpush.msra.mxu0 %v1294
    %1423 = vmatpush.msra.mxu0 %v1291
    %1424 = vmatpush.msra.mxu0 %v1288
    %1425 = vmatpush.msra.mxu0 %v1285
    %1426 = vmatpush.msra.mxu0 %v1282
    %1427 = vmatpush.msra.mxu0 %v1279
    %1428 = vmatpush.msra.mxu0 %v1276
    %1429 = vmatmul.f32.gmra.mxu0 %v1265
    %v1430 = vpop.f32.mrf.mxu0
    %v1431 = vadd.f32 %v1327, %v1430
    %1432 = vmatmul.f32.gmra.mxu0 %v1266
    %v1433 = vpop.f32.mrf.mxu0
    %v1434 = vadd.f32 %v1327, %v1433
    %1435 = vmatmul.f32.gmra.mxu0 %v1267
    %v1436 = vpop.f32.mrf.mxu0
    %v1437 = vadd.f32 %v1327, %v1436
    %1438 = vmatmul.f32.gmra.mxu0 %v1268
    %v1439 = vpop.f32.mrf.mxu0
    %v1440 = vadd.f32 %v1327, %v1439
    %1441 = vmatmul.f32.gmra.mxu0 %v1269
    %v1442 = vpop.f32.mrf.mxu0
    %v1443 = vadd.f32 %v1327, %v1442
    %1444 = vmatmul.f32.gmra.mxu0 %v1270
    %v1445 = vpop.f32.mrf.mxu0
    %v1446 = vadd.f32 %v1327, %v1445
    %1447 = vmatmul.f32.gmra.mxu0 %v1271
    %v1448 = vpop.f32.mrf.mxu0
    %v1449 = vadd.f32 %v1327, %v1448
    %1450 = vmatmul.f32.gmra.mxu0 %v1272
    %v1451 = vpop.f32.mrf.mxu0
    %v1452 = vadd.f32 %v1327, %v1451
    %1453 = vdwg.mxu0
    %1454 = vst [vmem:[#allocation2] sm:$0xff] %v1349
    %1455 = vst [vmem:[#allocation2 + $0x8] sm:$0xff] %v1390
    %1456 = vst [vmem:[#allocation2 + $0x10] sm:$0xff] %v1431
    %1457 = vst [vmem:[#allocation2 + $0x18] sm:$0xff] %v1352
    %1458 = vst [vmem:[#allocation2 + $0x20] sm:$0xff] %v1393
    %1459 = vst [vmem:[#allocation2 + $0x28] sm:$0xff] %v1434
    %1460 = vst [vmem:[#allocation2 + $0x30] sm:$0xff] %v1355
    %1461 = vst [vmem:[#allocation2 + $0x38] sm:$0xff] %v1396
    %1462 = vst [vmem:[#allocation2 + $0x40] sm:$0xff] %v1437
    %1463 = vst [vmem:[#allocation2 + $0x48] sm:$0xff] %v1358
    %1464 = vst [vmem:[#allocation2 + $0x50] sm:$0xff] %v1399
    %1465 = vst [vmem:[#allocation2 + $0x58] sm:$0xff] %v1440
    %1466 = vst [vmem:[#allocation2 + $0x60] sm:$0xff] %v1361
    %1467 = vst [vmem:[#allocation2 + $0x68] sm:$0xff] %v1402
    %1468 = vst [vmem:[#allocation2 + $0x70] sm:$0xff] %v1443
    %1469 = vst [vmem:[#allocation2 + $0x78] sm:$0xff] %v1364
    %1470 = vst [vmem:[#allocation2 + $0x80] sm:$0xff] %v1405
    %1471 = vst [vmem:[#allocation2 + $0x88] sm:$0xff] %v1446
    %1472 = vst [vmem:[#allocation2 + $0x90] sm:$0xff] %v1367
    %1473 = vst [vmem:[#allocation2 + $0x98] sm:$0xff] %v1408
    %1474 = vst [vmem:[#allocation2 + $0xa0] sm:$0xff] %v1449
    %1475 = vst [vmem:[#allocation2 + $0xa8] sm:$0xff] %v1370
    %1476 = vst [vmem:[#allocation2 + $0xb0] sm:$0xff] %v1411
    %1477 = vst [vmem:[#allocation2 + $0xb8] sm:$0xff] %v1452
    %s1478 = scalar_lea.vmem [#allocation7], 384
    %v1479 = vld [vmem:[%s1478] sm:$0xff]
    %v1480 = vld [vmem:[%s1478 + $0x8] sm:$0xff]
    %v1481 = vld [vmem:[%s1478 + $0x10] sm:$0xff]
    %v1482 = vld [vmem:[%s1478 + $0x18] sm:$0xff]
    %v1483 = vld [vmem:[%s1478 + $0x20] sm:$0xff]
    %v1484 = vld [vmem:[%s1478 + $0x28] sm:$0xff]
    %v1485 = vld [vmem:[%s1478 + $0x30] sm:$0xff]
    %v1486 = vld [vmem:[%s1478 + $0x38] sm:$0xff]
    %v1487 = vld [vmem:[%s1478 + $0x40] sm:$0xff]
    %v1488 = vld [vmem:[%s1478 + $0x48] sm:$0xff]
    %v1489 = vld [vmem:[%s1478 + $0x50] sm:$0xff]
    %v1490 = vld [vmem:[%s1478 + $0x58] sm:$0xff]
    %v1491 = vld [vmem:[%s1478 + $0x60] sm:$0xff]
    %v1492 = vld [vmem:[%s1478 + $0x68] sm:$0xff]
    %v1493 = vld [vmem:[%s1478 + $0x70] sm:$0xff]
    %v1494 = vld [vmem:[%s1478 + $0x78] sm:$0xff]
    %v1495 = vld [vmem:[%s1478 + $0x80] sm:$0xff]
    %v1496 = vld [vmem:[%s1478 + $0x88] sm:$0xff]
    %v1497 = vld [vmem:[%s1478 + $0x90] sm:$0xff]
    %v1498 = vld [vmem:[%s1478 + $0x98] sm:$0xff]
    %v1499 = vld [vmem:[%s1478 + $0xa0] sm:$0xff]
    %v1500 = vld [vmem:[%s1478 + $0xa8] sm:$0xff]
    %v1501 = vld [vmem:[%s1478 + $0xb0] sm:$0xff]
    %v1502 = vld [vmem:[%s1478 + $0xb8] sm:$0xff]
    %v1503 = vld [vmem:[%s1478 + $0xc0] sm:$0xff]
    %v1504 = vld [vmem:[%s1478 + $0xc8] sm:$0xff]
    %v1505 = vld [vmem:[%s1478 + $0xd0] sm:$0xff]
    %v1506 = vld [vmem:[%s1478 + $0xd8] sm:$0xff]
    %v1507 = vld [vmem:[%s1478 + $0xe0] sm:$0xff]
    %v1508 = vld [vmem:[%s1478 + $0xe8] sm:$0xff]
    %v1509 = vld [vmem:[%s1478 + $0xf0] sm:$0xff]
    %v1510 = vld [vmem:[%s1478 + $0xf8] sm:$0xff]
    %v1511 = vld [vmem:[%s1478 + $0x100] sm:$0xff]
    %v1512 = vld [vmem:[%s1478 + $0x108] sm:$0xff]
    %v1513 = vld [vmem:[%s1478 + $0x110] sm:$0xff]
    %v1514 = vld [vmem:[%s1478 + $0x118] sm:$0xff]
    %v1515 = vld [vmem:[%s1478 + $0x120] sm:$0xff]
    %v1516 = vld [vmem:[%s1478 + $0x128] sm:$0xff]
    %v1517 = vld [vmem:[%s1478 + $0x130] sm:$0xff]
    %v1518 = vld [vmem:[%s1478 + $0x138] sm:$0xff]
    %v1519 = vld [vmem:[%s1478 + $0x140] sm:$0xff]
    %v1520 = vld [vmem:[%s1478 + $0x148] sm:$0xff]
    %v1521 = vld [vmem:[%s1478 + $0x150] sm:$0xff]
    %v1522 = vld [vmem:[%s1478 + $0x158] sm:$0xff]
    %v1523 = vld [vmem:[%s1478 + $0x160] sm:$0xff]
    %v1524 = vld [vmem:[%s1478 + $0x168] sm:$0xff]
    %v1525 = vld [vmem:[%s1478 + $0x170] sm:$0xff]
    %v1526 = vld [vmem:[%s1478 + $0x178] sm:$0xff]
    %s1527 = scalar_lea.vmem [#allocation10], 3
    %v1528 = vld [vmem:[%s1527] sm:$0x7]
    %s1529 = scalar_lea.vmem %s1, 8
    %v1530 = vld [vmem:[%s1529] sm:$0xff]
    %v1531 = vld [vmem:[#allocation2] sm:$0xff]
    %v1532 = vld [vmem:[#allocation2 + $0x8] sm:$0xff]
    %v1533 = vld [vmem:[#allocation2 + $0x10] sm:$0xff]
    %v1535 = vperm.slane %v1528, 0
    %v1536 = vperm.slane %v1528, 1
    %v1537 = vperm.slane %v1528, 2
    %1541 = vmatpush.msra.mxu0 %v1524
    %1542 = vmatpush.msra.mxu0 %v1521
    %1543 = vmatpush.msra.mxu0 %v1518
    %1544 = vmatpush.msra.mxu0 %v1515
    %1545 = vmatpush.msra.mxu0 %v1512
    %1546 = vmatpush.msra.mxu0 %v1509
    %1547 = vmatpush.msra.mxu0 %v1506
    %1548 = vmatpush.msra.mxu0 %v1503
    %1549 = vmatpush.msra.mxu0 %v1500
    %1550 = vmatpush.msra.mxu0 %v1497
    %1551 = vmatpush.msra.mxu0 %v1494
    %1552 = vmatpush.msra.mxu0 %v1491
    %1553 = vmatpush.msra.mxu0 %v1488
    %1554 = vmatpush.msra.mxu0 %v1485
    %1555 = vmatpush.msra.mxu0 %v1482
    %1556 = vmatpush.msra.mxu0 %v1479
    %1557 = vmatmul.f32.gmra.mxu0 %v1530
    %v1558 = vpop.f32.mrf.mxu0
    %v1559 = vadd.f32 %v1535, %v1558
    %1560 = vdwg.mxu0
    %1561 = vmatpush.msra.mxu0 %v1525
    %1562 = vmatpush.msra.mxu0 %v1522
    %1563 = vmatpush.msra.mxu0 %v1519
    %1564 = vmatpush.msra.mxu0 %v1516
    %1565 = vmatpush.msra.mxu0 %v1513
    %1566 = vmatpush.msra.mxu0 %v1510
    %1567 = vmatpush.msra.mxu0 %v1507
    %1568 = vmatpush.msra.mxu0 %v1504
    %1569 = vmatpush.msra.mxu0 %v1501
    %1570 = vmatpush.msra.mxu0 %v1498
    %1571 = vmatpush.msra.mxu0 %v1495
    %1572 = vmatpush.msra.mxu0 %v1492
    %1573 = vmatpush.msra.mxu0 %v1489
    %1574 = vmatpush.msra.mxu0 %v1486
    %1575 = vmatpush.msra.mxu0 %v1483
    %1576 = vmatpush.msra.mxu0 %v1480
    %1577 = vmatmul.f32.gmra.mxu0 %v1530
    %v1578 = vpop.f32.mrf.mxu0
    %v1579 = vadd.f32 %v1536, %v1578
    %1580 = vdwg.mxu0
    %1581 = vmatpush.msra.mxu0 %v1526
    %1582 = vmatpush.msra.mxu0 %v1523
    %1583 = vmatpush.msra.mxu0 %v1520
    %1584 = vmatpush.msra.mxu0 %v1517
    %1585 = vmatpush.msra.mxu0 %v1514
    %1586 = vmatpush.msra.mxu0 %v1511
    %1587 = vmatpush.msra.mxu0 %v1508
    %1588 = vmatpush.msra.mxu0 %v1505
    %1589 = vmatpush.msra.mxu0 %v1502
    %1590 = vmatpush.msra.mxu0 %v1499
    %1591 = vmatpush.msra.mxu0 %v1496
    %1592 = vmatpush.msra.mxu0 %v1493
    %1593 = vmatpush.msra.mxu0 %v1490
    %1594 = vmatpush.msra.mxu0 %v1487
    %1595 = vmatpush.msra.mxu0 %v1484
    %1596 = vmatpush.msra.mxu0 %v1481
    %1597 = vmatmul.f32.gmra.mxu0 %v1530
    %v1598 = vpop.f32.mrf.mxu0
    %v1599 = vadd.f32 %v1537, %v1598
    %1600 = vdwg.mxu0
    %v1601 = vadd.f32 %v1531, %v1559
    %v1602 = vxor.u32 %v1601, 2147483648
    %v1603 = vmul.f32 %v1602, 1.442695
    %v1604 = vpow.pop %v1603
    %v1605 = vadd.f32 %v1604, 1.0
    %v1606 = vrcp.pop %v1605
    %v1607 = vmul.f32 %v1605, %v1606
    %v1608 = vsub.f32 1.0, %v1607
    %v1609 = vmul.f32 %v1606, %v1608
    %v1610 = vadd.f32 %v1606, %v1609
    %vm1611 = vweird.f32 %v1605
    %vm1612 = vweird.f32 %v1606
    %vm1613 = vmor %vm1611, %vm1612
    %v1614 = vsel %vm1613, %v1606, %v1610
    %v1615 = vand.u32 2147483647, %v1605
    %vm1616 = vcmp.eq.f32.partialorder %v1615, 8.507059e+37
    %v1617 = vand.u32 %v1605, 2147483648
    %v1618 = vor.u32 1.1754944e-38, %v1617
    %v1619 = vsel %vm1616, %v1618, %v1614
    %v1620 = vmul.f32 1.0, %v1619
    %v1621 = vadd.f32 %v1532, %v1579
    %v1622 = vxor.u32 %v1621, 2147483648
    %v1623 = vmul.f32 %v1622, 1.442695
    %v1624 = vpow.pop %v1623
    %v1625 = vadd.f32 %v1624, 1.0
    %v1626 = vrcp.pop %v1625
    %v1627 = vmul.f32 %v1625, %v1626
    %v1628 = vsub.f32 1.0, %v1627
    %v1629 = vmul.f32 %v1626, %v1628
    %v1630 = vadd.f32 %v1626, %v1629
    %vm1631 = vweird.f32 %v1625
    %vm1632 = vweird.f32 %v1626
    %vm1633 = vmor %vm1631, %vm1632
    %v1634 = vsel %vm1633, %v1626, %v1630
    %v1635 = vand.u32 2147483647, %v1625
    %vm1636 = vcmp.eq.f32.partialorder %v1635, 8.507059e+37
    %v1637 = vand.u32 %v1625, 2147483648
    %v1638 = vor.u32 1.1754944e-38, %v1637
    %v1639 = vsel %vm1636, %v1638, %v1634
    %v1640 = vmul.f32 1.0, %v1639
    %v1641 = vmul.f32 %v1620, %v1599
    %v1642 = vadd.f32 %v1533, %v1641
    %v1643 = vtanh.pop %v1642
    %v1644 = vsub.f32 1.0, %v1640
    %v1645 = vmul.f32 %v1644, %v1643
    %v1646 = vmul.f32 %v1640, %v1530
    %v1647 = vadd.f32 %v1645, %v1646
    %1648 = vst [vmem:[#allocation4] sm:$0xff] %v1647
    %v1649 = vld [vmem:[%s473] sm:$0xff]
    %v1650 = vld [vmem:[%s473 + $0x8] sm:$0xff]
    %v1651 = vld [vmem:[%s473 + $0x10] sm:$0xff]
    %1652 = vmatpush.msra.mxu0 %v1524
    %1653 = vmatpush.msra.mxu0 %v1521
    %1654 = vmatpush.msra.mxu0 %v1518
    %1655 = vmatpush.msra.mxu0 %v1515
    %1656 = vmatpush.msra.mxu0 %v1512
    %1657 = vmatpush.msra.mxu0 %v1509
    %1658 = vmatpush.msra.mxu0 %v1506
    %1659 = vmatpush.msra.mxu0 %v1503
    %1660 = vmatpush.msra.mxu0 %v1500
    %1661 = vmatpush.msra.mxu0 %v1497
    %1662 = vmatpush.msra.mxu0 %v1494
    %1663 = vmatpush.msra.mxu0 %v1491
    %1664 = vmatpush.msra.mxu0 %v1488
    %1665 = vmatpush.msra.mxu0 %v1485
    %1666 = vmatpush.msra.mxu0 %v1482
    %1667 = vmatpush.msra.mxu0 %v1479
    %1668 = vmatmul.f32.gmra.mxu0 %v1647
    %v1669 = vpop.f32.mrf.mxu0
    %v1670 = vadd.f32 %v1535, %v1669
    %1671 = vdwg.mxu0
    %1672 = vmatpush.msra.mxu0 %v1525
    %1673 = vmatpush.msra.mxu0 %v1522
    %1674 = vmatpush.msra.mxu0 %v1519
    %1675 = vmatpush.msra.mxu0 %v1516
    %1676 = vmatpush.msra.mxu0 %v1513
    %1677 = vmatpush.msra.mxu0 %v1510
    %1678 = vmatpush.msra.mxu0 %v1507
    %1679 = vmatpush.msra.mxu0 %v1504
    %1680 = vmatpush.msra.mxu0 %v1501
    %1681 = vmatpush.msra.mxu0 %v1498
    %1682 = vmatpush.msra.mxu0 %v1495
    %1683 = vmatpush.msra.mxu0 %v1492
    %1684 = vmatpush.msra.mxu0 %v1489
    %1685 = vmatpush.msra.mxu0 %v1486
    %1686 = vmatpush.msra.mxu0 %v1483
    %1687 = vmatpush.msra.mxu0 %v1480
    %1688 = vmatmul.f32.gmra.mxu0 %v1647
    %v1689 = vpop.f32.mrf.mxu0
    %v1690 = vadd.f32 %v1536, %v1689
    %1691 = vdwg.mxu0
    %1692 = vmatpush.msra.mxu0 %v1526
    %1693 = vmatpush.msra.mxu0 %v1523
    %1694 = vmatpush.msra.mxu0 %v1520
    %1695 = vmatpush.msra.mxu0 %v1517
    %1696 = vmatpush.msra.mxu0 %v1514
    %1697 = vmatpush.msra.mxu0 %v1511
    %1698 = vmatpush.msra.mxu0 %v1508
    %1699 = vmatpush.msra.mxu0 %v1505
    %1700 = vmatpush.msra.mxu0 %v1502
    %1701 = vmatpush.msra.mxu0 %v1499
    %1702 = vmatpush.msra.mxu0 %v1496
    %1703 = vmatpush.msra.mxu0 %v1493
    %1704 = vmatpush.msra.mxu0 %v1490
    %1705 = vmatpush.msra.mxu0 %v1487
    %1706 = vmatpush.msra.mxu0 %v1484
    %1707 = vmatpush.msra.mxu0 %v1481
    %1708 = vmatmul.f32.gmra.mxu0 %v1647
    %v1709 = vpop.f32.mrf.mxu0
    %v1710 = vadd.f32 %v1537, %v1709
    %1711 = vdwg.mxu0
    %v1712 = vadd.f32 %v1649, %v1670
    %v1713 = vxor.u32 %v1712, 2147483648
    %v1714 = vmul.f32 %v1713, 1.442695
    %v1715 = vpow.pop %v1714
    %v1716 = vadd.f32 %v1715, 1.0
    %v1717 = vrcp.pop %v1716
    %v1718 = vmul.f32 %v1716, %v1717
    %v1719 = vsub.f32 1.0, %v1718
    %v1720 = vmul.f32 %v1717, %v1719
    %v1721 = vadd.f32 %v1717, %v1720
    %vm1722 = vweird.f32 %v1716
    %vm1723 = vweird.f32 %v1717
    %vm1724 = vmor %vm1722, %vm1723
    %v1725 = vsel %vm1724, %v1717, %v1721
    %v1726 = vand.u32 2147483647, %v1716
    %vm1727 = vcmp.eq.f32.partialorder %v1726, 8.507059e+37
    %v1728 = vand.u32 %v1716, 2147483648
    %v1729 = vor.u32 1.1754944e-38, %v1728
    %v1730 = vsel %vm1727, %v1729, %v1725
    %v1731 = vmul.f32 1.0, %v1730
    %v1732 = vadd.f32 %v1650, %v1690
    %v1733 = vxor.u32 %v1732, 2147483648
    %v1734 = vmul.f32 %v1733, 1.442695
    %v1735 = vpow.pop %v1734
    %v1736 = vadd.f32 %v1735, 1.0
    %v1737 = vrcp.pop %v1736
    %v1738 = vmul.f32 %v1736, %v1737
    %v1739 = vsub.f32 1.0, %v1738
    %v1740 = vmul.f32 %v1737, %v1739
    %v1741 = vadd.f32 %v1737, %v1740
    %vm1742 = vweird.f32 %v1736
    %vm1743 = vweird.f32 %v1737
    %vm1744 = vmor %vm1742, %vm1743
    %v1745 = vsel %vm1744, %v1737, %v1741
    %v1746 = vand.u32 2147483647, %v1736
    %vm1747 = vcmp.eq.f32.partialorder %v1746, 8.507059e+37
    %v1748 = vand.u32 %v1736, 2147483648
    %v1749 = vor.u32 1.1754944e-38, %v1748
    %v1750 = vsel %vm1747, %v1749, %v1745
    %v1751 = vmul.f32 1.0, %v1750
    %v1752 = vmul.f32 %v1731, %v1710
    %v1753 = vadd.f32 %v1651, %v1752
    %v1754 = vtanh.pop %v1753
    %v1755 = vsub.f32 1.0, %v1751
    %v1756 = vmul.f32 %v1755, %v1754
    %v1757 = vmul.f32 %v1751, %v1647
    %v1758 = vadd.f32 %v1756, %v1757
    %s1759 = scalar_lea.vmem [#allocation4], 8
    %1760 = vst [vmem:[%s1759] sm:$0xff] %v1758
    %v1761 = vld [vmem:[%s586] sm:$0xff]
    %v1762 = vld [vmem:[%s586 + $0x8] sm:$0xff]
    %v1763 = vld [vmem:[%s586 + $0x10] sm:$0xff]
    %1764 = vmatpush.msra.mxu0 %v1524
    %1765 = vmatpush.msra.mxu0 %v1521
    %1766 = vmatpush.msra.mxu0 %v1518
    %1767 = vmatpush.msra.mxu0 %v1515
    %1768 = vmatpush.msra.mxu0 %v1512
    %1769 = vmatpush.msra.mxu0 %v1509
    %1770 = vmatpush.msra.mxu0 %v1506
    %1771 = vmatpush.msra.mxu0 %v1503
    %1772 = vmatpush.msra.mxu0 %v1500
    %1773 = vmatpush.msra.mxu0 %v1497
    %1774 = vmatpush.msra.mxu0 %v1494
    %1775 = vmatpush.msra.mxu0 %v1491
    %1776 = vmatpush.msra.mxu0 %v1488
    %1777 = vmatpush.msra.mxu0 %v1485
    %1778 = vmatpush.msra.mxu0 %v1482
    %1779 = vmatpush.msra.mxu0 %v1479
    %1780 = vmatmul.f32.gmra.mxu0 %v1758
    %v1781 = vpop.f32.mrf.mxu0
    %v1782 = vadd.f32 %v1535, %v1781
    %1783 = vdwg.mxu0
    %1784 = vmatpush.msra.mxu0 %v1525
    %1785 = vmatpush.msra.mxu0 %v1522
    %1786 = vmatpush.msra.mxu0 %v1519
    %1787 = vmatpush.msra.mxu0 %v1516
    %1788 = vmatpush.msra.mxu0 %v1513
    %1789 = vmatpush.msra.mxu0 %v1510
    %1790 = vmatpush.msra.mxu0 %v1507
    %1791 = vmatpush.msra.mxu0 %v1504
    %1792 = vmatpush.msra.mxu0 %v1501
    %1793 = vmatpush.msra.mxu0 %v1498
    %1794 = vmatpush.msra.mxu0 %v1495
    %1795 = vmatpush.msra.mxu0 %v1492
    %1796 = vmatpush.msra.mxu0 %v1489
    %1797 = vmatpush.msra.mxu0 %v1486
    %1798 = vmatpush.msra.mxu0 %v1483
    %1799 = vmatpush.msra.mxu0 %v1480
    %1800 = vmatmul.f32.gmra.mxu0 %v1758
    %v1801 = vpop.f32.mrf.mxu0
    %v1802 = vadd.f32 %v1536, %v1801
    %1803 = vdwg.mxu0
    %1804 = vmatpush.msra.mxu0 %v1526
    %1805 = vmatpush.msra.mxu0 %v1523
    %1806 = vmatpush.msra.mxu0 %v1520
    %1807 = vmatpush.msra.mxu0 %v1517
    %1808 = vmatpush.msra.mxu0 %v1514
    %1809 = vmatpush.msra.mxu0 %v1511
    %1810 = vmatpush.msra.mxu0 %v1508
    %1811 = vmatpush.msra.mxu0 %v1505
    %1812 = vmatpush.msra.mxu0 %v1502
    %1813 = vmatpush.msra.mxu0 %v1499
    %1814 = vmatpush.msra.mxu0 %v1496
    %1815 = vmatpush.msra.mxu0 %v1493
    %1816 = vmatpush.msra.mxu0 %v1490
    %1817 = vmatpush.msra.mxu0 %v1487
    %1818 = vmatpush.msra.mxu0 %v1484
    %1819 = vmatpush.msra.mxu0 %v1481
    %1820 = vmatmul.f32.gmra.mxu0 %v1758
    %v1821 = vpop.f32.mrf.mxu0
    %v1822 = vadd.f32 %v1537, %v1821
    %1823 = vdwg.mxu0
    %v1824 = vadd.f32 %v1761, %v1782
    %v1825 = vxor.u32 %v1824, 2147483648
    %v1826 = vmul.f32 %v1825, 1.442695
    %v1827 = vpow.pop %v1826
    %v1828 = vadd.f32 %v1827, 1.0
    %v1829 = vrcp.pop %v1828
    %v1830 = vmul.f32 %v1828, %v1829
    %v1831 = vsub.f32 1.0, %v1830
    %v1832 = vmul.f32 %v1829, %v1831
    %v1833 = vadd.f32 %v1829, %v1832
    %vm1834 = vweird.f32 %v1828
    %vm1835 = vweird.f32 %v1829
    %vm1836 = vmor %vm1834, %vm1835
    %v1837 = vsel %vm1836, %v1829, %v1833
    %v1838 = vand.u32 2147483647, %v1828
    %vm1839 = vcmp.eq.f32.partialorder %v1838, 8.507059e+37
    %v1840 = vand.u32 %v1828, 2147483648
    %v1841 = vor.u32 1.1754944e-38, %v1840
    %v1842 = vsel %vm1839, %v1841, %v1837
    %v1843 = vmul.f32 1.0, %v1842
    %v1844 = vadd.f32 %v1762, %v1802
    %v1845 = vxor.u32 %v1844, 2147483648
    %v1846 = vmul.f32 %v1845, 1.442695
    %v1847 = vpow.pop %v1846
    %v1848 = vadd.f32 %v1847, 1.0
    %v1849 = vrcp.pop %v1848
    %v1850 = vmul.f32 %v1848, %v1849
    %v1851 = vsub.f32 1.0, %v1850
    %v1852 = vmul.f32 %v1849, %v1851
    %v1853 = vadd.f32 %v1849, %v1852
    %vm1854 = vweird.f32 %v1848
    %vm1855 = vweird.f32 %v1849
    %vm1856 = vmor %vm1854, %vm1855
    %v1857 = vsel %vm1856, %v1849, %v1853
    %v1858 = vand.u32 2147483647, %v1848
    %vm1859 = vcmp.eq.f32.partialorder %v1858, 8.507059e+37
    %v1860 = vand.u32 %v1848, 2147483648
    %v1861 = vor.u32 1.1754944e-38, %v1860
    %v1862 = vsel %vm1859, %v1861, %v1857
    %v1863 = vmul.f32 1.0, %v1862
    %v1864 = vmul.f32 %v1843, %v1822
    %v1865 = vadd.f32 %v1763, %v1864
    %v1866 = vtanh.pop %v1865
    %v1867 = vsub.f32 1.0, %v1863
    %v1868 = vmul.f32 %v1867, %v1866
    %v1869 = vmul.f32 %v1863, %v1758
    %v1870 = vadd.f32 %v1868, %v1869
    %s1871 = scalar_lea.vmem [#allocation4], 16
    %1872 = vst [vmem:[%s1871] sm:$0xff] %v1870
    %v1873 = vld [vmem:[%s699] sm:$0xff]
    %v1874 = vld [vmem:[%s699 + $0x8] sm:$0xff]
    %v1875 = vld [vmem:[%s699 + $0x10] sm:$0xff]
    %1876 = vmatpush.msra.mxu0 %v1524
    %1877 = vmatpush.msra.mxu0 %v1521
    %1878 = vmatpush.msra.mxu0 %v1518
    %1879 = vmatpush.msra.mxu0 %v1515
    %1880 = vmatpush.msra.mxu0 %v1512
    %1881 = vmatpush.msra.mxu0 %v1509
    %1882 = vmatpush.msra.mxu0 %v1506
    %1883 = vmatpush.msra.mxu0 %v1503
    %1884 = vmatpush.msra.mxu0 %v1500
    %1885 = vmatpush.msra.mxu0 %v1497
    %1886 = vmatpush.msra.mxu0 %v1494
    %1887 = vmatpush.msra.mxu0 %v1491
    %1888 = vmatpush.msra.mxu0 %v1488
    %1889 = vmatpush.msra.mxu0 %v1485
    %1890 = vmatpush.msra.mxu0 %v1482
    %1891 = vmatpush.msra.mxu0 %v1479
    %1892 = vmatmul.f32.gmra.mxu0 %v1870
    %v1893 = vpop.f32.mrf.mxu0
    %v1894 = vadd.f32 %v1535, %v1893
    %1895 = vdwg.mxu0
    %1896 = vmatpush.msra.mxu0 %v1525
    %1897 = vmatpush.msra.mxu0 %v1522
    %1898 = vmatpush.msra.mxu0 %v1519
    %1899 = vmatpush.msra.mxu0 %v1516
    %1900 = vmatpush.msra.mxu0 %v1513
    %1901 = vmatpush.msra.mxu0 %v1510
    %1902 = vmatpush.msra.mxu0 %v1507
    %1903 = vmatpush.msra.mxu0 %v1504
    %1904 = vmatpush.msra.mxu0 %v1501
    %1905 = vmatpush.msra.mxu0 %v1498
    %1906 = vmatpush.msra.mxu0 %v1495
    %1907 = vmatpush.msra.mxu0 %v1492
    %1908 = vmatpush.msra.mxu0 %v1489
    %1909 = vmatpush.msra.mxu0 %v1486
    %1910 = vmatpush.msra.mxu0 %v1483
    %1911 = vmatpush.msra.mxu0 %v1480
    %1912 = vmatmul.f32.gmra.mxu0 %v1870
    %v1913 = vpop.f32.mrf.mxu0
    %v1914 = vadd.f32 %v1536, %v1913
    %1915 = vdwg.mxu0
    %1916 = vmatpush.msra.mxu0 %v1526
    %1917 = vmatpush.msra.mxu0 %v1523
    %1918 = vmatpush.msra.mxu0 %v1520
    %1919 = vmatpush.msra.mxu0 %v1517
    %1920 = vmatpush.msra.mxu0 %v1514
    %1921 = vmatpush.msra.mxu0 %v1511
    %1922 = vmatpush.msra.mxu0 %v1508
    %1923 = vmatpush.msra.mxu0 %v1505
    %1924 = vmatpush.msra.mxu0 %v1502
    %1925 = vmatpush.msra.mxu0 %v1499
    %1926 = vmatpush.msra.mxu0 %v1496
    %1927 = vmatpush.msra.mxu0 %v1493
    %1928 = vmatpush.msra.mxu0 %v1490
    %1929 = vmatpush.msra.mxu0 %v1487
    %1930 = vmatpush.msra.mxu0 %v1484
    %1931 = vmatpush.msra.mxu0 %v1481
    %1932 = vmatmul.f32.gmra.mxu0 %v1870
    %v1933 = vpop.f32.mrf.mxu0
    %v1934 = vadd.f32 %v1537, %v1933
    %1935 = vdwg.mxu0
    %v1936 = vadd.f32 %v1873, %v1894
    %v1937 = vxor.u32 %v1936, 2147483648
    %v1938 = vmul.f32 %v1937, 1.442695
    %v1939 = vpow.pop %v1938
    %v1940 = vadd.f32 %v1939, 1.0
    %v1941 = vrcp.pop %v1940
    %v1942 = vmul.f32 %v1940, %v1941
    %v1943 = vsub.f32 1.0, %v1942
    %v1944 = vmul.f32 %v1941, %v1943
    %v1945 = vadd.f32 %v1941, %v1944
    %vm1946 = vweird.f32 %v1940
    %vm1947 = vweird.f32 %v1941
    %vm1948 = vmor %vm1946, %vm1947
    %v1949 = vsel %vm1948, %v1941, %v1945
    %v1950 = vand.u32 2147483647, %v1940
    %vm1951 = vcmp.eq.f32.partialorder %v1950, 8.507059e+37
    %v1952 = vand.u32 %v1940, 2147483648
    %v1953 = vor.u32 1.1754944e-38, %v1952
    %v1954 = vsel %vm1951, %v1953, %v1949
    %v1955 = vmul.f32 1.0, %v1954
    %v1956 = vadd.f32 %v1874, %v1914
    %v1957 = vxor.u32 %v1956, 2147483648
    %v1958 = vmul.f32 %v1957, 1.442695
    %v1959 = vpow.pop %v1958
    %v1960 = vadd.f32 %v1959, 1.0
    %v1961 = vrcp.pop %v1960
    %v1962 = vmul.f32 %v1960, %v1961
    %v1963 = vsub.f32 1.0, %v1962
    %v1964 = vmul.f32 %v1961, %v1963
    %v1965 = vadd.f32 %v1961, %v1964
    %vm1966 = vweird.f32 %v1960
    %vm1967 = vweird.f32 %v1961
    %vm1968 = vmor %vm1966, %vm1967
    %v1969 = vsel %vm1968, %v1961, %v1965
    %v1970 = vand.u32 2147483647, %v1960
    %vm1971 = vcmp.eq.f32.partialorder %v1970, 8.507059e+37
    %v1972 = vand.u32 %v1960, 2147483648
    %v1973 = vor.u32 1.1754944e-38, %v1972
    %v1974 = vsel %vm1971, %v1973, %v1969
    %v1975 = vmul.f32 1.0, %v1974
    %v1976 = vmul.f32 %v1955, %v1934
    %v1977 = vadd.f32 %v1875, %v1976
    %v1978 = vtanh.pop %v1977
    %v1979 = vsub.f32 1.0, %v1975
    %v1980 = vmul.f32 %v1979, %v1978
    %v1981 = vmul.f32 %v1975, %v1870
    %v1982 = vadd.f32 %v1980, %v1981
    %s1983 = scalar_lea.vmem [#allocation4], 24
    %1984 = vst [vmem:[%s1983] sm:$0xff] %v1982
    %v1985 = vld [vmem:[%s812] sm:$0xff]
    %v1986 = vld [vmem:[%s812 + $0x8] sm:$0xff]
    %v1987 = vld [vmem:[%s812 + $0x10] sm:$0xff]
    %1988 = vmatpush.msra.mxu0 %v1524
    %1989 = vmatpush.msra.mxu0 %v1521
    %1990 = vmatpush.msra.mxu0 %v1518
    %1991 = vmatpush.msra.mxu0 %v1515
    %1992 = vmatpush.msra.mxu0 %v1512
    %1993 = vmatpush.msra.mxu0 %v1509
    %1994 = vmatpush.msra.mxu0 %v1506
    %1995 = vmatpush.msra.mxu0 %v1503
    %1996 = vmatpush.msra.mxu0 %v1500
    %1997 = vmatpush.msra.mxu0 %v1497
    %1998 = vmatpush.msra.mxu0 %v1494
    %1999 = vmatpush.msra.mxu0 %v1491
    %2000 = vmatpush.msra.mxu0 %v1488
    %2001 = vmatpush.msra.mxu0 %v1485
    %2002 = vmatpush.msra.mxu0 %v1482
    %2003 = vmatpush.msra.mxu0 %v1479
    %2004 = vmatmul.f32.gmra.mxu0 %v1982
    %v2005 = vpop.f32.mrf.mxu0
    %v2006 = vadd.f32 %v1535, %v2005
    %2007 = vdwg.mxu0
    %2008 = vmatpush.msra.mxu0 %v1525
    %2009 = vmatpush.msra.mxu0 %v1522
    %2010 = vmatpush.msra.mxu0 %v1519
    %2011 = vmatpush.msra.mxu0 %v1516
    %2012 = vmatpush.msra.mxu0 %v1513
    %2013 = vmatpush.msra.mxu0 %v1510
    %2014 = vmatpush.msra.mxu0 %v1507
    %2015 = vmatpush.msra.mxu0 %v1504
    %2016 = vmatpush.msra.mxu0 %v1501
    %2017 = vmatpush.msra.mxu0 %v1498
    %2018 = vmatpush.msra.mxu0 %v1495
    %2019 = vmatpush.msra.mxu0 %v1492
    %2020 = vmatpush.msra.mxu0 %v1489
    %2021 = vmatpush.msra.mxu0 %v1486
    %2022 = vmatpush.msra.mxu0 %v1483
    %2023 = vmatpush.msra.mxu0 %v1480
    %2024 = vmatmul.f32.gmra.mxu0 %v1982
    %v2025 = vpop.f32.mrf.mxu0
    %v2026 = vadd.f32 %v1536, %v2025
    %2027 = vdwg.mxu0
    %2028 = vmatpush.msra.mxu0 %v1526
    %2029 = vmatpush.msra.mxu0 %v1523
    %2030 = vmatpush.msra.mxu0 %v1520
    %2031 = vmatpush.msra.mxu0 %v1517
    %2032 = vmatpush.msra.mxu0 %v1514
    %2033 = vmatpush.msra.mxu0 %v1511
    %2034 = vmatpush.msra.mxu0 %v1508
    %2035 = vmatpush.msra.mxu0 %v1505
    %2036 = vmatpush.msra.mxu0 %v1502
    %2037 = vmatpush.msra.mxu0 %v1499
    %2038 = vmatpush.msra.mxu0 %v1496
    %2039 = vmatpush.msra.mxu0 %v1493
    %2040 = vmatpush.msra.mxu0 %v1490
    %2041 = vmatpush.msra.mxu0 %v1487
    %2042 = vmatpush.msra.mxu0 %v1484
    %2043 = vmatpush.msra.mxu0 %v1481
    %2044 = vmatmul.f32.gmra.mxu0 %v1982
    %v2045 = vpop.f32.mrf.mxu0
    %v2046 = vadd.f32 %v1537, %v2045
    %2047 = vdwg.mxu0
    %v2048 = vadd.f32 %v1985, %v2006
    %v2049 = vxor.u32 %v2048, 2147483648
    %v2050 = vmul.f32 %v2049, 1.442695
    %v2051 = vpow.pop %v2050
    %v2052 = vadd.f32 %v2051, 1.0
    %v2053 = vrcp.pop %v2052
    %v2054 = vmul.f32 %v2052, %v2053
    %v2055 = vsub.f32 1.0, %v2054
    %v2056 = vmul.f32 %v2053, %v2055
    %v2057 = vadd.f32 %v2053, %v2056
    %vm2058 = vweird.f32 %v2052
    %vm2059 = vweird.f32 %v2053
    %vm2060 = vmor %vm2058, %vm2059
    %v2061 = vsel %vm2060, %v2053, %v2057
    %v2062 = vand.u32 2147483647, %v2052
    %vm2063 = vcmp.eq.f32.partialorder %v2062, 8.507059e+37
    %v2064 = vand.u32 %v2052, 2147483648
    %v2065 = vor.u32 1.1754944e-38, %v2064
    %v2066 = vsel %vm2063, %v2065, %v2061
    %v2067 = vmul.f32 1.0, %v2066
    %v2068 = vadd.f32 %v1986, %v2026
    %v2069 = vxor.u32 %v2068, 2147483648
    %v2070 = vmul.f32 %v2069, 1.442695
    %v2071 = vpow.pop %v2070
    %v2072 = vadd.f32 %v2071, 1.0
    %v2073 = vrcp.pop %v2072
    %v2074 = vmul.f32 %v2072, %v2073
    %v2075 = vsub.f32 1.0, %v2074
    %v2076 = vmul.f32 %v2073, %v2075
    %v2077 = vadd.f32 %v2073, %v2076
    %vm2078 = vweird.f32 %v2072
    %vm2079 = vweird.f32 %v2073
    %vm2080 = vmor %vm2078, %vm2079
    %v2081 = vsel %vm2080, %v2073, %v2077
    %v2082 = vand.u32 2147483647, %v2072
    %vm2083 = vcmp.eq.f32.partialorder %v2082, 8.507059e+37
    %v2084 = vand.u32 %v2072, 2147483648
    %v2085 = vor.u32 1.1754944e-38, %v2084
    %v2086 = vsel %vm2083, %v2085, %v2081
    %v2087 = vmul.f32 1.0, %v2086
    %v2088 = vmul.f32 %v2067, %v2046
    %v2089 = vadd.f32 %v1987, %v2088
    %v2090 = vtanh.pop %v2089
    %v2091 = vsub.f32 1.0, %v2087
    %v2092 = vmul.f32 %v2091, %v2090
    %v2093 = vmul.f32 %v2087, %v1982
    %v2094 = vadd.f32 %v2092, %v2093
    %s2095 = scalar_lea.vmem [#allocation4], 32
    %2096 = vst [vmem:[%s2095] sm:$0xff] %v2094
    %v2097 = vld [vmem:[%s925] sm:$0xff]
    %v2098 = vld [vmem:[%s925 + $0x8] sm:$0xff]
    %v2099 = vld [vmem:[%s925 + $0x10] sm:$0xff]
    %2100 = vmatpush.msra.mxu0 %v1524
    %2101 = vmatpush.msra.mxu0 %v1521
    %2102 = vmatpush.msra.mxu0 %v1518
    %2103 = vmatpush.msra.mxu0 %v1515
    %2104 = vmatpush.msra.mxu0 %v1512
    %2105 = vmatpush.msra.mxu0 %v1509
    %2106 = vmatpush.msra.mxu0 %v1506
    %2107 = vmatpush.msra.mxu0 %v1503
    %2108 = vmatpush.msra.mxu0 %v1500
    %2109 = vmatpush.msra.mxu0 %v1497
    %2110 = vmatpush.msra.mxu0 %v1494
    %2111 = vmatpush.msra.mxu0 %v1491
    %2112 = vmatpush.msra.mxu0 %v1488
    %2113 = vmatpush.msra.mxu0 %v1485
    %2114 = vmatpush.msra.mxu0 %v1482
    %2115 = vmatpush.msra.mxu0 %v1479
    %2116 = vmatmul.f32.gmra.mxu0 %v2094
    %v2117 = vpop.f32.mrf.mxu0
    %v2118 = vadd.f32 %v1535, %v2117
    %2119 = vdwg.mxu0
    %2120 = vmatpush.msra.mxu0 %v1525
    %2121 = vmatpush.msra.mxu0 %v1522
    %2122 = vmatpush.msra.mxu0 %v1519
    %2123 = vmatpush.msra.mxu0 %v1516
    %2124 = vmatpush.msra.mxu0 %v1513
    %2125 = vmatpush.msra.mxu0 %v1510
    %2126 = vmatpush.msra.mxu0 %v1507
    %2127 = vmatpush.msra.mxu0 %v1504
    %2128 = vmatpush.msra.mxu0 %v1501
    %2129 = vmatpush.msra.mxu0 %v1498
    %2130 = vmatpush.msra.mxu0 %v1495
    %2131 = vmatpush.msra.mxu0 %v1492
    %2132 = vmatpush.msra.mxu0 %v1489
    %2133 = vmatpush.msra.mxu0 %v1486
    %2134 = vmatpush.msra.mxu0 %v1483
    %2135 = vmatpush.msra.mxu0 %v1480
    %2136 = vmatmul.f32.gmra.mxu0 %v2094
    %v2137 = vpop.f32.mrf.mxu0
    %v2138 = vadd.f32 %v1536, %v2137
    %2139 = vdwg.mxu0
    %2140 = vmatpush.msra.mxu0 %v1526
    %2141 = vmatpush.msra.mxu0 %v1523
    %2142 = vmatpush.msra.mxu0 %v1520
    %2143 = vmatpush.msra.mxu0 %v1517
    %2144 = vmatpush.msra.mxu0 %v1514
    %2145 = vmatpush.msra.mxu0 %v1511
    %2146 = vmatpush.msra.mxu0 %v1508
    %2147 = vmatpush.msra.mxu0 %v1505
    %2148 = vmatpush.msra.mxu0 %v1502
    %2149 = vmatpush.msra.mxu0 %v1499
    %2150 = vmatpush.msra.mxu0 %v1496
    %2151 = vmatpush.msra.mxu0 %v1493
    %2152 = vmatpush.msra.mxu0 %v1490
    %2153 = vmatpush.msra.mxu0 %v1487
    %2154 = vmatpush.msra.mxu0 %v1484
    %2155 = vmatpush.msra.mxu0 %v1481
    %2156 = vmatmul.f32.gmra.mxu0 %v2094
    %v2157 = vpop.f32.mrf.mxu0
    %v2158 = vadd.f32 %v1537, %v2157
    %2159 = vdwg.mxu0
    %v2160 = vadd.f32 %v2097, %v2118
    %v2161 = vxor.u32 %v2160, 2147483648
    %v2162 = vmul.f32 %v2161, 1.442695
    %v2163 = vpow.pop %v2162
    %v2164 = vadd.f32 %v2163, 1.0
    %v2165 = vrcp.pop %v2164
    %v2166 = vmul.f32 %v2164, %v2165
    %v2167 = vsub.f32 1.0, %v2166
    %v2168 = vmul.f32 %v2165, %v2167
    %v2169 = vadd.f32 %v2165, %v2168
    %vm2170 = vweird.f32 %v2164
    %vm2171 = vweird.f32 %v2165
    %vm2172 = vmor %vm2170, %vm2171
    %v2173 = vsel %vm2172, %v2165, %v2169
    %v2174 = vand.u32 2147483647, %v2164
    %vm2175 = vcmp.eq.f32.partialorder %v2174, 8.507059e+37
    %v2176 = vand.u32 %v2164, 2147483648
    %v2177 = vor.u32 1.1754944e-38, %v2176
    %v2178 = vsel %vm2175, %v2177, %v2173
    %v2179 = vmul.f32 1.0, %v2178
    %v2180 = vadd.f32 %v2098, %v2138
    %v2181 = vxor.u32 %v2180, 2147483648
    %v2182 = vmul.f32 %v2181, 1.442695
    %v2183 = vpow.pop %v2182
    %v2184 = vadd.f32 %v2183, 1.0
    %v2185 = vrcp.pop %v2184
    %v2186 = vmul.f32 %v2184, %v2185
    %v2187 = vsub.f32 1.0, %v2186
    %v2188 = vmul.f32 %v2185, %v2187
    %v2189 = vadd.f32 %v2185, %v2188
    %vm2190 = vweird.f32 %v2184
    %vm2191 = vweird.f32 %v2185
    %vm2192 = vmor %vm2190, %vm2191
    %v2193 = vsel %vm2192, %v2185, %v2189
    %v2194 = vand.u32 2147483647, %v2184
    %vm2195 = vcmp.eq.f32.partialorder %v2194, 8.507059e+37
    %v2196 = vand.u32 %v2184, 2147483648
    %v2197 = vor.u32 1.1754944e-38, %v2196
    %v2198 = vsel %vm2195, %v2197, %v2193
    %v2199 = vmul.f32 1.0, %v2198
    %v2200 = vmul.f32 %v2179, %v2158
    %v2201 = vadd.f32 %v2099, %v2200
    %v2202 = vtanh.pop %v2201
    %v2203 = vsub.f32 1.0, %v2199
    %v2204 = vmul.f32 %v2203, %v2202
    %v2205 = vmul.f32 %v2199, %v2094
    %v2206 = vadd.f32 %v2204, %v2205
    %s2207 = scalar_lea.vmem [#allocation4], 40
    %2208 = vst [vmem:[%s2207] sm:$0xff] %v2206
    %v2209 = vld [vmem:[%s1038] sm:$0xff]
    %v2210 = vld [vmem:[%s1038 + $0x8] sm:$0xff]
    %v2211 = vld [vmem:[%s1038 + $0x10] sm:$0xff]
    %2212 = vmatpush.msra.mxu0 %v1524
    %2213 = vmatpush.msra.mxu0 %v1521
    %2214 = vmatpush.msra.mxu0 %v1518
    %2215 = vmatpush.msra.mxu0 %v1515
    %2216 = vmatpush.msra.mxu0 %v1512
    %2217 = vmatpush.msra.mxu0 %v1509
    %2218 = vmatpush.msra.mxu0 %v1506
    %2219 = vmatpush.msra.mxu0 %v1503
    %2220 = vmatpush.msra.mxu0 %v1500
    %2221 = vmatpush.msra.mxu0 %v1497
    %2222 = vmatpush.msra.mxu0 %v1494
    %2223 = vmatpush.msra.mxu0 %v1491
    %2224 = vmatpush.msra.mxu0 %v1488
    %2225 = vmatpush.msra.mxu0 %v1485
    %2226 = vmatpush.msra.mxu0 %v1482
    %2227 = vmatpush.msra.mxu0 %v1479
    %2228 = vmatmul.f32.gmra.mxu0 %v2206
    %v2229 = vpop.f32.mrf.mxu0
    %v2230 = vadd.f32 %v1535, %v2229
    %2231 = vdwg.mxu0
    %2232 = vmatpush.msra.mxu0 %v1525
    %2233 = vmatpush.msra.mxu0 %v1522
    %2234 = vmatpush.msra.mxu0 %v1519
    %2235 = vmatpush.msra.mxu0 %v1516
    %2236 = vmatpush.msra.mxu0 %v1513
    %2237 = vmatpush.msra.mxu0 %v1510
    %2238 = vmatpush.msra.mxu0 %v1507
    %2239 = vmatpush.msra.mxu0 %v1504
    %2240 = vmatpush.msra.mxu0 %v1501
    %2241 = vmatpush.msra.mxu0 %v1498
    %2242 = vmatpush.msra.mxu0 %v1495
    %2243 = vmatpush.msra.mxu0 %v1492
    %2244 = vmatpush.msra.mxu0 %v1489
    %2245 = vmatpush.msra.mxu0 %v1486
    %2246 = vmatpush.msra.mxu0 %v1483
    %2247 = vmatpush.msra.mxu0 %v1480
    %2248 = vmatmul.f32.gmra.mxu0 %v2206
    %v2249 = vpop.f32.mrf.mxu0
    %v2250 = vadd.f32 %v1536, %v2249
    %2251 = vdwg.mxu0
    %2252 = vmatpush.msra.mxu0 %v1526
    %2253 = vmatpush.msra.mxu0 %v1523
    %2254 = vmatpush.msra.mxu0 %v1520
    %2255 = vmatpush.msra.mxu0 %v1517
    %2256 = vmatpush.msra.mxu0 %v1514
    %2257 = vmatpush.msra.mxu0 %v1511
    %2258 = vmatpush.msra.mxu0 %v1508
    %2259 = vmatpush.msra.mxu0 %v1505
    %2260 = vmatpush.msra.mxu0 %v1502
    %2261 = vmatpush.msra.mxu0 %v1499
    %2262 = vmatpush.msra.mxu0 %v1496
    %2263 = vmatpush.msra.mxu0 %v1493
    %2264 = vmatpush.msra.mxu0 %v1490
    %2265 = vmatpush.msra.mxu0 %v1487
    %2266 = vmatpush.msra.mxu0 %v1484
    %2267 = vmatpush.msra.mxu0 %v1481
    %2268 = vmatmul.f32.gmra.mxu0 %v2206
    %v2269 = vpop.f32.mrf.mxu0
    %v2270 = vadd.f32 %v1537, %v2269
    %2271 = vdwg.mxu0
    %v2272 = vadd.f32 %v2209, %v2230
    %v2273 = vxor.u32 %v2272, 2147483648
    %v2274 = vmul.f32 %v2273, 1.442695
    %v2275 = vpow.pop %v2274
    %v2276 = vadd.f32 %v2275, 1.0
    %v2277 = vrcp.pop %v2276
    %v2278 = vmul.f32 %v2276, %v2277
    %v2279 = vsub.f32 1.0, %v2278
    %v2280 = vmul.f32 %v2277, %v2279
    %v2281 = vadd.f32 %v2277, %v2280
    %vm2282 = vweird.f32 %v2276
    %vm2283 = vweird.f32 %v2277
    %vm2284 = vmor %vm2282, %vm2283
    %v2285 = vsel %vm2284, %v2277, %v2281
    %v2286 = vand.u32 2147483647, %v2276
    %vm2287 = vcmp.eq.f32.partialorder %v2286, 8.507059e+37
    %v2288 = vand.u32 %v2276, 2147483648
    %v2289 = vor.u32 1.1754944e-38, %v2288
    %v2290 = vsel %vm2287, %v2289, %v2285
    %v2291 = vmul.f32 1.0, %v2290
    %v2292 = vadd.f32 %v2210, %v2250
    %v2293 = vxor.u32 %v2292, 2147483648
    %v2294 = vmul.f32 %v2293, 1.442695
    %v2295 = vpow.pop %v2294
    %v2296 = vadd.f32 %v2295, 1.0
    %v2297 = vrcp.pop %v2296
    %v2298 = vmul.f32 %v2296, %v2297
    %v2299 = vsub.f32 1.0, %v2298
    %v2300 = vmul.f32 %v2297, %v2299
    %v2301 = vadd.f32 %v2297, %v2300
    %vm2302 = vweird.f32 %v2296
    %vm2303 = vweird.f32 %v2297
    %vm2304 = vmor %vm2302, %vm2303
    %v2305 = vsel %vm2304, %v2297, %v2301
    %v2306 = vand.u32 2147483647, %v2296
    %vm2307 = vcmp.eq.f32.partialorder %v2306, 8.507059e+37
    %v2308 = vand.u32 %v2296, 2147483648
    %v2309 = vor.u32 1.1754944e-38, %v2308
    %v2310 = vsel %vm2307, %v2309, %v2305
    %v2311 = vmul.f32 1.0, %v2310
    %v2312 = vmul.f32 %v2291, %v2270
    %v2313 = vadd.f32 %v2211, %v2312
    %v2314 = vtanh.pop %v2313
    %v2315 = vsub.f32 1.0, %v2311
    %v2316 = vmul.f32 %v2315, %v2314
    %v2317 = vmul.f32 %v2311, %v2206
    %v2318 = vadd.f32 %v2316, %v2317
    %s2319 = scalar_lea.vmem [#allocation4], 48
    %2320 = vst [vmem:[%s2319] sm:$0xff] %v2318
    %v2321 = vld [vmem:[%s1151] sm:$0xff]
    %v2322 = vld [vmem:[%s1151 + $0x8] sm:$0xff]
    %v2323 = vld [vmem:[%s1151 + $0x10] sm:$0xff]
    %2324 = vmatpush.msra.mxu0 %v1524
    %2325 = vmatpush.msra.mxu0 %v1521
    %2326 = vmatpush.msra.mxu0 %v1518
    %2327 = vmatpush.msra.mxu0 %v1515
    %2328 = vmatpush.msra.mxu0 %v1512
    %2329 = vmatpush.msra.mxu0 %v1509
    %2330 = vmatpush.msra.mxu0 %v1506
    %2331 = vmatpush.msra.mxu0 %v1503
    %2332 = vmatpush.msra.mxu0 %v1500
    %2333 = vmatpush.msra.mxu0 %v1497
    %2334 = vmatpush.msra.mxu0 %v1494
    %2335 = vmatpush.msra.mxu0 %v1491
    %2336 = vmatpush.msra.mxu0 %v1488
    %2337 = vmatpush.msra.mxu0 %v1485
    %2338 = vmatpush.msra.mxu0 %v1482
    %2339 = vmatpush.msra.mxu0 %v1479
    %2340 = vmatmul.f32.gmra.mxu0 %v2318
    %v2341 = vpop.f32.mrf.mxu0
    %v2342 = vadd.f32 %v1535, %v2341
    %2343 = vdwg.mxu0
    %2344 = vmatpush.msra.mxu0 %v1525
    %2345 = vmatpush.msra.mxu0 %v1522
    %2346 = vmatpush.msra.mxu0 %v1519
    %2347 = vmatpush.msra.mxu0 %v1516
    %2348 = vmatpush.msra.mxu0 %v1513
    %2349 = vmatpush.msra.mxu0 %v1510
    %2350 = vmatpush.msra.mxu0 %v1507
    %2351 = vmatpush.msra.mxu0 %v1504
    %2352 = vmatpush.msra.mxu0 %v1501
    %2353 = vmatpush.msra.mxu0 %v1498
    %2354 = vmatpush.msra.mxu0 %v1495
    %2355 = vmatpush.msra.mxu0 %v1492
    %2356 = vmatpush.msra.mxu0 %v1489
    %2357 = vmatpush.msra.mxu0 %v1486
    %2358 = vmatpush.msra.mxu0 %v1483
    %2359 = vmatpush.msra.mxu0 %v1480
    %2360 = vmatmul.f32.gmra.mxu0 %v2318
    %v2361 = vpop.f32.mrf.mxu0
    %v2362 = vadd.f32 %v1536, %v2361
    %2363 = vdwg.mxu0
    %2364 = vmatpush.msra.mxu0 %v1526
    %2365 = vmatpush.msra.mxu0 %v1523
    %2366 = vmatpush.msra.mxu0 %v1520
    %2367 = vmatpush.msra.mxu0 %v1517
    %2368 = vmatpush.msra.mxu0 %v1514
    %2369 = vmatpush.msra.mxu0 %v1511
    %2370 = vmatpush.msra.mxu0 %v1508
    %2371 = vmatpush.msra.mxu0 %v1505
    %2372 = vmatpush.msra.mxu0 %v1502
    %2373 = vmatpush.msra.mxu0 %v1499
    %2374 = vmatpush.msra.mxu0 %v1496
    %2375 = vmatpush.msra.mxu0 %v1493
    %2376 = vmatpush.msra.mxu0 %v1490
    %2377 = vmatpush.msra.mxu0 %v1487
    %2378 = vmatpush.msra.mxu0 %v1484
    %2379 = vmatpush.msra.mxu0 %v1481
    %2380 = vmatmul.f32.gmra.mxu0 %v2318
    %v2381 = vpop.f32.mrf.mxu0
    %v2382 = vadd.f32 %v1537, %v2381
    %2383 = vdwg.mxu0
    %v2384 = vadd.f32 %v2321, %v2342
    %v2385 = vxor.u32 %v2384, 2147483648
    %v2386 = vmul.f32 %v2385, 1.442695
    %v2387 = vpow.pop %v2386
    %v2388 = vadd.f32 %v2387, 1.0
    %v2389 = vrcp.pop %v2388
    %v2390 = vmul.f32 %v2388, %v2389
    %v2391 = vsub.f32 1.0, %v2390
    %v2392 = vmul.f32 %v2389, %v2391
    %v2393 = vadd.f32 %v2389, %v2392
    %vm2394 = vweird.f32 %v2388
    %vm2395 = vweird.f32 %v2389
    %vm2396 = vmor %vm2394, %vm2395
    %v2397 = vsel %vm2396, %v2389, %v2393
    %v2398 = vand.u32 2147483647, %v2388
    %vm2399 = vcmp.eq.f32.partialorder %v2398, 8.507059e+37
    %v2400 = vand.u32 %v2388, 2147483648
    %v2401 = vor.u32 1.1754944e-38, %v2400
    %v2402 = vsel %vm2399, %v2401, %v2397
    %v2403 = vmul.f32 1.0, %v2402
    %v2404 = vadd.f32 %v2322, %v2362
    %v2405 = vxor.u32 %v2404, 2147483648
    %v2406 = vmul.f32 %v2405, 1.442695
    %v2407 = vpow.pop %v2406
    %v2408 = vadd.f32 %v2407, 1.0
    %v2409 = vrcp.pop %v2408
    %v2410 = vmul.f32 %v2408, %v2409
    %v2411 = vsub.f32 1.0, %v2410
    %v2412 = vmul.f32 %v2409, %v2411
    %v2413 = vadd.f32 %v2409, %v2412
    %vm2414 = vweird.f32 %v2408
    %vm2415 = vweird.f32 %v2409
    %vm2416 = vmor %vm2414, %vm2415
    %v2417 = vsel %vm2416, %v2409, %v2413
    %v2418 = vand.u32 2147483647, %v2408
    %vm2419 = vcmp.eq.f32.partialorder %v2418, 8.507059e+37
    %v2420 = vand.u32 %v2408, 2147483648
    %v2421 = vor.u32 1.1754944e-38, %v2420
    %v2422 = vsel %vm2419, %v2421, %v2417
    %v2423 = vmul.f32 1.0, %v2422
    %v2424 = vmul.f32 %v2403, %v2382
    %v2425 = vadd.f32 %v2323, %v2424
    %v2426 = vtanh.pop %v2425
    %v2427 = vsub.f32 1.0, %v2423
    %v2428 = vmul.f32 %v2427, %v2426
    %v2429 = vmul.f32 %v2423, %v2318
    %v2430 = vadd.f32 %v2428, %v2429
    %s2431 = scalar_lea.vmem [#allocation4], 56
    %2432 = vst [vmem:[%s2431] sm:$0xff] %v2430
    %s2433 = scalar_lea.vmem %s9, 8
    %2434 = vst [vmem:[%s2433] sm:$0xff] %v2430
    %v2435 = vld [vmem:[#allocation4] sm:$0xff]
    %v2436 = vld [vmem:[#allocation4 + $0x8] sm:$0xff]
    %v2437 = vld [vmem:[#allocation4 + $0x10] sm:$0xff]
    %v2438 = vld [vmem:[#allocation4 + $0x18] sm:$0xff]
    %v2439 = vld [vmem:[#allocation4 + $0x20] sm:$0xff]
    %v2440 = vld [vmem:[#allocation4 + $0x28] sm:$0xff]
    %v2441 = vld [vmem:[#allocation4 + $0x30] sm:$0xff]
    %v2442 = vld [vmem:[#allocation4 + $0x38] sm:$0xff]
    %v2443 = vld [vmem:[%s6] sm:$0xff]
    %v2444 = vld [vmem:[%s6 + $0x8] sm:$0xff]
    %v2445 = vld [vmem:[%s6 + $0x10] sm:$0xff]
    %v2446 = vld [vmem:[%s6 + $0x18] sm:$0xff]
    %v2447 = vld [vmem:[%s6 + $0x20] sm:$0xff]
    %v2448 = vld [vmem:[%s6 + $0x28] sm:$0xff]
    %v2449 = vld [vmem:[%s6 + $0x30] sm:$0xff]
    %v2450 = vld [vmem:[%s6 + $0x38] sm:$0xff]
    %v2451 = vld [vmem:[%s6 + $0x40] sm:$0xff]
    %v2452 = vld [vmem:[%s6 + $0x48] sm:$0xff]
    %v2453 = vld [vmem:[%s6 + $0x50] sm:$0xff]
    %v2454 = vld [vmem:[%s6 + $0x58] sm:$0xff]
    %v2455 = vld [vmem:[%s6 + $0x60] sm:$0xff]
    %v2456 = vld [vmem:[%s6 + $0x68] sm:$0xff]
    %v2457 = vld [vmem:[%s6 + $0x70] sm:$0xff]
    %v2458 = vld [vmem:[%s6 + $0x78] sm:$0xff]
    %v2459 = vld [vmem:[%s7] sm:$0x1]
    %v2461 = vperm.slane %v2459, 0
    %2463 = vmatpush.msra.mxu0 %v2458
    %2464 = vmatpush.msra.mxu0 %v2457
    %2465 = vmatpush.msra.mxu0 %v2456
    %2466 = vmatpush.msra.mxu0 %v2455
    %2467 = vmatpush.msra.mxu0 %v2454
    %2468 = vmatpush.msra.mxu0 %v2453
    %2469 = vmatpush.msra.mxu0 %v2452
    %2470 = vmatpush.msra.mxu0 %v2451
    %2471 = vmatpush.msra.mxu0 %v2450
    %2472 = vmatpush.msra.mxu0 %v2449
    %2473 = vmatpush.msra.mxu0 %v2448
    %2474 = vmatpush.msra.mxu0 %v2447
    %2475 = vmatpush.msra.mxu0 %v2446
    %2476 = vmatpush.msra.mxu0 %v2445
    %2477 = vmatpush.msra.mxu0 %v2444
    %2478 = vmatpush.msra.mxu0 %v2443
    %2479 = vmatmul.f32.gmra.mxu0 %v2435
    %v2480 = vpop.f32.mrf.mxu0
    %v2481 = vadd.f32 %v2461, %v2480
    %2482 = vmatmul.f32.gmra.mxu0 %v2436
    %v2483 = vpop.f32.mrf.mxu0
    %v2484 = vadd.f32 %v2461, %v2483
    %2485 = vmatmul.f32.gmra.mxu0 %v2437
    %v2486 = vpop.f32.mrf.mxu0
    %v2487 = vadd.f32 %v2461, %v2486
    %2488 = vmatmul.f32.gmra.mxu0 %v2438
    %v2489 = vpop.f32.mrf.mxu0
    %v2490 = vadd.f32 %v2461, %v2489
    %2491 = vmatmul.f32.gmra.mxu0 %v2439
    %v2492 = vpop.f32.mrf.mxu0
    %v2493 = vadd.f32 %v2461, %v2492
    %2494 = vmatmul.f32.gmra.mxu0 %v2440
    %v2495 = vpop.f32.mrf.mxu0
    %v2496 = vadd.f32 %v2461, %v2495
    %2497 = vmatmul.f32.gmra.mxu0 %v2441
    %v2498 = vpop.f32.mrf.mxu0
    %v2499 = vadd.f32 %v2461, %v2498
    %2500 = vmatmul.f32.gmra.mxu0 %v2442
    %v2501 = vpop.f32.mrf.mxu0
    %v2502 = vadd.f32 %v2461, %v2501
    %2503 = vdwg.mxu0
    %2504 = vst [vmem:[%s8] sm:$0xff] %v2481
    %2505 = vst [vmem:[%s8 + $0x8] sm:$0xff] %v2484
    %2506 = vst [vmem:[%s8 + $0x10] sm:$0xff] %v2487
    %2507 = vst [vmem:[%s8 + $0x18] sm:$0xff] %v2490
    %2508 = vst [vmem:[%s8 + $0x20] sm:$0xff] %v2493
    %2509 = vst [vmem:[%s8 + $0x28] sm:$0xff] %v2496
    %2510 = vst [vmem:[%s8 + $0x30] sm:$0xff] %v2499
    %2511 = vst [vmem:[%s8 + $0x38] sm:$0xff] %v2502
    // Predicated region
    $region50: #{decoder_rnn_forward.1} parent=1 // pred_check
      _
    $region51: #{decoder_rnn_forward.1} parent=1 // pred_check_branch
      %2513 = sbr.rel (0) target = $region53
    $region52: #{decoder_rnn_forward.1} parent=1 // pred_region
      _
    $region53: #{decoder_rnn_forward.1} parent=1 // pred_fallthru
      _
    // Predicated region
    $region54: #{decoder_rnn_forward.1} parent=1 // pred_check
      _
    $region55: #{decoder_rnn_forward.1} parent=1 // pred_check_branch
      %2515 = sbr.rel (0) target = $region57
    $region56: #{decoder_rnn_forward.1} parent=1 // pred_region
      _
    $region57: #{decoder_rnn_forward.1} parent=1 // pred_fallthru
      _
    // Predicated region
    $region58: #{decoder_rnn_forward.1} parent=1 // pred_check
      _
    $region59: #{decoder_rnn_forward.1} parent=1 // pred_check_branch
      %2517 = sbr.rel (0) target = $region61
    $region60: #{decoder_rnn_forward.1} parent=1 // pred_region
      _
    $region61: #{decoder_rnn_forward.1} parent=1 // pred_fallthru
      _
    // Predicated region
    $region62: #{decoder_rnn_forward.1} parent=1 // pred_check
      _
    $region63: #{decoder_rnn_forward.1} parent=1 // pred_check_branch
      %2519 = sbr.rel (0) target = $region65
    $region64: #{decoder_rnn_forward.1} parent=1 // pred_region
      _
    $region65: #{decoder_rnn_forward.1} parent=1 // pred_fallthru
      _
    %2520 = vsyncpa [#allocation6], 1
    %2521 = vsyncpa [#allocation8], 1
    %2522 = vsyncpa [#allocation11], 1

</llo_original>
